<compile_context>
chip_gen: v7x
topology: tpu7x:2x2x1
jax: 0.10.0
libtpu: 0.0.40
codegen_flags: <defaults>
</compile_context>

<pallas_src>
import functools

import jax
import jax.numpy as jnp
from jax.experimental import pallas as pl
from jax.experimental.pallas import tpu as pltpu


# -----------------------------------------------------------------------------
# Kernel A: per-point MLP (conv1/conv2/conv3, k=1, BN folded) streamed over the
#           point axis in chunks with a running lane-dense max.
#           Grid = (B,)  ("parallel" -> megacore on v7x).
#   x_ref : (C, N_pad)     bf16   (batch dim squeezed by the BlockSpec)
#   w1    : (C, 64)        bf16   (pre-transposed, contract C directly)
#   b1    : (1, 64)        f32
#   w2    : (64, 128)      bf16
#   b2    : (1, 128)       f32
#   w3    : (128, 1024)    bf16   (bn3 bias + ReLU deferred past the max)
#   out   : (1, 1024)      f32    lane-dense per-batch max
# -----------------------------------------------------------------------------
def point_mlp_max_kernel(x_ref, w1_ref, b1_ref, w2_ref, b2_ref, w3_ref,
                         out_ref, *, chunk_n, n_chunks):
    def body(i, acc):
        start = pl.multiple_of(i * chunk_n, chunk_n)
        xc = x_ref[:, pl.ds(start, chunk_n)]                      # (C, cn) bf16
        # conv1: contract the C axis of x directly -> (cn, 64), points on
        # sublanes / channels on lanes (no materialized transpose).
        h1 = jax.lax.dot_general(
            xc, w1_ref[...], (((0,), (0,)), ((), ())),
            preferred_element_type=jnp.float32)                   # (cn, 64)
        h1 = jnp.maximum(h1 + b1_ref[...], 0.0)
        h2 = jnp.maximum(
            jnp.dot(h1.astype(jnp.bfloat16), w2_ref[...],
                    preferred_element_type=jnp.float32)
            + b2_ref[...], 0.0)                                   # (cn, 128)
        h3 = jnp.dot(h2.astype(jnp.bfloat16), w3_ref[...],
                     preferred_element_type=jnp.float32)          # (cn, 1024)
        # sublane max over the points of this chunk, streamed into the
        # running accumulator -> the full h3 is never materialized.
        return jnp.maximum(acc, jnp.max(h3, axis=0, keepdims=True))

    acc0 = jnp.full((1, 1024), -jnp.inf, dtype=jnp.float32)
    out_ref[...] = jax.lax.fori_loop(0, n_chunks, body, acc0)


# -----------------------------------------------------------------------------
# Kernel B: deferred conv3 bias+ReLU, fc1/fc2 (+BN folded, ReLU), fc3 (padded
#           to 128 output lanes -> unmasked stores), + eye(3) identity bias.
# -----------------------------------------------------------------------------
def fc_head_kernel(f_ref, b3_ref, fw1_ref, fb1_ref, fw2_ref, fb2_ref,
                   fw3_ref, fb3_ref, out_ref):
    # finish conv3: add folded bn3 bias, then the deferred ReLU
    f = jnp.maximum(f_ref[...] + b3_ref[...], 0.0)                # (B, 1024)
    h = jnp.maximum(
        jnp.dot(f.astype(jnp.bfloat16), fw1_ref[...],
                preferred_element_type=jnp.float32) + fb1_ref[...], 0.0)
    h = jnp.maximum(
        jnp.dot(h.astype(jnp.bfloat16), fw2_ref[...],
                preferred_element_type=jnp.float32) + fb2_ref[...], 0.0)
    y = (jnp.dot(h.astype(jnp.bfloat16), fw3_ref[...],
                 preferred_element_type=jnp.float32)
         + fb3_ref[...])                                          # (B, 128)
    # iden = eye(3).flatten() -> +1 at flat positions 0, 4, 8
    col = jax.lax.broadcasted_iota(jnp.int32, y.shape, 1)
    out_ref[...] = y + jnp.where((col % 4 == 0) & (col < 9), 1.0, 0.0)


# -----------------------------------------------------------------------------
# Wrapper
# -----------------------------------------------------------------------------
_OUT_PAD = 128   # lane-dense fc3 output width (sliced back to 9 outside)


@jax.jit
def stn3d_forward(x_bcn, params):
    """x_bcn: (B, C, N) float32, PyTorch Conv1d layout. Returns (B, 3, 3)."""
    B, C, N = x_bcn.shape
    (w1, b1, w2, b2, w3, b3, fw1, fb1, fw2, fb2, fw3, fb3) = params

    # fc3 padded to a lane-dense 128-wide output (sliced back to 9 below)
    fw3p = jnp.pad(fw3, ((0, 0), (0, _OUT_PAD - fw3.shape[1])))
    fb3p = jnp.pad(fb3, ((0, 0), (0, _OUT_PAD - fb3.shape[1])))

    # Point-axis prep: edge-pad to a multiple of 128 lanes (duplicated real
    # points cannot change the max -> no in-kernel masking) and cast to bf16
    # (halves the only O(B*N) HBM read; matmuls run in bf16 anyway).
    n_pad = max(128, ((N + 127) // 128) * 128)
    x_p = x_bcn
    if n_pad != N:
        x_p = jnp.pad(x_p, ((0, 0), (0, 0), (0, n_pad - N)), mode="edge")
    x_p = x_p.astype(jnp.bfloat16)

    # In-kernel streaming chunk over the point axis (128-256 points/chunk
    # bounds the live f32 conv3 intermediate and the VMEM spill traffic).
    chunk_n = 256 if n_pad % 256 == 0 else 128
    n_chunks = n_pad // chunk_n

    def _rep(a):
        nd = a.ndim
        return pl.BlockSpec(a.shape, lambda *_: (0,) * nd)

    # ---- Kernel A: per-point MLP + streamed max pool, grid=(B,) -------------
    feat = pl.pallas_call(
        functools.partial(point_mlp_max_kernel,
                          chunk_n=chunk_n, n_chunks=n_chunks),
        out_shape=jax.ShapeDtypeStruct((B, 1, 1024), jnp.float32),
        grid_spec=pltpu.PrefetchScalarGridSpec(
            num_scalar_prefetch=0,
            grid=(B,),
            in_specs=[
                pl.BlockSpec((None, C, n_pad), lambda b: (b, 0, 0)),
                _rep(w1), _rep(b1), _rep(w2), _rep(b2), _rep(w3),
            ],
            out_specs=pl.BlockSpec((None, 1, 1024), lambda b: (b, 0, 0)),
        ),
        compiler_params=pltpu.CompilerParams(
            dimension_semantics=("parallel",)),
    )(x_p, w1, b1, w2, b2, w3)

    feat = feat.reshape(B, 1024)                  # x.view(-1, 1024)

    # ---- Kernel B: FC head, lane-dense padded output -------------------------
    out_p = pl.pallas_call(
        fc_head_kernel,
        out_shape=jax.ShapeDtypeStruct((B, _OUT_PAD), jnp.float32),
        grid_spec=pltpu.PrefetchScalarGridSpec(
            num_scalar_prefetch=0,
            grid=(1,),
            in_specs=[_rep(feat), _rep(b3), _rep(fw1), _rep(fb1),
                      _rep(fw2), _rep(fb2), _rep(fw3p), _rep(fb3p)],
            out_specs=pl.BlockSpec((B, _OUT_PAD), lambda i: (0, 0)),
        ),
        compiler_params=pltpu.CompilerParams(
            dimension_semantics=("arbitrary",)),
    )(feat, b3, fw1, fb1, fw2, fb2, fw3p, fb3p)

    return out_p[:, :9].reshape(B, 3, 3)


# -----------------------------------------------------------------------------
# Deterministic parameter construction (eval-mode BN folded, bf16 weights).
# All weights are stored pre-transposed as (Cin, Cout) bf16 so both kernels
# contract the input-channel axis directly; biases are (1, Cout) f32 rows.
# -----------------------------------------------------------------------------
def make_params(channel, key):
    eps = 1e-5
    kit = iter(jax.random.split(key, 64))

    def _normal(shape, scale=0.1):
        return jax.random.normal(next(kit), shape, jnp.float32) * scale

    def _bn(cout):
        gamma = jax.random.uniform(next(kit), (cout,), jnp.float32, 0.5, 1.5)
        beta = _normal((cout,))
        mean = _normal((cout,))
        var = jax.random.uniform(next(kit), (cout,), jnp.float32, 0.5, 1.5)
        return gamma, beta, mean, var

    def _fold(w, b, gamma, beta, mean, var):
        # eval-mode BN folded into preceding linear (w is (Cout, Cin) here)
        s = gamma / jnp.sqrt(var + eps)
        return w * s[:, None], s * b + beta - s * mean

    def layer(cin, cout, with_bn=True):
        # Conv1d(k=1) == per-point linear == Linear; weight built (Cout, Cin)
        w, b = _normal((cout, cin)), _normal((cout,))
        if with_bn:
            w, b = _fold(w, b, *_bn(cout))
        return (jnp.transpose(w).astype(jnp.bfloat16),
                b.reshape(1, -1).astype(jnp.float32))

    w1, b1 = layer(channel, 64)
    w2, b2 = layer(64, 128)
    w3, b3 = layer(128, 1024)
    fw1, fb1 = layer(1024, 512)
    fw2, fb2 = layer(512, 256)
    fw3, fb3 = layer(256, 9, with_bn=False)          # fc3: no BN
    return (w1, b1, w2, b2, w3, b3, fw1, fb1, fw2, fb2, fw3, fb3)


# -----------------------------------------------------------------------------
# Pure-JAX reference (same bf16-matmul / f32-accumulate math)
# -----------------------------------------------------------------------------
def stn3d_reference(x_bcn, params):
    (w1, b1, w2, b2, w3, b3, fw1, fb1, fw2, fb2, fw3, fb3) = params
    xt = jnp.transpose(x_bcn, (0, 2, 1))                           # (B, N, C)

    def lin(h, w, b):  # weights are (Cin, Cout)
        return jnp.matmul(h.astype(jnp.bfloat16), w,
                          preferred_element_type=jnp.float32) + b

    h = jax.nn.relu(lin(xt, w1, b1))
    h = jax.nn.relu(lin(h, w2, b2))
    h = jax.nn.relu(lin(h, w3, b3))
    f = jnp.max(h, axis=1)                                         # (B, 1024)
    h = jax.nn.relu(lin(f, fw1, fb1))
    h = jax.nn.relu(lin(h, fw2, fb2))
    y = lin(h, fw3, fb3)
    y = y + jnp.eye(3, dtype=y.dtype).reshape(1, 9)
    return y.reshape(-1, 3, 3)


if __name__ == "__main__":
    key = jax.random.PRNGKey(0)
    k1, k2, k3, k4, k5, k6 = jax.random.split(key, 6)

    # ---- case 1: B=2, C=4, N=16 (edge-padded to one 128-point chunk) --------
    B, C, N = 2, 4, 16
    x = jax.random.normal(k1, (B, C, N), jnp.float32)    # PyTorch (B, C, N)
    params = make_params(C, k2)
    out = jax.block_until_ready(stn3d_forward(x, params))
    ref = stn3d_reference(x, params)
    assert out.shape == (B, 3, 3)
    assert jnp.allclose(out, ref, atol=2e-2, rtol=2e-2), "mismatch (small case)"

    # ---- case 2: N=300 -> edge-padded to 384, chunk_n=128, 3 chunks ----------
    B2, C2, N2 = 2, 3, 300
    x2 = jax.random.normal(k3, (B2, C2, N2), jnp.float32)
    params2 = make_params(C2, k4)
    out2 = jax.block_until_ready(stn3d_forward(x2, params2))
    ref2 = stn3d_reference(x2, params2)
    assert out2.shape == (B2, 3, 3)
    assert jnp.allclose(out2, ref2, atol=2e-2, rtol=2e-2), "mismatch (case 2)"

    # ---- case 3: N=512 -> chunk_n=256, 2 chunks, odd batch -------------------
    B3, C3, N3 = 3, 3, 512
    x3 = jax.random.normal(k5, (B3, C3, N3), jnp.float32)
    params3 = make_params(C3, k6)
    out3 = jax.block_until_ready(stn3d_forward(x3, params3))
    ref3 = stn3d_reference(x3, params3)
    assert out3.shape == (B3, 3, 3)
    assert jnp.allclose(out3, ref3, atol=2e-2, rtol=2e-2), "mismatch (case 3)"

    print("KERNEL_OK")
</pallas_src>

<mosaic_0001>
module attributes {stable_mosaic.version = 11 : i64} {
  func.func @point_mlp_max_kernel(%arg0: i32, %arg1: memref<1x4x128xbf16, #tpu.memory_space<vmem>>, %arg2: memref<4x64xbf16, #tpu.memory_space<vmem>>, %arg3: memref<1x64xf32, #tpu.memory_space<vmem>>, %arg4: memref<64x128xbf16, #tpu.memory_space<vmem>>, %arg5: memref<1x128xf32, #tpu.memory_space<vmem>>, %arg6: memref<128x1024xbf16, #tpu.memory_space<vmem>>, %arg7: memref<1x1x1024xf32, #tpu.memory_space<vmem>>) attributes {dimension_semantics = [#tpu.dimension_semantics<parallel>], iteration_bounds = array<i64: 2>, scalar_prefetch = 0 : i64, scratch_operands = 0 : i64, tpu.core_type = #tpu.core_type<tc>, window_params = [{transform_indices = @transform_0, window_bounds = array<i64: 1, 4, 128>}, {pipeline_mode = #tpu.pipeline_mode<synchronous>, transform_indices = @transform_1, window_bounds = array<i64: 4, 64>}, {pipeline_mode = #tpu.pipeline_mode<synchronous>, transform_indices = @transform_2, window_bounds = array<i64: 1, 64>}, {pipeline_mode = #tpu.pipeline_mode<synchronous>, transform_indices = @transform_3, window_bounds = array<i64: 64, 128>}, {pipeline_mode = #tpu.pipeline_mode<synchronous>, transform_indices = @transform_4, window_bounds = array<i64: 1, 128>}, {pipeline_mode = #tpu.pipeline_mode<synchronous>, transform_indices = @transform_5, window_bounds = array<i64: 128, 1024>}, {transform_indices = @transform_6, window_bounds = array<i64: 1, 1, 1024>}]} {
    %cst = arith.constant 0xFF800000 : f32
    %0 = vector.broadcast %cst : f32 to vector<1x1024xf32>
    %c0_i32 = arith.constant 0 : i32
    %c128_i32 = arith.constant 128 : i32
    %1 = arith.muli %c0_i32, %c128_i32 : i32
    %2 = tpu.assume_multiple %1, 128 : i32
    %c0 = arith.constant 0 : index
    %c0_0 = arith.constant 0 : index
    %3 = arith.index_cast %2 : i32 to index
    %4 = vector.load %arg1[%c0, %c0_0, %3] : memref<1x4x128xbf16, #tpu.memory_space<vmem>>, vector<1x4x128xbf16>
    %5 = vector.shape_cast %4 : vector<1x4x128xbf16> to vector<4x128xbf16>
    %c0_1 = arith.constant 0 : index
    %c0_2 = arith.constant 0 : index
    %6 = vector.load %arg2[%c0_1, %c0_2] : memref<4x64xbf16, #tpu.memory_space<vmem>>, vector<4x64xbf16>
    %cst_3 = arith.constant dense<0.000000e+00> : vector<128x64xf32>
    %7 = tpu.matmul %5, %6, %cst_3 {dimension_numbers = #tpu.dot_dimension_numbers<[0], [0], [1], [1], [0, 1, 1, 1], [], []>} : vector<4x128xbf16>, vector<4x64xbf16>, vector<128x64xf32> -> vector<128x64xf32>
    %c0_4 = arith.constant 0 : index
    %c0_5 = arith.constant 0 : index
    %8 = vector.load %arg3[%c0_4, %c0_5] : memref<1x64xf32, #tpu.memory_space<vmem>>, vector<1x64xf32>
    %9 = vector.broadcast %8 : vector<1x64xf32> to vector<128x64xf32>
    %10 = arith.addf %7, %9 : vector<128x64xf32>
    %cst_6 = arith.constant 0.000000e+00 : f32
    %11 = vector.broadcast %cst_6 : f32 to vector<128x64xf32>
    %12 = arith.maximumf %10, %11 : vector<128x64xf32>
    %13 = arith.truncf %12 : vector<128x64xf32> to vector<128x64xbf16>
    %c0_7 = arith.constant 0 : index
    %c0_8 = arith.constant 0 : index
    %14 = vector.load %arg4[%c0_7, %c0_8] : memref<64x128xbf16, #tpu.memory_space<vmem>>, vector<64x128xbf16>
    %cst_9 = arith.constant dense<0.000000e+00> : vector<128x128xf32>
    %15 = tpu.matmul %13, %14, %cst_9 {dimension_numbers = #tpu.dot_dimension_numbers<[1], [0], [0], [1], [0, 0, 1, 1], [], []>} : vector<128x64xbf16>, vector<64x128xbf16>, vector<128x128xf32> -> vector<128x128xf32>
    %c0_10 = arith.constant 0 : index
    %c0_11 = arith.constant 0 : index
    %16 = vector.load %arg5[%c0_10, %c0_11] : memref<1x128xf32, #tpu.memory_space<vmem>>, vector<1x128xf32>
    %17 = vector.broadcast %16 : vector<1x128xf32> to vector<128x128xf32>
    %18 = arith.addf %15, %17 : vector<128x128xf32>
    %cst_12 = arith.constant 0.000000e+00 : f32
    %19 = vector.broadcast %cst_12 : f32 to vector<128x128xf32>
    %20 = arith.maximumf %18, %19 : vector<128x128xf32>
    %21 = arith.truncf %20 : vector<128x128xf32> to vector<128x128xbf16>
    %c0_13 = arith.constant 0 : index
    %c0_14 = arith.constant 0 : index
    %22 = vector.load %arg6[%c0_13, %c0_14] : memref<128x1024xbf16, #tpu.memory_space<vmem>>, vector<128x1024xbf16>
    %cst_15 = arith.constant dense<0.000000e+00> : vector<128x1024xf32>
    %23 = tpu.matmul %21, %22, %cst_15 {dimension_numbers = #tpu.dot_dimension_numbers<[1], [0], [0], [1], [0, 0, 1, 1], [], []>} : vector<128x128xbf16>, vector<128x1024xbf16>, vector<128x1024xf32> -> vector<128x1024xf32>
    %cst_16 = arith.constant dense<0xFF800000> : vector<1024xf32>
    %24 = vector.multi_reduction <maximumf>, %23, %cst_16 [0] : vector<128x1024xf32> to vector<1024xf32>
    %25 = vector.shape_cast %24 : vector<1024xf32> to vector<1x1024xf32>
    %26 = arith.maximumf %0, %25 : vector<1x1024xf32>
    %c1_i32 = arith.constant 1 : i32
    %c0_17 = arith.constant 0 : index
    %c0_18 = arith.constant 0 : index
    %c0_19 = arith.constant 0 : index
    %27 = vector.load %arg7[%c0_17, %c0_18, %c0_19] : memref<1x1x1024xf32, #tpu.memory_space<vmem>>, vector<1x1x1024xf32>
    %28 = vector.shape_cast %27 : vector<1x1x1024xf32> to vector<1x1024xf32>
    %29 = vector.shape_cast %26 : vector<1x1024xf32> to vector<1x1x1024xf32>
    tpu.vector_store %arg7[%c0_17, %c0_18, %c0_19], %29 {strides = array<i32>} : memref<1x1x1024xf32, #tpu.memory_space<vmem>>, vector<1x1x1024xf32>,
    return
  }
  func.func @transform_0(%arg0: i32) -> (i32, i32, i32) {
    %c0_i32 = arith.constant 0 : i32
    %c0_i32_0 = arith.constant 0 : i32
    %c0_i32_1 = arith.constant 0 : i32
    return %arg0, %c0_i32, %c0_i32_0 : i32, i32, i32
  }
  func.func @transform_1(%arg0: i32) -> (i32, i32) {
    %c0_i32 = arith.constant 0 : i32
    %c0_i32_0 = arith.constant 0 : i32
    %c0_i32_1 = arith.constant 0 : i32
    return %c0_i32, %c0_i32_0 : i32, i32
  }
  func.func @transform_2(%arg0: i32) -> (i32, i32) {
    %c0_i32 = arith.constant 0 : i32
    %c0_i32_0 = arith.constant 0 : i32
    %c0_i32_1 = arith.constant 0 : i32
    return %c0_i32, %c0_i32_0 : i32, i32
  }
  func.func @transform_3(%arg0: i32) -> (i32, i32) {
    %c0_i32 = arith.constant 0 : i32
    %c0_i32_0 = arith.constant 0 : i32
    %c0_i32_1 = arith.constant 0 : i32
    return %c0_i32, %c0_i32_0 : i32, i32
  }
  func.func @transform_4(%arg0: i32) -> (i32, i32) {
    %c0_i32 = arith.constant 0 : i32
    %c0_i32_0 = arith.constant 0 : i32
    %c0_i32_1 = arith.constant 0 : i32
    return %c0_i32, %c0_i32_0 : i32, i32
  }
  func.func @transform_5(%arg0: i32) -> (i32, i32) {
    %c0_i32 = arith.constant 0 : i32
    %c0_i32_0 = arith.constant 0 : i32
    %c0_i32_1 = arith.constant 0 : i32
    return %c0_i32, %c0_i32_0 : i32, i32
  }
  func.func @transform_6(%arg0: i32) -> (i32, i32, i32) {
    %c0_i32 = arith.constant 0 : i32
    %c0_i32_0 = arith.constant 0 : i32
    %c0_i32_1 = arith.constant 0 : i32
    return %arg0, %c0_i32, %c0_i32_0 : i32, i32, i32
  }
}

module attributes {stable_mosaic.version = 11 : i64} {
  func.func @fc_head_kernel(%arg0: i32, %arg1: memref<2x1024xf32, #tpu.memory_space<vmem>>, %arg2: memref<1x1024xf32, #tpu.memory_space<vmem>>, %arg3: memref<1024x512xbf16, #tpu.memory_space<vmem>>, %arg4: memref<1x512xf32, #tpu.memory_space<vmem>>, %arg5: memref<512x256xbf16, #tpu.memory_space<vmem>>, %arg6: memref<1x256xf32, #tpu.memory_space<vmem>>, %arg7: memref<256x128xbf16, #tpu.memory_space<vmem>>, %arg8: memref<1x128xf32, #tpu.memory_space<vmem>>, %arg9: memref<2x128xf32, #tpu.memory_space<vmem>>) attributes {dimension_semantics = [#tpu.dimension_semantics<arbitrary>], iteration_bounds = array<i64: 1>, scalar_prefetch = 0 : i64, scratch_operands = 0 : i64, tpu.core_type = #tpu.core_type<tc>, window_params = [{pipeline_mode = #tpu.pipeline_mode<synchronous>, transform_indices = @transform_0, window_bounds = array<i64: 2, 1024>}, {pipeline_mode = #tpu.pipeline_mode<synchronous>, transform_indices = @transform_1, window_bounds = array<i64: 1, 1024>}, {pipeline_mode = #tpu.pipeline_mode<synchronous>, transform_indices = @transform_2, window_bounds = array<i64: 1024, 512>}, {pipeline_mode = #tpu.pipeline_mode<synchronous>, transform_indices = @transform_3, window_bounds = array<i64: 1, 512>}, {pipeline_mode = #tpu.pipeline_mode<synchronous>, transform_indices = @transform_4, window_bounds = array<i64: 512, 256>}, {pipeline_mode = #tpu.pipeline_mode<synchronous>, transform_indices = @transform_5, window_bounds = array<i64: 1, 256>}, {pipeline_mode = #tpu.pipeline_mode<synchronous>, transform_indices = @transform_6, window_bounds = array<i64: 256, 128>}, {pipeline_mode = #tpu.pipeline_mode<synchronous>, transform_indices = @transform_7, window_bounds = array<i64: 1, 128>}, {pipeline_mode = #tpu.pipeline_mode<synchronous>, transform_indices = @transform_8, window_bounds = array<i64: 2, 128>}]} {
    %c0 = arith.constant 0 : index
    %c0_0 = arith.constant 0 : index
    %0 = vector.load %arg1[%c0, %c0_0] : memref<2x1024xf32, #tpu.memory_space<vmem>>, vector<2x1024xf32>
    %c0_1 = arith.constant 0 : index
    %c0_2 = arith.constant 0 : index
    %1 = vector.load %arg2[%c0_1, %c0_2] : memref<1x1024xf32, #tpu.memory_space<vmem>>, vector<1x1024xf32>
    %2 = vector.broadcast %1 : vector<1x1024xf32> to vector<2x1024xf32>
    %3 = arith.addf %0, %2 : vector<2x1024xf32>
    %cst = arith.constant 0.000000e+00 : f32
    %4 = vector.broadcast %cst : f32 to vector<2x1024xf32>
    %5 = arith.maximumf %3, %4 : vector<2x1024xf32>
    %6 = arith.truncf %5 : vector<2x1024xf32> to vector<2x1024xbf16>
    %c0_3 = arith.constant 0 : index
    %c0_4 = arith.constant 0 : index
    %7 = vector.load %arg3[%c0_3, %c0_4] : memref<1024x512xbf16, #tpu.memory_space<vmem>>, vector<1024x512xbf16>
    %cst_5 = arith.constant dense<0.000000e+00> : vector<2x512xf32>
    %8 = tpu.matmul %6, %7, %cst_5 {dimension_numbers = #tpu.dot_dimension_numbers<[1], [0], [0], [1], [0, 0, 1, 1], [], []>} : vector<2x1024xbf16>, vector<1024x512xbf16>, vector<2x512xf32> -> vector<2x512xf32>
    %c0_6 = arith.constant 0 : index
    %c0_7 = arith.constant 0 : index
    %9 = vector.load %arg4[%c0_6, %c0_7] : memref<1x512xf32, #tpu.memory_space<vmem>>, vector<1x512xf32>
    %10 = vector.broadcast %9 : vector<1x512xf32> to vector<2x512xf32>
    %11 = arith.addf %8, %10 : vector<2x512xf32>
    %cst_8 = arith.constant 0.000000e+00 : f32
    %12 = vector.broadcast %cst_8 : f32 to vector<2x512xf32>
    %13 = arith.maximumf %11, %12 : vector<2x512xf32>
    %14 = arith.truncf %13 : vector<2x512xf32> to vector<2x512xbf16>
    %c0_9 = arith.constant 0 : index
    %c0_10 = arith.constant 0 : index
    %15 = vector.load %arg5[%c0_9, %c0_10] : memref<512x256xbf16, #tpu.memory_space<vmem>>, vector<512x256xbf16>
    %cst_11 = arith.constant dense<0.000000e+00> : vector<2x256xf32>
    %16 = tpu.matmul %14, %15, %cst_11 {dimension_numbers = #tpu.dot_dimension_numbers<[1], [0], [0], [1], [0, 0, 1, 1], [], []>} : vector<2x512xbf16>, vector<512x256xbf16>, vector<2x256xf32> -> vector<2x256xf32>
    %c0_12 = arith.constant 0 : index
    %c0_13 = arith.constant 0 : index
    %17 = vector.load %arg6[%c0_12, %c0_13] : memref<1x256xf32, #tpu.memory_space<vmem>>, vector<1x256xf32>
    %18 = vector.broadcast %17 : vector<1x256xf32> to vector<2x256xf32>
    %19 = arith.addf %16, %18 : vector<2x256xf32>
    %cst_14 = arith.constant 0.000000e+00 : f32
    %20 = vector.broadcast %cst_14 : f32 to vector<2x256xf32>
    %21 = arith.maximumf %19, %20 : vector<2x256xf32>
    %22 = arith.truncf %21 : vector<2x256xf32> to vector<2x256xbf16>
    %c0_15 = arith.constant 0 : index
    %c0_16 = arith.constant 0 : index
    %23 = vector.load %arg7[%c0_15, %c0_16] : memref<256x128xbf16, #tpu.memory_space<vmem>>, vector<256x128xbf16>
    %cst_17 = arith.constant dense<0.000000e+00> : vector<2x128xf32>
    %24 = tpu.matmul %22, %23, %cst_17 {dimension_numbers = #tpu.dot_dimension_numbers<[1], [0], [0], [1], [0, 0, 1, 1], [], []>} : vector<2x256xbf16>, vector<256x128xbf16>, vector<2x128xf32> -> vector<2x128xf32>
    %c0_18 = arith.constant 0 : index
    %c0_19 = arith.constant 0 : index
    %25 = vector.load %arg8[%c0_18, %c0_19] : memref<1x128xf32, #tpu.memory_space<vmem>>, vector<1x128xf32>
    %26 = vector.broadcast %25 : vector<1x128xf32> to vector<2x128xf32>
    %27 = arith.addf %24, %26 : vector<2x128xf32>
    %28 = tpu.iota {dimensions = array<i32: 1>} : vector<2x128xi32>
    %c4_i32 = arith.constant 4 : i32
    %c0_i32 = arith.constant 0 : i32
    %29 = arith.cmpi eq, %c4_i32, %c0_i32 : i32
    %c1_i32 = arith.constant 1 : i32
    %30 = arith.select %29, %c1_i32, %c4_i32 : i32
    %31 = vector.broadcast %30 : i32 to vector<2x128xi32>
    %32 = arith.remsi %28, %31 : vector<2x128xi32>
    %c0_i32_20 = arith.constant 0 : i32
    %33 = vector.broadcast %c0_i32_20 : i32 to vector<2x128xi32>
    %34 = arith.cmpi ne, %32, %33 : vector<2x128xi32>
    %c0_i32_21 = arith.constant 0 : i32
    %35 = vector.broadcast %c0_i32_21 : i32 to vector<2x128xi32>
    %36 = arith.cmpi slt, %32, %35 : vector<2x128xi32>
    %c0_i32_22 = arith.constant 0 : i32
    %37 = arith.cmpi slt, %30, %c0_i32_22 : i32
    %38 = vector.broadcast %37 : i1 to vector<2x128xi1>
    %39 = vector.broadcast %38 : vector<2x128xi1> to vector<2x128xi1>
    %40 = arith.xori %36, %39 : vector<2x128xi1>
    %41 = arith.andi %40, %34 : vector<2x128xi1>
    %42 = vector.broadcast %30 : i32 to vector<2x128xi32>
    %43 = arith.addi %32, %42 : vector<2x128xi32>
    %44 = arith.select %41, %43, %32 : vector<2x128xi1>, vector<2x128xi32>
    %c0_i32_23 = arith.constant 0 : i32
    %45 = vector.broadcast %c0_i32_23 : i32 to vector<2x128xi32>
    %46 = arith.cmpi eq, %44, %45 : vector<2x128xi32>
    %c9_i32 = arith.constant 9 : i32
    %47 = vector.broadcast %c9_i32 : i32 to vector<2x128xi32>
    %48 = arith.cmpi slt, %28, %47 : vector<2x128xi32>
    %49 = arith.andi %46, %48 : vector<2x128xi1>
    %cst_24 = arith.constant 1.000000e+00 : f32
    %cst_25 = arith.constant 0.000000e+00 : f32
    %50 = vector.broadcast %cst_24 : f32 to vector<2x128xf32>
    %51 = vector.broadcast %cst_25 : f32 to vector<2x128xf32>
    %52 = arith.select %49, %50, %51 : vector<2x128xi1>, vector<2x128xf32>
    %53 = arith.addf %27, %52 : vector<2x128xf32>
    %c0_26 = arith.constant 0 : index
    %c0_27 = arith.constant 0 : index
    %54 = vector.load %arg9[%c0_26, %c0_27] : memref<2x128xf32, #tpu.memory_space<vmem>>, vector<2x128xf32>
    tpu.vector_store %arg9[%c0_26, %c0_27], %53 {strides = array<i32>} : memref<2x128xf32, #tpu.memory_space<vmem>>, vector<2x128xf32>,
    return
  }
  func.func @transform_0(%arg0: i32) -> (i32, i32) {
    %c0_i32 = arith.constant 0 : i32
    %c0_i32_0 = arith.constant 0 : i32
    %c0_i32_1 = arith.constant 0 : i32
    return %c0_i32, %c0_i32_0 : i32, i32
  }
  func.func @transform_1(%arg0: i32) -> (i32, i32) {
    %c0_i32 = arith.constant 0 : i32
    %c0_i32_0 = arith.constant 0 : i32
    %c0_i32_1 = arith.constant 0 : i32
    return %c0_i32, %c0_i32_0 : i32, i32
  }
  func.func @transform_2(%arg0: i32) -> (i32, i32) {
    %c0_i32 = arith.constant 0 : i32
    %c0_i32_0 = arith.constant 0 : i32
    %c0_i32_1 = arith.constant 0 : i32
    return %c0_i32, %c0_i32_0 : i32, i32
  }
  func.func @transform_3(%arg0: i32) -> (i32, i32) {
    %c0_i32 = arith.constant 0 : i32
    %c0_i32_0 = arith.constant 0 : i32
    %c0_i32_1 = arith.constant 0 : i32
    return %c0_i32, %c0_i32_0 : i32, i32
  }
  func.func @transform_4(%arg0: i32) -> (i32, i32) {
    %c0_i32 = arith.constant 0 : i32
    %c0_i32_0 = arith.constant 0 : i32
    %c0_i32_1 = arith.constant 0 : i32
    return %c0_i32, %c0_i32_0 : i32, i32
  }
  func.func @transform_5(%arg0: i32) -> (i32, i32) {
    %c0_i32 = arith.constant 0 : i32
    %c0_i32_0 = arith.constant 0 : i32
    %c0_i32_1 = arith.constant 0 : i32
    return %c0_i32, %c0_i32_0 : i32, i32
  }
  func.func @transform_6(%arg0: i32) -> (i32, i32) {
    %c0_i32 = arith.constant 0 : i32
    %c0_i32_0 = arith.constant 0 : i32
    %c0_i32_1 = arith.constant 0 : i32
    return %c0_i32, %c0_i32_0 : i32, i32
  }
  func.func @transform_7(%arg0: i32) -> (i32, i32) {
    %c0_i32 = arith.constant 0 : i32
    %c0_i32_0 = arith.constant 0 : i32
    %c0_i32_1 = arith.constant 0 : i32
    return %c0_i32, %c0_i32_0 : i32, i32
  }
  func.func @transform_8(%arg0: i32) -> (i32, i32) {
    %c0_i32 = arith.constant 0 : i32
    %c0_i32_0 = arith.constant 0 : i32
    %c0_i32_1 = arith.constant 0 : i32
    return %c0_i32, %c0_i32_0 : i32, i32
  }
}

</mosaic_0001>

<llo_original>
// kernel: stn3d_forward.2
$region0: #{stn3d_forward.2}
  #allocation0 [shape = 'u32[]', space=smem, size = 0x4, offset = 0x4, fixed_abs, tag = 'smem constant byte address 0x4 - core index']
  #allocation1 [shape = 'u32[144,128]{1,0:T(1,128)}', space=vmem, size = 0x12000, scoped, tag = 'internal scratch']
  %s0 = inlined_call_operand.vmem [shape: bf16[2,4,128], index: 0, kind: input, shape index: {}]
  %s1 = inlined_call_operand.vmem [shape: bf16[4,64], index: 1, kind: input, shape index: {}]
  %s2 = inlined_call_operand.vmem [shape: f32[1,64], index: 2, kind: input, shape index: {}]
  %s3 = inlined_call_operand.vmem [shape: bf16[64,128], index: 3, kind: input, shape index: {}]
  %s4 = inlined_call_operand.vmem [shape: f32[1,128], index: 4, kind: input, shape index: {}]
  %s5 = inlined_call_operand.hbm [shape: bf16[128,1024], index: 5, kind: input, shape index: {}]
  %s6 = inlined_call_operand.vmem [shape: f32[2,1,1024], index: 6, kind: output, shape index: {}]
  %s7 = sld [smem:[#allocation0]]
  $region61: #{stn3d_forward.2} parent=0
    _
  %s9 = ssub.s32 1, %s7
  %s10 = scalar_select 0, %s9, %s7
  $region1: #{stn3d_forward.2} parent=0
    #allocation2 [shape = 'u8[262144]{0}', space=vmem, size = 0x40000, scoped, tag = 'input window, operand 5, single buffered']
    #allocation3 [shape = 's32[2]{0}', space=sflag, size = 0x8, scoped, tag = 'scoped memory for stn3d_forward.2']
    %11 = vsyncpa [#allocation3], 0
    loop: start=0, step=1, limit=4
    $region2: #{stn3d_forward.2} parent=1 // loop_pre_header
      _
    $region3: #{stn3d_forward.2} parent=1 // loop_header
      %s13 = sphi 0, %s17
      %p14 = scmp.ge.s32.totalorder %s13, 4
      %s23 = sphi 0, %s25
      %s26 = sphi 0, %s23
      %s27 = sphi 0, %s26
      %s43 = sphi 0, %s27
      %s47 = sphi 0, %s47
      %s49 = sphi 0, %s47
      %s50 = sphi 0, %s49
      %s64 = sphi 0, %s50
      %s68 = sphi 0, %s68
      %s70 = sphi 0, %s68
      %s71 = sphi 0, %s70
      %s85 = sphi 0, %s71
      %s89 = sphi 0, %s89
      %s91 = sphi 0, %s89
      %s92 = sphi 0, %s91
      %s106 = sphi 0, %s92
      %s110 = sphi 0, %s110
      %s112 = sphi 0, %s110
      %s113 = sphi 0, %s112
      %s127 = sphi 0, %s113
      %s131 = sphi 0, %s131
      %s133 = sphi 0, %s131
      %s134 = sphi 0, %s133
      %s148 = sphi 0, %s134
      %s154 = sphi 0, %s156
      %s157 = sphi 0, %s154
      %s158 = sphi 0, %s157
      %s174 = sphi 0, %s158
    $region4: #{stn3d_forward.2} parent=1 // loop_header_branch
      %16 = sbr.rel (%p14) target = $region8
    $region5: #{stn3d_forward.2} parent=1 // loop_body
      %s18 = ssub.s32 %s13, 1
      %s19 = ssub.s32 %s13, 2
      %s20 = sadd.s32 %s13, 1
      %s21 = ssub.s32 %s13, %s20
      %p22 = scmp.eq.s32.totalorder %s21, 0
      %s24 = sadd.s32 %s23, 1
      %s25 = scalar_select %p22, %s23, %s24
      %p28 = pneg %p22
      %p29 = scmp.eq.s32.totalorder %s13, 1
      %p30 = por %p28, %p29
      %p31 = scmp.ne.s32.totalorder %s23, %s26
      %p32 = scmp.eq.s32.totalorder %s13, 0
      %p33 = por %p31, %p32
      %p34 = scmp.ne.s32.totalorder %s23, %s26
      %p35 = scmp.eq.s32.totalorder %s18, 1
      %p36 = por %p34, %p35
      %p37 = scmp.ne.s32.totalorder %s26, %s27
      %p38 = scmp.eq.s32.totalorder %s18, 0
      %p39 = por %p37, %p38
      %p40 = scmp.ne.s32.totalorder %s26, %s27
      %p41 = scmp.eq.s32.totalorder %s19, 1
      %p42 = por %p40, %p41
      %p44 = scmp.ne.s32.totalorder %s27, %s43
      %p45 = scmp.eq.s32.totalorder %s19, 0
      %p46 = por %p44, %p45
      %s48 = sadd.s32 %s47, 1
      %p51 = scmp.eq.s32.totalorder %s13, 1
      %p52 = scmp.ne.s32.totalorder %s47, %s49
      %p53 = scmp.eq.s32.totalorder %s13, 0
      %p54 = por %p52, %p53
      %p55 = scmp.ne.s32.totalorder %s47, %s49
      %p56 = scmp.eq.s32.totalorder %s18, 1
      %p57 = por %p55, %p56
      %p58 = scmp.ne.s32.totalorder %s49, %s50
      %p59 = scmp.eq.s32.totalorder %s18, 0
      %p60 = por %p58, %p59
      %p61 = scmp.ne.s32.totalorder %s49, %s50
      %p62 = scmp.eq.s32.totalorder %s19, 1
      %p63 = por %p61, %p62
      %p65 = scmp.ne.s32.totalorder %s50, %s64
      %p66 = scmp.eq.s32.totalorder %s19, 0
      %p67 = por %p65, %p66
      %s69 = sadd.s32 %s68, 1
      %p72 = scmp.eq.s32.totalorder %s13, 1
      %p73 = scmp.ne.s32.totalorder %s68, %s70
      %p74 = scmp.eq.s32.totalorder %s13, 0
      %p75 = por %p73, %p74
      %p76 = scmp.ne.s32.totalorder %s68, %s70
      %p77 = scmp.eq.s32.totalorder %s18, 1
      %p78 = por %p76, %p77
      %p79 = scmp.ne.s32.totalorder %s70, %s71
      %p80 = scmp.eq.s32.totalorder %s18, 0
      %p81 = por %p79, %p80
      %p82 = scmp.ne.s32.totalorder %s70, %s71
      %p83 = scmp.eq.s32.totalorder %s19, 1
      %p84 = por %p82, %p83
      %p86 = scmp.ne.s32.totalorder %s71, %s85
      %p87 = scmp.eq.s32.totalorder %s19, 0
      %p88 = por %p86, %p87
      %s90 = sadd.s32 %s89, 1
      %p93 = scmp.eq.s32.totalorder %s13, 1
      %p94 = scmp.ne.s32.totalorder %s89, %s91
      %p95 = scmp.eq.s32.totalorder %s13, 0
      %p96 = por %p94, %p95
      %p97 = scmp.ne.s32.totalorder %s89, %s91
      %p98 = scmp.eq.s32.totalorder %s18, 1
      %p99 = por %p97, %p98
      %p100 = scmp.ne.s32.totalorder %s91, %s92
      %p101 = scmp.eq.s32.totalorder %s18, 0
      %p102 = por %p100, %p101
      %p103 = scmp.ne.s32.totalorder %s91, %s92
      %p104 = scmp.eq.s32.totalorder %s19, 1
      %p105 = por %p103, %p104
      %p107 = scmp.ne.s32.totalorder %s92, %s106
      %p108 = scmp.eq.s32.totalorder %s19, 0
      %p109 = por %p107, %p108
      %s111 = sadd.s32 %s110, 1
      %p114 = scmp.eq.s32.totalorder %s13, 1
      %p115 = scmp.ne.s32.totalorder %s110, %s112
      %p116 = scmp.eq.s32.totalorder %s13, 0
      %p117 = por %p115, %p116
      %p118 = scmp.ne.s32.totalorder %s110, %s112
      %p119 = scmp.eq.s32.totalorder %s18, 1
      %p120 = por %p118, %p119
      %p121 = scmp.ne.s32.totalorder %s112, %s113
      %p122 = scmp.eq.s32.totalorder %s18, 0
      %p123 = por %p121, %p122
      %p124 = scmp.ne.s32.totalorder %s112, %s113
      %p125 = scmp.eq.s32.totalorder %s19, 1
      %p126 = por %p124, %p125
      %p128 = scmp.ne.s32.totalorder %s113, %s127
      %p129 = scmp.eq.s32.totalorder %s19, 0
      %p130 = por %p128, %p129
      %s132 = sadd.s32 %s131, 1
      %p135 = scmp.eq.s32.totalorder %s13, 1
      %p136 = scmp.ne.s32.totalorder %s131, %s133
      %p137 = scmp.eq.s32.totalorder %s13, 0
      %p138 = por %p136, %p137
      %p139 = scmp.ne.s32.totalorder %s131, %s133
      %p140 = scmp.eq.s32.totalorder %s18, 1
      %p141 = por %p139, %p140
      %p142 = scmp.ne.s32.totalorder %s133, %s134
      %p143 = scmp.eq.s32.totalorder %s18, 0
      %p144 = por %p142, %p143
      %p145 = scmp.ne.s32.totalorder %s133, %s134
      %p146 = scmp.eq.s32.totalorder %s19, 1
      %p147 = por %p145, %p146
      %p149 = scmp.ne.s32.totalorder %s134, %s148
      %p150 = scmp.eq.s32.totalorder %s19, 0
      %p151 = por %p149, %p150
      %s152 = ssub.s32 %s13, %s20
      %p153 = scmp.eq.s32.totalorder %s152, 0
      %s155 = sadd.s32 %s154, 1
      %s156 = scalar_select %p153, %s154, %s155
      %p159 = pneg %p153
      %p160 = scmp.eq.s32.totalorder %s13, 1
      %p161 = por %p159, %p160
      %p162 = scmp.ne.s32.totalorder %s154, %s157
      %p163 = scmp.eq.s32.totalorder %s13, 0
      %p164 = por %p162, %p163
      %p165 = scmp.ne.s32.totalorder %s154, %s157
      %p166 = scmp.eq.s32.totalorder %s18, 1
      %p167 = por %p165, %p166
      %p168 = scmp.ne.s32.totalorder %s157, %s158
      %p169 = scmp.eq.s32.totalorder %s18, 0
      %p170 = por %p168, %p169
      %p171 = scmp.ne.s32.totalorder %s157, %s158
      %p172 = scmp.eq.s32.totalorder %s19, 1
      %p173 = por %p171, %p172
      %p175 = scmp.ne.s32.totalorder %s158, %s174
      %p176 = scmp.eq.s32.totalorder %s19, 0
      %p177 = por %p175, %p176
      %p178 = scmp.le.s32.totalorder 1, %s13
      %p179 = scmp.lt.s32.totalorder %s13, 3
      %p180 = pnand %p178, %p179
      %p181 = pneg %p180
      // Predicated region
      $region9: #{stn3d_forward.2} parent=5 // pred_check
        _
      $region10: #{stn3d_forward.2} parent=5 // pred_check_branch
        %183 = sbr.rel (%p180) target = $region12
      $region11: #{stn3d_forward.2} parent=5 // pred_region
        %s184 = ssub.s32 %s13, 1
        // Predicated region
        $region13: #{stn3d_forward.2} parent=11 // pred_check
          %p185 = pneg %p60
        $region14: #{stn3d_forward.2} parent=11 // pred_check_branch
          %187 = sbr.rel (%p185) target = $region16
        $region15: #{stn3d_forward.2} parent=11 // pred_region
          _
        $region16: #{stn3d_forward.2} parent=11 // pred_fallthru
          _
        // Predicated region
        $region17: #{stn3d_forward.2} parent=11 // pred_check
          %p188 = pneg %p81
        $region18: #{stn3d_forward.2} parent=11 // pred_check_branch
          %190 = sbr.rel (%p188) target = $region20
        $region19: #{stn3d_forward.2} parent=11 // pred_region
          _
        $region20: #{stn3d_forward.2} parent=11 // pred_fallthru
          _
        // Predicated region
        $region21: #{stn3d_forward.2} parent=11 // pred_check
          %p191 = pneg %p102
        $region22: #{stn3d_forward.2} parent=11 // pred_check_branch
          %193 = sbr.rel (%p191) target = $region24
        $region23: #{stn3d_forward.2} parent=11 // pred_region
          _
        $region24: #{stn3d_forward.2} parent=11 // pred_fallthru
          _
        // Predicated region
        $region25: #{stn3d_forward.2} parent=11 // pred_check
          %p194 = pneg %p123
        $region26: #{stn3d_forward.2} parent=11 // pred_check_branch
          %196 = sbr.rel (%p194) target = $region28
        $region27: #{stn3d_forward.2} parent=11 // pred_region
          _
        $region28: #{stn3d_forward.2} parent=11 // pred_fallthru
          _
        // Predicated region
        $region29: #{stn3d_forward.2} parent=11 // pred_check
          %p197 = pneg %p144
        $region30: #{stn3d_forward.2} parent=11 // pred_check_branch
          %199 = sbr.rel (%p197) target = $region32
        $region31: #{stn3d_forward.2} parent=11 // pred_region
          %s201 = ssub.s32 8192, 8192
          %202 = vsyncadd [#allocation3], %s201
          %s203 = sshll.u32 [#allocation2], 4
          %s204 = int_to_ptr.vmem [resolvable:$true] %s203
          %209 = dma.hbm_to_vmem [thread:$0]  %s5, 8192, %s204, [#allocation3], 512, 512, 32
        $region32: #{stn3d_forward.2} parent=11 // pred_fallthru
          _
      $region12: #{stn3d_forward.2} parent=5 // pred_fallthru
        _
      %p210 = scmp.lt.s32.totalorder %s13, 2
      // Predicated region
      $region33: #{stn3d_forward.2} parent=5 // pred_check
        %p211 = pneg %p210
      $region34: #{stn3d_forward.2} parent=5 // pred_check_branch
        %213 = sbr.rel (%p211) target = $region36
      $region35: #{stn3d_forward.2} parent=5 // pred_region
        // Predicated region
        $region37: #{stn3d_forward.2} parent=35 // pred_check
          %p214 = pneg %p33
        $region38: #{stn3d_forward.2} parent=35 // pred_check_branch
          %216 = sbr.rel (%p214) target = $region40
        $region39: #{stn3d_forward.2} parent=35 // pred_region
          %p217 = scmp.lt.s32.totalorder %s13, 1
          %s218 = scalar_select %p217, %s13, 1
          %s219 = smul.addr %s218, 2
          %s220 = scalar_lea.vmem %s0, %s219
        $region40: #{stn3d_forward.2} parent=35 // pred_fallthru
          _
      $region36: #{stn3d_forward.2} parent=5 // pred_fallthru
        _
      %p221 = scmp.le.s32.totalorder 1, %s13
      %p222 = scmp.lt.s32.totalorder %s13, 3
      %p223 = pnand %p221, %p222
      %p224 = pneg %p223
      // Predicated region
      $region41: #{stn3d_forward.2} parent=5 // pred_check
        _
      $region42: #{stn3d_forward.2} parent=5 // pred_check_branch
        %226 = sbr.rel (%p223) target = $region44
      $region43: #{stn3d_forward.2} parent=5 // pred_region
        %s227 = ssub.s32 %s13, 1
        // Predicated region
        $region45: #{stn3d_forward.2} parent=43 // pred_check
          %p228 = pneg %p144
        $region46: #{stn3d_forward.2} parent=43 // pred_check_branch
          %230 = sbr.rel (%p228) target = $region48
        $region47: #{stn3d_forward.2} parent=43 // pred_region
          %231 = dma.done [#allocation3], 8192
        $region48: #{stn3d_forward.2} parent=43 // pred_fallthru
          _
        %p232 = scmp.lt.s32.totalorder %s18, 1
        %s233 = scalar_select %p232, %s18, 1
        %s234 = smul.addr %s233, 2
        %s235 = scalar_lea.vmem %s0, %s234
        %p236 = pneg %p39
        %p237 = pneg %p36
        %p238 = pneg %p60
        %p239 = pneg %p57
        %p240 = pneg %p81
        %p241 = pneg %p78
        %p242 = pneg %p102
        %p243 = pneg %p99
        %p244 = pneg %p123
        %p245 = pneg %p120
        %p246 = pneg %p144
        %p247 = pneg %p141
        %p248 = pneg %p170
        %p249 = pneg %p167
        %p250 = scmp.lt.s32.totalorder %s18, 1
        %s251 = scalar_select %p250, %s18, 1
        %s252 = smul.addr %s251, 8
        %s253 = scalar_lea.vmem %s6, %s252
        %p254 = scmp.lt.s32.totalorder %s18, 1
        %s255 = scalar_select %p254, %s18, 1
        %s256 = smul.addr %s255, 2
        %s257 = scalar_lea.vmem %s0, %s256
        %p258 = scmp.lt.s32.totalorder %s18, 1
        %s259 = scalar_select %p258, %s18, 1
        %s260 = smul.addr %s259, 8
        %s261 = scalar_lea.vmem %s6, %s260
        %v263 = vld [vmem:[%s257] sm:$0x3]
        %v264 = vld [vmem:[%s1] sm:$0x3]
        %v265 = vld [vmem:[%s2] sm:$0x1]
        %v267 = vlaneseq
        %v268 = vshrl.u32 %v267, 7
        %v269 = vsub.s32 0, %v268
        %v270 = vrot.slane %v265, %v269
        %272 = vxpose.xlu0.c.b16.start [1/8] %v263, 128
        %273 = vxpose.xlu0.c.b16.cont [2/8] 0, 128
        %274 = vxpose.xlu0.c.b16.cont [3/8] 0, 128
        %275 = vxpose.xlu0.c.b16.cont [4/8] 0, 128
        %276 = vxpose.xlu0.c.b16.cont [5/8] 0, 128
        %277 = vxpose.xlu0.c.b16.cont [6/8] 0, 128
        %278 = vxpose.xlu0.c.b16.cont [7/8] 0, 128
        %279 = vxpose.xlu0.c.b16.end [8/8] 0, 128
        %v280 = vpop.trf.xlu0
        %v281 = vpop.trf.xlu0
        %v282 = vpop.trf.xlu0
        %v283 = vpop.trf.xlu0
        %v284 = vpop.trf.xlu0
        %v285 = vpop.trf.xlu0
        %v286 = vpop.trf.xlu0
        %v287 = vpop.trf.xlu0
        %vm288 = vcmask 31744
        %v290 = vsel %vm288, %v280, 0
        %v293 = vsel %vm288, %v281, 0
        %v296 = vsel %vm288, %v282, 0
        %v299 = vsel %vm288, %v283, 0
        %v302 = vsel %vm288, %v284, 0
        %v305 = vsel %vm288, %v285, 0
        %v308 = vsel %vm288, %v286, 0
        %v311 = vsel %vm288, %v287, 0
        %vm313 = vcmask 1041408
        %v315 = vsel %vm313, %v264, 0
        %317 = vmatprep.subr.bf16.mxu0 0
        %318 = vmatpush1.bf16.msra.mxu0 %v315
        %319 = vmatprep.subr.bf16.mxu0 0
        %320 = vmatpush1.bf16.msra.mxu0 0
        %321 = vmatprep.subr.bf16.mxu0 0
        %322 = vmatpush1.bf16.msra.mxu0 0
        %323 = vmatprep.subr.bf16.mxu0 0
        %324 = vmatpush1.bf16.msra.mxu0 0
        %325 = vmatprep.subr.bf16.mxu0 0
        %326 = vmatpush1.bf16.msra.mxu0 0
        %327 = vmatprep.subr.bf16.mxu0 0
        %328 = vmatpush1.bf16.msra.mxu0 0
        %329 = vmatprep.subr.bf16.mxu0 0
        %330 = vmatpush1.bf16.msra.mxu0 0
        %331 = vmatprep.subr.bf16.mxu0 0
        %332 = vmatpush1.bf16.msra.mxu0 0
        %333 = vmatprep.subr.bf16.mxu0 0
        %334 = vmatpush1.bf16.msra.mxu0 0
        %335 = vmatprep.subr.bf16.mxu0 0
        %336 = vmatpush1.bf16.msra.mxu0 0
        %337 = vmatprep.subr.bf16.mxu0 0
        %338 = vmatpush1.bf16.msra.mxu0 0
        %339 = vmatprep.subr.bf16.mxu0 0
        %340 = vmatpush1.bf16.msra.mxu0 0
        %341 = vmatprep.subr.bf16.mxu0 0
        %342 = vmatpush1.bf16.msra.mxu0 0
        %343 = vmatprep.subr.bf16.mxu0 0
        %344 = vmatpush1.bf16.msra.mxu0 0
        %345 = vmatprep.subr.bf16.mxu0 0
        %346 = vmatpush1.bf16.msra.mxu0 0
        %347 = vmatprep.subr.bf16.mxu0 0
        %348 = vmatpush1.bf16.msra.mxu0 0
        %349 = vmatprep.mubr.bf16.mxu0 0
        %350 = vmatmul.mubr.bf16.gmra.mrb[0].mxu0 %v290
        %v351 = vpop.f32.mrb[0].mxu0
        %v352 = vadd.f32 %v270, %v351
        %v353 = vpop.f32.mrb[0].mxu0
        %v354 = vpop.f32.mrb[0].mxu0
        %v355 = vadd.f32 %v270, %v354
        %v356 = vpop.f32.mrb[0].mxu0
        %357 = vmatprep.mubr.bf16.mxu0 0
        %358 = vmatmul.mubr.bf16.gmra.mrb[0].mxu0 %v293
        %v359 = vpop.f32.mrb[0].mxu0
        %v360 = vadd.f32 %v270, %v359
        %v361 = vpop.f32.mrb[0].mxu0
        %v362 = vpop.f32.mrb[0].mxu0
        %v363 = vadd.f32 %v270, %v362
        %v364 = vpop.f32.mrb[0].mxu0
        %365 = vmatprep.mubr.bf16.mxu0 0
        %366 = vmatmul.mubr.bf16.gmra.mrb[0].mxu0 %v296
        %v367 = vpop.f32.mrb[0].mxu0
        %v368 = vadd.f32 %v270, %v367
        %v369 = vpop.f32.mrb[0].mxu0
        %v370 = vpop.f32.mrb[0].mxu0
        %v371 = vadd.f32 %v270, %v370
        %v372 = vpop.f32.mrb[0].mxu0
        %373 = vmatprep.mubr.bf16.mxu0 0
        %374 = vmatmul.mubr.bf16.gmra.mrb[0].mxu0 %v299
        %v375 = vpop.f32.mrb[0].mxu0
        %v376 = vadd.f32 %v270, %v375
        %v377 = vpop.f32.mrb[0].mxu0
        %v378 = vpop.f32.mrb[0].mxu0
        %v379 = vadd.f32 %v270, %v378
        %v380 = vpop.f32.mrb[0].mxu0
        %381 = vmatprep.mubr.bf16.mxu0 0
        %382 = vmatmul.mubr.bf16.gmra.mrb[0].mxu0 %v302
        %v383 = vpop.f32.mrb[0].mxu0
        %v384 = vadd.f32 %v270, %v383
        %v385 = vpop.f32.mrb[0].mxu0
        %v386 = vpop.f32.mrb[0].mxu0
        %v387 = vadd.f32 %v270, %v386
        %v388 = vpop.f32.mrb[0].mxu0
        %389 = vmatprep.mubr.bf16.mxu0 0
        %390 = vmatmul.mubr.bf16.gmra.mrb[0].mxu0 %v305
        %v391 = vpop.f32.mrb[0].mxu0
        %v392 = vadd.f32 %v270, %v391
        %v393 = vpop.f32.mrb[0].mxu0
        %v394 = vpop.f32.mrb[0].mxu0
        %v395 = vadd.f32 %v270, %v394
        %v396 = vpop.f32.mrb[0].mxu0
        %397 = vmatprep.mubr.bf16.mxu0 0
        %398 = vmatmul.mubr.bf16.gmra.mrb[0].mxu0 %v308
        %v399 = vpop.f32.mrb[0].mxu0
        %v400 = vadd.f32 %v270, %v399
        %v401 = vpop.f32.mrb[0].mxu0
        %v402 = vpop.f32.mrb[0].mxu0
        %v403 = vadd.f32 %v270, %v402
        %v404 = vpop.f32.mrb[0].mxu0
        %405 = vmatprep.mubr.bf16.mxu0 0
        %406 = vmatmul.mubr.bf16.gmra.mrb[0].mxu0 %v311
        %v407 = vpop.f32.mrb[0].mxu0
        %v408 = vadd.f32 %v270, %v407
        %v409 = vpop.f32.mrb[0].mxu0
        %v410 = vpop.f32.mrb[0].mxu0
        %v411 = vadd.f32 %v270, %v410
        %v412 = vpop.f32.mrb[0].mxu0
        %413 = vdwg.mxu0
        %v414 = vmax.f32 %v352, 0.0
        %v415 = vmax.f32 %v355, 0.0
        %v416 = vmax.f32 %v360, 0.0
        %v417 = vmax.f32 %v363, 0.0
        %v418 = vmax.f32 %v368, 0.0
        %v419 = vmax.f32 %v371, 0.0
        %v420 = vmax.f32 %v376, 0.0
        %v421 = vmax.f32 %v379, 0.0
        %v422 = vmax.f32 %v384, 0.0
        %v423 = vmax.f32 %v387, 0.0
        %v424 = vmax.f32 %v392, 0.0
        %v425 = vmax.f32 %v395, 0.0
        %v426 = vmax.f32 %v400, 0.0
        %v427 = vmax.f32 %v403, 0.0
        %v428 = vmax.f32 %v408, 0.0
        %v429 = vmax.f32 %v411, 0.0
        %v430 = vpack.c.bf16 %v415, %v414
        %v431 = vpack.c.bf16 %v417, %v416
        %v432 = vpack.c.bf16 %v419, %v418
        %v433 = vpack.c.bf16 %v421, %v420
        %v434 = vpack.c.bf16 %v423, %v422
        %v435 = vpack.c.bf16 %v425, %v424
        %v436 = vpack.c.bf16 %v427, %v426
        %v437 = vpack.c.bf16 %v429, %v428
        %v438 = vld [vmem:[%s3] sm:$0xf]
        %v439 = vld [vmem:[%s3 + $0x4] sm:$0xf]
        %v440 = vld [vmem:[%s3 + $0x8] sm:$0xf]
        %v441 = vld [vmem:[%s3 + $0xc] sm:$0xf]
        %v442 = vld [vmem:[%s3 + $0x10] sm:$0xf]
        %v443 = vld [vmem:[%s3 + $0x14] sm:$0xf]
        %v444 = vld [vmem:[%s3 + $0x18] sm:$0xf]
        %v445 = vld [vmem:[%s3 + $0x1c] sm:$0xf]
        %v446 = vld [vmem:[%s4] sm:$0x1]
        %v448 = vlaneseq
        %v449 = vshrl.u32 %v448, 7
        %v450 = vsub.s32 0, %v449
        %v451 = vrot.slane %v446, %v450
        %v461 = vunpack.c.l.b16 %v438
        %v462 = vunpack.c.l.b16 %v439
        %v463 = vunpack.c.l.b16 %v440
        %v464 = vunpack.c.l.b16 %v441
        %v465 = vunpack.c.l.b16 %v442
        %v466 = vunpack.c.l.b16 %v443
        %v467 = vunpack.c.l.b16 %v444
        %v468 = vunpack.c.l.b16 %v445
        %v469 = vpack.c.b16 %v462, %v461
        %v470 = vpack.c.b16 %v464, %v463
        %v471 = vpack.c.b16 %v466, %v465
        %v472 = vpack.c.b16 %v468, %v467
        %vm477 = vcmask 523264
        %v479 = vsel %vm477, %v430, 0
        %v482 = vsel %vm477, %v431, 0
        %v485 = vsel %vm477, %v432, 0
        %v488 = vsel %vm477, %v433, 0
        %v491 = vsel %vm477, %v434, 0
        %v494 = vsel %vm477, %v435, 0
        %v497 = vsel %vm477, %v436, 0
        %v500 = vsel %vm477, %v437, 0
        %502 = vmatprep.subr.bf16.mxu0 0
        %503 = vmatpush1.bf16.msra.mxu0 %v469
        %504 = vmatprep.subr.bf16.mxu0 0
        %505 = vmatpush1.bf16.msra.mxu0 %v470
        %506 = vmatprep.subr.bf16.mxu0 0
        %507 = vmatpush1.bf16.msra.mxu0 %v471
        %508 = vmatprep.subr.bf16.mxu0 0
        %509 = vmatpush1.bf16.msra.mxu0 %v472
        %510 = vmatprep.subr.bf16.mxu0 0
        %511 = vmatpush1.bf16.msra.mxu0 0
        %512 = vmatprep.subr.bf16.mxu0 0
        %513 = vmatpush1.bf16.msra.mxu0 0
        %514 = vmatprep.subr.bf16.mxu0 0
        %515 = vmatpush1.bf16.msra.mxu0 0
        %516 = vmatprep.subr.bf16.mxu0 0
        %517 = vmatpush1.bf16.msra.mxu0 0
        %518 = vmatprep.subr.bf16.mxu0 0
        %519 = vmatpush1.bf16.msra.mxu0 0
        %520 = vmatprep.subr.bf16.mxu0 0
        %521 = vmatpush1.bf16.msra.mxu0 0
        %522 = vmatprep.subr.bf16.mxu0 0
        %523 = vmatpush1.bf16.msra.mxu0 0
        %524 = vmatprep.subr.bf16.mxu0 0
        %525 = vmatpush1.bf16.msra.mxu0 0
        %526 = vmatprep.subr.bf16.mxu0 0
        %527 = vmatpush1.bf16.msra.mxu0 0
        %528 = vmatprep.subr.bf16.mxu0 0
        %529 = vmatpush1.bf16.msra.mxu0 0
        %530 = vmatprep.subr.bf16.mxu0 0
        %531 = vmatpush1.bf16.msra.mxu0 0
        %532 = vmatprep.subr.bf16.mxu0 0
        %533 = vmatpush1.bf16.msra.mxu0 0
        %534 = vmatprep.mubr.bf16.mxu0 0
        %535 = vmatmul.mubr.bf16.gmra.mrb[0].mxu0 %v479
        %v536 = vpop.f32.mrb[0].mxu0
        %v537 = vadd.f32 %v451, %v536
        %v538 = vpop.f32.mrb[0].mxu0
        %v539 = vpop.f32.mrb[0].mxu0
        %v540 = vadd.f32 %v451, %v539
        %v541 = vpop.f32.mrb[0].mxu0
        %542 = vmatprep.mubr.bf16.mxu0 0
        %543 = vmatmul.mubr.bf16.gmra.mrb[0].mxu0 %v482
        %v544 = vpop.f32.mrb[0].mxu0
        %v545 = vadd.f32 %v451, %v544
        %v546 = vpop.f32.mrb[0].mxu0
        %v547 = vpop.f32.mrb[0].mxu0
        %v548 = vadd.f32 %v451, %v547
        %v549 = vpop.f32.mrb[0].mxu0
        %550 = vmatprep.mubr.bf16.mxu0 0
        %551 = vmatmul.mubr.bf16.gmra.mrb[0].mxu0 %v485
        %v552 = vpop.f32.mrb[0].mxu0
        %v553 = vadd.f32 %v451, %v552
        %v554 = vpop.f32.mrb[0].mxu0
        %v555 = vpop.f32.mrb[0].mxu0
        %v556 = vadd.f32 %v451, %v555
        %v557 = vpop.f32.mrb[0].mxu0
        %558 = vmatprep.mubr.bf16.mxu0 0
        %559 = vmatmul.mubr.bf16.gmra.mrb[0].mxu0 %v488
        %v560 = vpop.f32.mrb[0].mxu0
        %v561 = vadd.f32 %v451, %v560
        %v562 = vpop.f32.mrb[0].mxu0
        %v563 = vpop.f32.mrb[0].mxu0
        %v564 = vadd.f32 %v451, %v563
        %v565 = vpop.f32.mrb[0].mxu0
        %566 = vmatprep.mubr.bf16.mxu0 0
        %567 = vmatmul.mubr.bf16.gmra.mrb[0].mxu0 %v491
        %v568 = vpop.f32.mrb[0].mxu0
        %v569 = vadd.f32 %v451, %v568
        %v570 = vpop.f32.mrb[0].mxu0
        %v571 = vpop.f32.mrb[0].mxu0
        %v572 = vadd.f32 %v451, %v571
        %v573 = vpop.f32.mrb[0].mxu0
        %574 = vmatprep.mubr.bf16.mxu0 0
        %575 = vmatmul.mubr.bf16.gmra.mrb[0].mxu0 %v494
        %v576 = vpop.f32.mrb[0].mxu0
        %v577 = vadd.f32 %v451, %v576
        %v578 = vpop.f32.mrb[0].mxu0
        %v579 = vpop.f32.mrb[0].mxu0
        %v580 = vadd.f32 %v451, %v579
        %v581 = vpop.f32.mrb[0].mxu0
        %582 = vmatprep.mubr.bf16.mxu0 0
        %583 = vmatmul.mubr.bf16.gmra.mrb[0].mxu0 %v497
        %v584 = vpop.f32.mrb[0].mxu0
        %v585 = vadd.f32 %v451, %v584
        %v586 = vpop.f32.mrb[0].mxu0
        %v587 = vpop.f32.mrb[0].mxu0
        %v588 = vadd.f32 %v451, %v587
        %v589 = vpop.f32.mrb[0].mxu0
        %590 = vmatprep.mubr.bf16.mxu0 0
        %591 = vmatmul.mubr.bf16.gmra.mrb[0].mxu0 %v500
        %v592 = vpop.f32.mrb[0].mxu0
        %v593 = vadd.f32 %v451, %v592
        %v594 = vpop.f32.mrb[0].mxu0
        %v595 = vpop.f32.mrb[0].mxu0
        %v596 = vadd.f32 %v451, %v595
        %v597 = vpop.f32.mrb[0].mxu0
        %598 = vdwg.mxu0
        %v599 = vmax.f32 %v537, 0.0
        %v600 = vmax.f32 %v540, 0.0
        %v601 = vmax.f32 %v545, 0.0
        %v602 = vmax.f32 %v548, 0.0
        %v603 = vmax.f32 %v553, 0.0
        %v604 = vmax.f32 %v556, 0.0
        %v605 = vmax.f32 %v561, 0.0
        %v606 = vmax.f32 %v564, 0.0
        %v607 = vmax.f32 %v569, 0.0
        %v608 = vmax.f32 %v572, 0.0
        %v609 = vmax.f32 %v577, 0.0
        %v610 = vmax.f32 %v580, 0.0
        %v611 = vmax.f32 %v585, 0.0
        %v612 = vmax.f32 %v588, 0.0
        %v613 = vmax.f32 %v593, 0.0
        %v614 = vmax.f32 %v596, 0.0
        %v615 = vpack.c.bf16 %v600, %v599
        %v616 = vpack.c.bf16 %v602, %v601
        %v617 = vpack.c.bf16 %v604, %v603
        %v618 = vpack.c.bf16 %v606, %v605
        %v619 = vpack.c.bf16 %v608, %v607
        %v620 = vpack.c.bf16 %v610, %v609
        %v621 = vpack.c.bf16 %v612, %v611
        %v622 = vpack.c.bf16 %v614, %v613
        %v623 = vld [vmem:[#allocation2] sm:$0xff]
        %v624 = vld [vmem:[#allocation2 + $0x8] sm:$0xff]
        %v625 = vld [vmem:[#allocation2 + $0x10] sm:$0xff]
        %v626 = vld [vmem:[#allocation2 + $0x18] sm:$0xff]
        %v627 = vld [vmem:[#allocation2 + $0x20] sm:$0xff]
        %v628 = vld [vmem:[#allocation2 + $0x28] sm:$0xff]
        %v629 = vld [vmem:[#allocation2 + $0x30] sm:$0xff]
        %v630 = vld [vmem:[#allocation2 + $0x38] sm:$0xff]
        %v631 = vld [vmem:[#allocation2 + $0x40] sm:$0xff]
        %v632 = vld [vmem:[#allocation2 + $0x48] sm:$0xff]
        %v633 = vld [vmem:[#allocation2 + $0x50] sm:$0xff]
        %v634 = vld [vmem:[#allocation2 + $0x58] sm:$0xff]
        %v635 = vld [vmem:[#allocation2 + $0x60] sm:$0xff]
        %v636 = vld [vmem:[#allocation2 + $0x68] sm:$0xff]
        %v637 = vld [vmem:[#allocation2 + $0x70] sm:$0xff]
        %v638 = vld [vmem:[#allocation2 + $0x78] sm:$0xff]
        %v639 = vld [vmem:[#allocation2 + $0x80] sm:$0xff]
        %v640 = vld [vmem:[#allocation2 + $0x88] sm:$0xff]
        %v641 = vld [vmem:[#allocation2 + $0x90] sm:$0xff]
        %v642 = vld [vmem:[#allocation2 + $0x98] sm:$0xff]
        %v643 = vld [vmem:[#allocation2 + $0xa0] sm:$0xff]
        %v644 = vld [vmem:[#allocation2 + $0xa8] sm:$0xff]
        %v645 = vld [vmem:[#allocation2 + $0xb0] sm:$0xff]
        %v646 = vld [vmem:[#allocation2 + $0xb8] sm:$0xff]
        %v647 = vld [vmem:[#allocation2 + $0xc0] sm:$0xff]
        %v648 = vld [vmem:[#allocation2 + $0xc8] sm:$0xff]
        %v649 = vld [vmem:[#allocation2 + $0xd0] sm:$0xff]
        %v650 = vld [vmem:[#allocation2 + $0xd8] sm:$0xff]
        %v651 = vld [vmem:[#allocation2 + $0xe0] sm:$0xff]
        %v652 = vld [vmem:[#allocation2 + $0xe8] sm:$0xff]
        %v653 = vld [vmem:[#allocation2 + $0xf0] sm:$0xff]
        %v654 = vld [vmem:[#allocation2 + $0xf8] sm:$0xff]
        %v655 = vld [vmem:[#allocation2 + $0x100] sm:$0xff]
        %v656 = vld [vmem:[#allocation2 + $0x108] sm:$0xff]
        %v657 = vld [vmem:[#allocation2 + $0x110] sm:$0xff]
        %v658 = vld [vmem:[#allocation2 + $0x118] sm:$0xff]
        %v659 = vld [vmem:[#allocation2 + $0x120] sm:$0xff]
        %v660 = vld [vmem:[#allocation2 + $0x128] sm:$0xff]
        %v661 = vld [vmem:[#allocation2 + $0x130] sm:$0xff]
        %v662 = vld [vmem:[#allocation2 + $0x138] sm:$0xff]
        %v663 = vld [vmem:[#allocation2 + $0x140] sm:$0xff]
        %v664 = vld [vmem:[#allocation2 + $0x148] sm:$0xff]
        %v665 = vld [vmem:[#allocation2 + $0x150] sm:$0xff]
        %v666 = vld [vmem:[#allocation2 + $0x158] sm:$0xff]
        %v667 = vld [vmem:[#allocation2 + $0x160] sm:$0xff]
        %v668 = vld [vmem:[#allocation2 + $0x168] sm:$0xff]
        %v669 = vld [vmem:[#allocation2 + $0x170] sm:$0xff]
        %v670 = vld [vmem:[#allocation2 + $0x178] sm:$0xff]
        %v671 = vld [vmem:[#allocation2 + $0x180] sm:$0xff]
        %v672 = vld [vmem:[#allocation2 + $0x188] sm:$0xff]
        %v673 = vld [vmem:[#allocation2 + $0x190] sm:$0xff]
        %v674 = vld [vmem:[#allocation2 + $0x198] sm:$0xff]
        %v675 = vld [vmem:[#allocation2 + $0x1a0] sm:$0xff]
        %v676 = vld [vmem:[#allocation2 + $0x1a8] sm:$0xff]
        %v677 = vld [vmem:[#allocation2 + $0x1b0] sm:$0xff]
        %v678 = vld [vmem:[#allocation2 + $0x1b8] sm:$0xff]
        %v679 = vld [vmem:[#allocation2 + $0x1c0] sm:$0xff]
        %v680 = vld [vmem:[#allocation2 + $0x1c8] sm:$0xff]
        %v681 = vld [vmem:[#allocation2 + $0x1d0] sm:$0xff]
        %v682 = vld [vmem:[#allocation2 + $0x1d8] sm:$0xff]
        %v683 = vld [vmem:[#allocation2 + $0x1e0] sm:$0xff]
        %v684 = vld [vmem:[#allocation2 + $0x1e8] sm:$0xff]
        %v685 = vld [vmem:[#allocation2 + $0x1f0] sm:$0xff]
        %v686 = vld [vmem:[#allocation2 + $0x1f8] sm:$0xff]
        %v751 = vunpack.c.l.b16 %v623
        %v752 = vunpack.c.h.b16 %v623
        %v753 = vunpack.c.l.b16 %v624
        %v754 = vunpack.c.h.b16 %v624
        %v755 = vunpack.c.l.b16 %v625
        %v756 = vunpack.c.h.b16 %v625
        %v757 = vunpack.c.l.b16 %v626
        %v758 = vunpack.c.h.b16 %v626
        %v759 = vunpack.c.l.b16 %v627
        %v760 = vunpack.c.h.b16 %v627
        %v761 = vunpack.c.l.b16 %v628
        %v762 = vunpack.c.h.b16 %v628
        %v763 = vunpack.c.l.b16 %v629
        %v764 = vunpack.c.h.b16 %v629
        %v765 = vunpack.c.l.b16 %v630
        %v766 = vunpack.c.h.b16 %v630
        %v767 = vunpack.c.l.b16 %v631
        %v768 = vunpack.c.h.b16 %v631
        %v769 = vunpack.c.l.b16 %v632
        %v770 = vunpack.c.h.b16 %v632
        %v771 = vunpack.c.l.b16 %v633
        %v772 = vunpack.c.h.b16 %v633
        %v773 = vunpack.c.l.b16 %v634
        %v774 = vunpack.c.h.b16 %v634
        %v775 = vunpack.c.l.b16 %v635
        %v776 = vunpack.c.h.b16 %v635
        %v777 = vunpack.c.l.b16 %v636
        %v778 = vunpack.c.h.b16 %v636
        %v779 = vunpack.c.l.b16 %v637
        %v780 = vunpack.c.h.b16 %v637
        %v781 = vunpack.c.l.b16 %v638
        %v782 = vunpack.c.h.b16 %v638
        %v783 = vunpack.c.l.b16 %v639
        %v784 = vunpack.c.h.b16 %v639
        %v785 = vunpack.c.l.b16 %v640
        %v786 = vunpack.c.h.b16 %v640
        %v787 = vunpack.c.l.b16 %v641
        %v788 = vunpack.c.h.b16 %v641
        %v789 = vunpack.c.l.b16 %v642
        %v790 = vunpack.c.h.b16 %v642
        %v791 = vunpack.c.l.b16 %v643
        %v792 = vunpack.c.h.b16 %v643
        %v793 = vunpack.c.l.b16 %v644
        %v794 = vunpack.c.h.b16 %v644
        %v795 = vunpack.c.l.b16 %v645
        %v796 = vunpack.c.h.b16 %v645
        %v797 = vunpack.c.l.b16 %v646
        %v798 = vunpack.c.h.b16 %v646
        %v799 = vunpack.c.l.b16 %v647
        %v800 = vunpack.c.h.b16 %v647
        %v801 = vunpack.c.l.b16 %v648
        %v802 = vunpack.c.h.b16 %v648
        %v803 = vunpack.c.l.b16 %v649
        %v804 = vunpack.c.h.b16 %v649
        %v805 = vunpack.c.l.b16 %v650
        %v806 = vunpack.c.h.b16 %v650
        %v807 = vunpack.c.l.b16 %v651
        %v808 = vunpack.c.h.b16 %v651
        %v809 = vunpack.c.l.b16 %v652
        %v810 = vunpack.c.h.b16 %v652
        %v811 = vunpack.c.l.b16 %v653
        %v812 = vunpack.c.h.b16 %v653
        %v813 = vunpack.c.l.b16 %v654
        %v814 = vunpack.c.h.b16 %v654
        %v815 = vunpack.c.l.b16 %v655
        %v816 = vunpack.c.h.b16 %v655
        %v817 = vunpack.c.l.b16 %v656
        %v818 = vunpack.c.h.b16 %v656
        %v819 = vunpack.c.l.b16 %v657
        %v820 = vunpack.c.h.b16 %v657
        %v821 = vunpack.c.l.b16 %v658
        %v822 = vunpack.c.h.b16 %v658
        %v823 = vunpack.c.l.b16 %v659
        %v824 = vunpack.c.h.b16 %v659
        %v825 = vunpack.c.l.b16 %v660
        %v826 = vunpack.c.h.b16 %v660
        %v827 = vunpack.c.l.b16 %v661
        %v828 = vunpack.c.h.b16 %v661
        %v829 = vunpack.c.l.b16 %v662
        %v830 = vunpack.c.h.b16 %v662
        %v831 = vunpack.c.l.b16 %v663
        %v832 = vunpack.c.h.b16 %v663
        %v833 = vunpack.c.l.b16 %v664
        %v834 = vunpack.c.h.b16 %v664
        %v835 = vunpack.c.l.b16 %v665
        %v836 = vunpack.c.h.b16 %v665
        %v837 = vunpack.c.l.b16 %v666
        %v838 = vunpack.c.h.b16 %v666
        %v839 = vunpack.c.l.b16 %v667
        %v840 = vunpack.c.h.b16 %v667
        %v841 = vunpack.c.l.b16 %v668
        %v842 = vunpack.c.h.b16 %v668
        %v843 = vunpack.c.l.b16 %v669
        %v844 = vunpack.c.h.b16 %v669
        %v845 = vunpack.c.l.b16 %v670
        %v846 = vunpack.c.h.b16 %v670
        %v847 = vunpack.c.l.b16 %v671
        %v848 = vunpack.c.h.b16 %v671
        %v849 = vunpack.c.l.b16 %v672
        %v850 = vunpack.c.h.b16 %v672
        %v851 = vunpack.c.l.b16 %v673
        %v852 = vunpack.c.h.b16 %v673
        %v853 = vunpack.c.l.b16 %v674
        %v854 = vunpack.c.h.b16 %v674
        %v855 = vunpack.c.l.b16 %v675
        %v856 = vunpack.c.h.b16 %v675
        %v857 = vunpack.c.l.b16 %v676
        %v858 = vunpack.c.h.b16 %v676
        %v859 = vunpack.c.l.b16 %v677
        %v860 = vunpack.c.h.b16 %v677
        %v861 = vunpack.c.l.b16 %v678
        %v862 = vunpack.c.h.b16 %v678
        %v863 = vunpack.c.l.b16 %v679
        %v864 = vunpack.c.h.b16 %v679
        %v865 = vunpack.c.l.b16 %v680
        %v866 = vunpack.c.h.b16 %v680
        %v867 = vunpack.c.l.b16 %v681
        %v868 = vunpack.c.h.b16 %v681
        %v869 = vunpack.c.l.b16 %v682
        %v870 = vunpack.c.h.b16 %v682
        %v871 = vunpack.c.l.b16 %v683
        %v872 = vunpack.c.h.b16 %v683
        %v873 = vunpack.c.l.b16 %v684
        %v874 = vunpack.c.h.b16 %v684
        %v875 = vunpack.c.l.b16 %v685
        %v876 = vunpack.c.h.b16 %v685
        %v877 = vunpack.c.l.b16 %v686
        %v878 = vunpack.c.h.b16 %v686
        %v879 = vpack.c.b16 %v759, %v751
        %v880 = vpack.c.b16 %v760, %v752
        %v881 = vpack.c.b16 %v761, %v753
        %v882 = vpack.c.b16 %v762, %v754
        %v883 = vpack.c.b16 %v763, %v755
        %v884 = vpack.c.b16 %v764, %v756
        %v885 = vpack.c.b16 %v765, %v757
        %v886 = vpack.c.b16 %v766, %v758
        %v887 = vpack.c.b16 %v775, %v767
        %v888 = vpack.c.b16 %v776, %v768
        %v889 = vpack.c.b16 %v777, %v769
        %v890 = vpack.c.b16 %v778, %v770
        %v891 = vpack.c.b16 %v779, %v771
        %v892 = vpack.c.b16 %v780, %v772
        %v893 = vpack.c.b16 %v781, %v773
        %v894 = vpack.c.b16 %v782, %v774
        %v895 = vpack.c.b16 %v791, %v783
        %v896 = vpack.c.b16 %v792, %v784
        %v897 = vpack.c.b16 %v793, %v785
        %v898 = vpack.c.b16 %v794, %v786
        %v899 = vpack.c.b16 %v795, %v787
        %v900 = vpack.c.b16 %v796, %v788
        %v901 = vpack.c.b16 %v797, %v789
        %v902 = vpack.c.b16 %v798, %v790
        %v903 = vpack.c.b16 %v807, %v799
        %v904 = vpack.c.b16 %v808, %v800
        %v905 = vpack.c.b16 %v809, %v801
        %v906 = vpack.c.b16 %v810, %v802
        %v907 = vpack.c.b16 %v811, %v803
        %v908 = vpack.c.b16 %v812, %v804
        %v909 = vpack.c.b16 %v813, %v805
        %v910 = vpack.c.b16 %v814, %v806
        %v911 = vpack.c.b16 %v823, %v815
        %v912 = vpack.c.b16 %v824, %v816
        %v913 = vpack.c.b16 %v825, %v817
        %v914 = vpack.c.b16 %v826, %v818
        %v915 = vpack.c.b16 %v827, %v819
        %v916 = vpack.c.b16 %v828, %v820
        %v917 = vpack.c.b16 %v829, %v821
        %v918 = vpack.c.b16 %v830, %v822
        %v919 = vpack.c.b16 %v839, %v831
        %v920 = vpack.c.b16 %v840, %v832
        %v921 = vpack.c.b16 %v841, %v833
        %v922 = vpack.c.b16 %v842, %v834
        %v923 = vpack.c.b16 %v843, %v835
        %v924 = vpack.c.b16 %v844, %v836
        %v925 = vpack.c.b16 %v845, %v837
        %v926 = vpack.c.b16 %v846, %v838
        %v927 = vpack.c.b16 %v855, %v847
        %v928 = vpack.c.b16 %v856, %v848
        %v929 = vpack.c.b16 %v857, %v849
        %v930 = vpack.c.b16 %v858, %v850
        %v931 = vpack.c.b16 %v859, %v851
        %v932 = vpack.c.b16 %v860, %v852
        %v933 = vpack.c.b16 %v861, %v853
        %v934 = vpack.c.b16 %v862, %v854
        %v935 = vpack.c.b16 %v871, %v863
        %v936 = vpack.c.b16 %v872, %v864
        %v937 = vpack.c.b16 %v873, %v865
        %v938 = vpack.c.b16 %v874, %v866
        %v939 = vpack.c.b16 %v875, %v867
        %v940 = vpack.c.b16 %v876, %v868
        %v941 = vpack.c.b16 %v877, %v869
        %v942 = vpack.c.b16 %v878, %v870
        %1007 = vmatprep.subr.bf16.mxu0 %v880
        %1008 = vmatpush1.bf16.msra.mxu0 %v879
        %1009 = vmatprep.subr.bf16.mxu0 %v888
        %1010 = vmatpush1.bf16.msra.mxu0 %v887
        %1011 = vmatprep.subr.bf16.mxu0 %v896
        %1012 = vmatpush1.bf16.msra.mxu0 %v895
        %1013 = vmatprep.subr.bf16.mxu0 %v904
        %1014 = vmatpush1.bf16.msra.mxu0 %v903
        %1015 = vmatprep.subr.bf16.mxu0 %v912
        %1016 = vmatpush1.bf16.msra.mxu0 %v911
        %1017 = vmatprep.subr.bf16.mxu0 %v920
        %1018 = vmatpush1.bf16.msra.mxu0 %v919
        %1019 = vmatprep.subr.bf16.mxu0 %v928
        %1020 = vmatpush1.bf16.msra.mxu0 %v927
        %1021 = vmatprep.subr.bf16.mxu0 %v936
        %1022 = vmatpush1.bf16.msra.mxu0 %v935
        %1023 = vmatprep.subr.bf16.mxu0 0
        %1024 = vmatpush1.bf16.msra.mxu0 0
        %1025 = vmatprep.subr.bf16.mxu0 0
        %1026 = vmatpush1.bf16.msra.mxu0 0
        %1027 = vmatprep.subr.bf16.mxu0 0
        %1028 = vmatpush1.bf16.msra.mxu0 0
        %1029 = vmatprep.subr.bf16.mxu0 0
        %1030 = vmatpush1.bf16.msra.mxu0 0
        %1031 = vmatprep.subr.bf16.mxu0 0
        %1032 = vmatpush1.bf16.msra.mxu0 0
        %1033 = vmatprep.subr.bf16.mxu0 0
        %1034 = vmatpush1.bf16.msra.mxu0 0
        %1035 = vmatprep.subr.bf16.mxu0 0
        %1036 = vmatpush1.bf16.msra.mxu0 0
        %1037 = vmatprep.subr.bf16.mxu0 0
        %1038 = vmatpush1.bf16.msra.mxu0 0
        %1039 = vmatprep.mubr.bf16.mxu0 0
        %1040 = vmatmul.mubr.bf16.gmra.mrb[0].mxu0 %v615
        %v1041 = vpop.f32.mrb[0].mxu0
        %v1042 = vadd.f32 0.0, %v1041
        %v1043 = vpop.f32.mrb[0].mxu0
        %v1044 = vadd.f32 0.0, %v1043
        %v1045 = vpop.f32.mrb[0].mxu0
        %v1046 = vadd.f32 0.0, %v1045
        %v1047 = vpop.f32.mrb[0].mxu0
        %v1048 = vadd.f32 0.0, %v1047
        %1049 = vmatprep.mubr.bf16.mxu0 0
        %1050 = vmatmul.mubr.bf16.gmra.mrb[0].mxu0 %v616
        %v1051 = vpop.f32.mrb[0].mxu0
        %v1052 = vadd.f32 0.0, %v1051
        %v1053 = vpop.f32.mrb[0].mxu0
        %v1054 = vadd.f32 0.0, %v1053
        %v1055 = vpop.f32.mrb[0].mxu0
        %v1056 = vadd.f32 0.0, %v1055
        %v1057 = vpop.f32.mrb[0].mxu0
        %v1058 = vadd.f32 0.0, %v1057
        %1059 = vmatprep.mubr.bf16.mxu0 0
        %1060 = vmatmul.mubr.bf16.gmra.mrb[0].mxu0 %v617
        %v1061 = vpop.f32.mrb[0].mxu0
        %v1062 = vadd.f32 0.0, %v1061
        %v1063 = vpop.f32.mrb[0].mxu0
        %v1064 = vadd.f32 0.0, %v1063
        %v1065 = vpop.f32.mrb[0].mxu0
        %v1066 = vadd.f32 0.0, %v1065
        %v1067 = vpop.f32.mrb[0].mxu0
        %v1068 = vadd.f32 0.0, %v1067
        %1069 = vmatprep.mubr.bf16.mxu0 0
        %1070 = vmatmul.mubr.bf16.gmra.mrb[0].mxu0 %v618
        %v1071 = vpop.f32.mrb[0].mxu0
        %v1072 = vadd.f32 0.0, %v1071
        %v1073 = vpop.f32.mrb[0].mxu0
        %v1074 = vadd.f32 0.0, %v1073
        %v1075 = vpop.f32.mrb[0].mxu0
        %v1076 = vadd.f32 0.0, %v1075
        %v1077 = vpop.f32.mrb[0].mxu0
        %v1078 = vadd.f32 0.0, %v1077
        %1079 = vmatprep.mubr.bf16.mxu0 0
        %1080 = vmatmul.mubr.bf16.gmra.mrb[0].mxu0 %v619
        %v1081 = vpop.f32.mrb[0].mxu0
        %v1082 = vadd.f32 0.0, %v1081
        %v1083 = vpop.f32.mrb[0].mxu0
        %v1084 = vadd.f32 0.0, %v1083
        %v1085 = vpop.f32.mrb[0].mxu0
        %v1086 = vadd.f32 0.0, %v1085
        %v1087 = vpop.f32.mrb[0].mxu0
        %v1088 = vadd.f32 0.0, %v1087
        %1089 = vmatprep.mubr.bf16.mxu0 0
        %1090 = vmatmul.mubr.bf16.gmra.mrb[0].mxu0 %v620
        %v1091 = vpop.f32.mrb[0].mxu0
        %v1092 = vadd.f32 0.0, %v1091
        %v1093 = vpop.f32.mrb[0].mxu0
        %v1094 = vadd.f32 0.0, %v1093
        %v1095 = vpop.f32.mrb[0].mxu0
        %v1096 = vadd.f32 0.0, %v1095
        %v1097 = vpop.f32.mrb[0].mxu0
        %v1098 = vadd.f32 0.0, %v1097
        %1099 = vmatprep.mubr.bf16.mxu0 0
        %1100 = vmatmul.mubr.bf16.gmra.mrb[0].mxu0 %v621
        %v1101 = vpop.f32.mrb[0].mxu0
        %v1102 = vadd.f32 0.0, %v1101
        %v1103 = vpop.f32.mrb[0].mxu0
        %v1104 = vadd.f32 0.0, %v1103
        %v1105 = vpop.f32.mrb[0].mxu0
        %v1106 = vadd.f32 0.0, %v1105
        %v1107 = vpop.f32.mrb[0].mxu0
        %v1108 = vadd.f32 0.0, %v1107
        %1109 = vmatprep.mubr.bf16.mxu0 0
        %1110 = vmatmul.mubr.bf16.gmra.mrb[0].mxu0 %v622
        %v1111 = vpop.f32.mrb[0].mxu0
        %v1112 = vadd.f32 0.0, %v1111
        %v1113 = vpop.f32.mrb[0].mxu0
        %v1114 = vadd.f32 0.0, %v1113
        %v1115 = vpop.f32.mrb[0].mxu0
        %v1116 = vadd.f32 0.0, %v1115
        %v1117 = vpop.f32.mrb[0].mxu0
        %v1118 = vadd.f32 0.0, %v1117
        %1119 = vdwg.mxu0
        %1120 = vmatprep.subr.bf16.mxu0 %v882
        %1121 = vmatpush1.bf16.msra.mxu0 %v881
        %1122 = vmatprep.subr.bf16.mxu0 %v890
        %1123 = vmatpush1.bf16.msra.mxu0 %v889
        %1124 = vmatprep.subr.bf16.mxu0 %v898
        %1125 = vmatpush1.bf16.msra.mxu0 %v897
        %1126 = vmatprep.subr.bf16.mxu0 %v906
        %1127 = vmatpush1.bf16.msra.mxu0 %v905
        %1128 = vmatprep.subr.bf16.mxu0 %v914
        %1129 = vmatpush1.bf16.msra.mxu0 %v913
        %1130 = vmatprep.subr.bf16.mxu0 %v922
        %1131 = vmatpush1.bf16.msra.mxu0 %v921
        %1132 = vmatprep.subr.bf16.mxu0 %v930
        %1133 = vmatpush1.bf16.msra.mxu0 %v929
        %1134 = vmatprep.subr.bf16.mxu0 %v938
        %1135 = vmatpush1.bf16.msra.mxu0 %v937
        %1136 = vmatprep.subr.bf16.mxu0 0
        %1137 = vmatpush1.bf16.msra.mxu0 0
        %1138 = vmatprep.subr.bf16.mxu0 0
        %1139 = vmatpush1.bf16.msra.mxu0 0
        %1140 = vmatprep.subr.bf16.mxu0 0
        %1141 = vmatpush1.bf16.msra.mxu0 0
        %1142 = vmatprep.subr.bf16.mxu0 0
        %1143 = vmatpush1.bf16.msra.mxu0 0
        %1144 = vmatprep.subr.bf16.mxu0 0
        %1145 = vmatpush1.bf16.msra.mxu0 0
        %1146 = vmatprep.subr.bf16.mxu0 0
        %1147 = vmatpush1.bf16.msra.mxu0 0
        %1148 = vmatprep.subr.bf16.mxu0 0
        %1149 = vmatpush1.bf16.msra.mxu0 0
        %1150 = vmatprep.subr.bf16.mxu0 0
        %1151 = vmatpush1.bf16.msra.mxu0 0
        %1152 = vmatprep.mubr.bf16.mxu0 0
        %1153 = vmatmul.mubr.bf16.gmra.mrb[0].mxu0 %v615
        %v1154 = vpop.f32.mrb[0].mxu0
        %v1155 = vadd.f32 0.0, %v1154
        %v1156 = vpop.f32.mrb[0].mxu0
        %v1157 = vadd.f32 0.0, %v1156
        %v1158 = vpop.f32.mrb[0].mxu0
        %v1159 = vadd.f32 0.0, %v1158
        %v1160 = vpop.f32.mrb[0].mxu0
        %v1161 = vadd.f32 0.0, %v1160
        %1162 = vmatprep.mubr.bf16.mxu0 0
        %1163 = vmatmul.mubr.bf16.gmra.mrb[0].mxu0 %v616
        %v1164 = vpop.f32.mrb[0].mxu0
        %v1165 = vadd.f32 0.0, %v1164
        %v1166 = vpop.f32.mrb[0].mxu0
        %v1167 = vadd.f32 0.0, %v1166
        %v1168 = vpop.f32.mrb[0].mxu0
        %v1169 = vadd.f32 0.0, %v1168
        %v1170 = vpop.f32.mrb[0].mxu0
        %v1171 = vadd.f32 0.0, %v1170
        %1172 = vmatprep.mubr.bf16.mxu0 0
        %1173 = vmatmul.mubr.bf16.gmra.mrb[0].mxu0 %v617
        %v1174 = vpop.f32.mrb[0].mxu0
        %v1175 = vadd.f32 0.0, %v1174
        %v1176 = vpop.f32.mrb[0].mxu0
        %v1177 = vadd.f32 0.0, %v1176
        %v1178 = vpop.f32.mrb[0].mxu0
        %v1179 = vadd.f32 0.0, %v1178
        %v1180 = vpop.f32.mrb[0].mxu0
        %v1181 = vadd.f32 0.0, %v1180
        %1182 = vmatprep.mubr.bf16.mxu0 0
        %1183 = vmatmul.mubr.bf16.gmra.mrb[0].mxu0 %v618
        %v1184 = vpop.f32.mrb[0].mxu0
        %v1185 = vadd.f32 0.0, %v1184
        %v1186 = vpop.f32.mrb[0].mxu0
        %v1187 = vadd.f32 0.0, %v1186
        %v1188 = vpop.f32.mrb[0].mxu0
        %v1189 = vadd.f32 0.0, %v1188
        %v1190 = vpop.f32.mrb[0].mxu0
        %v1191 = vadd.f32 0.0, %v1190
        %1192 = vmatprep.mubr.bf16.mxu0 0
        %1193 = vmatmul.mubr.bf16.gmra.mrb[0].mxu0 %v619
        %v1194 = vpop.f32.mrb[0].mxu0
        %v1195 = vadd.f32 0.0, %v1194
        %v1196 = vpop.f32.mrb[0].mxu0
        %v1197 = vadd.f32 0.0, %v1196
        %v1198 = vpop.f32.mrb[0].mxu0
        %v1199 = vadd.f32 0.0, %v1198
        %v1200 = vpop.f32.mrb[0].mxu0
        %v1201 = vadd.f32 0.0, %v1200
        %1202 = vmatprep.mubr.bf16.mxu0 0
        %1203 = vmatmul.mubr.bf16.gmra.mrb[0].mxu0 %v620
        %v1204 = vpop.f32.mrb[0].mxu0
        %v1205 = vadd.f32 0.0, %v1204
        %v1206 = vpop.f32.mrb[0].mxu0
        %v1207 = vadd.f32 0.0, %v1206
        %v1208 = vpop.f32.mrb[0].mxu0
        %v1209 = vadd.f32 0.0, %v1208
        %v1210 = vpop.f32.mrb[0].mxu0
        %v1211 = vadd.f32 0.0, %v1210
        %1212 = vmatprep.mubr.bf16.mxu0 0
        %1213 = vmatmul.mubr.bf16.gmra.mrb[0].mxu0 %v621
        %v1214 = vpop.f32.mrb[0].mxu0
        %v1215 = vadd.f32 0.0, %v1214
        %v1216 = vpop.f32.mrb[0].mxu0
        %v1217 = vadd.f32 0.0, %v1216
        %v1218 = vpop.f32.mrb[0].mxu0
        %v1219 = vadd.f32 0.0, %v1218
        %v1220 = vpop.f32.mrb[0].mxu0
        %v1221 = vadd.f32 0.0, %v1220
        %1222 = vmatprep.mubr.bf16.mxu0 0
        %1223 = vmatmul.mubr.bf16.gmra.mrb[0].mxu0 %v622
        %v1224 = vpop.f32.mrb[0].mxu0
        %v1225 = vadd.f32 0.0, %v1224
        %v1226 = vpop.f32.mrb[0].mxu0
        %v1227 = vadd.f32 0.0, %v1226
        %v1228 = vpop.f32.mrb[0].mxu0
        %v1229 = vadd.f32 0.0, %v1228
        %v1230 = vpop.f32.mrb[0].mxu0
        %v1231 = vadd.f32 0.0, %v1230
        %1232 = vdwg.mxu0
        %1233 = vmatprep.subr.bf16.mxu0 %v884
        %1234 = vmatpush1.bf16.msra.mxu0 %v883
        %1235 = vmatprep.subr.bf16.mxu0 %v892
        %1236 = vmatpush1.bf16.msra.mxu0 %v891
        %1237 = vmatprep.subr.bf16.mxu0 %v900
        %1238 = vmatpush1.bf16.msra.mxu0 %v899
        %1239 = vmatprep.subr.bf16.mxu0 %v908
        %1240 = vmatpush1.bf16.msra.mxu0 %v907
        %1241 = vmatprep.subr.bf16.mxu0 %v916
        %1242 = vmatpush1.bf16.msra.mxu0 %v915
        %1243 = vmatprep.subr.bf16.mxu0 %v924
        %1244 = vmatpush1.bf16.msra.mxu0 %v923
        %1245 = vmatprep.subr.bf16.mxu0 %v932
        %1246 = vmatpush1.bf16.msra.mxu0 %v931
        %1247 = vmatprep.subr.bf16.mxu0 %v940
        %1248 = vmatpush1.bf16.msra.mxu0 %v939
        %1249 = vmatprep.subr.bf16.mxu0 0
        %1250 = vmatpush1.bf16.msra.mxu0 0
        %1251 = vmatprep.subr.bf16.mxu0 0
        %1252 = vmatpush1.bf16.msra.mxu0 0
        %1253 = vmatprep.subr.bf16.mxu0 0
        %1254 = vmatpush1.bf16.msra.mxu0 0
        %1255 = vmatprep.subr.bf16.mxu0 0
        %1256 = vmatpush1.bf16.msra.mxu0 0
        %1257 = vmatprep.subr.bf16.mxu0 0
        %1258 = vmatpush1.bf16.msra.mxu0 0
        %1259 = vmatprep.subr.bf16.mxu0 0
        %1260 = vmatpush1.bf16.msra.mxu0 0
        %1261 = vmatprep.subr.bf16.mxu0 0
        %1262 = vmatpush1.bf16.msra.mxu0 0
        %1263 = vmatprep.subr.bf16.mxu0 0
        %1264 = vmatpush1.bf16.msra.mxu0 0
        %1265 = vmatprep.mubr.bf16.mxu0 0
        %1266 = vmatmul.mubr.bf16.gmra.mrb[0].mxu0 %v615
        %v1267 = vpop.f32.mrb[0].mxu0
        %v1268 = vadd.f32 0.0, %v1267
        %v1269 = vpop.f32.mrb[0].mxu0
        %v1270 = vadd.f32 0.0, %v1269
        %v1271 = vpop.f32.mrb[0].mxu0
        %v1272 = vadd.f32 0.0, %v1271
        %v1273 = vpop.f32.mrb[0].mxu0
        %v1274 = vadd.f32 0.0, %v1273
        %1275 = vmatprep.mubr.bf16.mxu0 0
        %1276 = vmatmul.mubr.bf16.gmra.mrb[0].mxu0 %v616
        %v1277 = vpop.f32.mrb[0].mxu0
        %v1278 = vadd.f32 0.0, %v1277
        %v1279 = vpop.f32.mrb[0].mxu0
        %v1280 = vadd.f32 0.0, %v1279
        %v1281 = vpop.f32.mrb[0].mxu0
        %v1282 = vadd.f32 0.0, %v1281
        %v1283 = vpop.f32.mrb[0].mxu0
        %v1284 = vadd.f32 0.0, %v1283
        %1285 = vmatprep.mubr.bf16.mxu0 0
        %1286 = vmatmul.mubr.bf16.gmra.mrb[0].mxu0 %v617
        %v1287 = vpop.f32.mrb[0].mxu0
        %v1288 = vadd.f32 0.0, %v1287
        %v1289 = vpop.f32.mrb[0].mxu0
        %v1290 = vadd.f32 0.0, %v1289
        %v1291 = vpop.f32.mrb[0].mxu0
        %v1292 = vadd.f32 0.0, %v1291
        %v1293 = vpop.f32.mrb[0].mxu0
        %v1294 = vadd.f32 0.0, %v1293
        %1295 = vmatprep.mubr.bf16.mxu0 0
        %1296 = vmatmul.mubr.bf16.gmra.mrb[0].mxu0 %v618
        %v1297 = vpop.f32.mrb[0].mxu0
        %v1298 = vadd.f32 0.0, %v1297
        %v1299 = vpop.f32.mrb[0].mxu0
        %v1300 = vadd.f32 0.0, %v1299
        %v1301 = vpop.f32.mrb[0].mxu0
        %v1302 = vadd.f32 0.0, %v1301
        %v1303 = vpop.f32.mrb[0].mxu0
        %v1304 = vadd.f32 0.0, %v1303
        %1305 = vmatprep.mubr.bf16.mxu0 0
        %1306 = vmatmul.mubr.bf16.gmra.mrb[0].mxu0 %v619
        %v1307 = vpop.f32.mrb[0].mxu0
        %v1308 = vadd.f32 0.0, %v1307
        %v1309 = vpop.f32.mrb[0].mxu0
        %v1310 = vadd.f32 0.0, %v1309
        %v1311 = vpop.f32.mrb[0].mxu0
        %v1312 = vadd.f32 0.0, %v1311
        %v1313 = vpop.f32.mrb[0].mxu0
        %v1314 = vadd.f32 0.0, %v1313
        %1315 = vmatprep.mubr.bf16.mxu0 0
        %1316 = vmatmul.mubr.bf16.gmra.mrb[0].mxu0 %v620
        %v1317 = vpop.f32.mrb[0].mxu0
        %v1318 = vadd.f32 0.0, %v1317
        %v1319 = vpop.f32.mrb[0].mxu0
        %v1320 = vadd.f32 0.0, %v1319
        %v1321 = vpop.f32.mrb[0].mxu0
        %v1322 = vadd.f32 0.0, %v1321
        %v1323 = vpop.f32.mrb[0].mxu0
        %v1324 = vadd.f32 0.0, %v1323
        %1325 = vmatprep.mubr.bf16.mxu0 0
        %1326 = vmatmul.mubr.bf16.gmra.mrb[0].mxu0 %v621
        %v1327 = vpop.f32.mrb[0].mxu0
        %v1328 = vadd.f32 0.0, %v1327
        %v1329 = vpop.f32.mrb[0].mxu0
        %v1330 = vadd.f32 0.0, %v1329
        %v1331 = vpop.f32.mrb[0].mxu0
        %v1332 = vadd.f32 0.0, %v1331
        %v1333 = vpop.f32.mrb[0].mxu0
        %v1334 = vadd.f32 0.0, %v1333
        %1335 = vmatprep.mubr.bf16.mxu0 0
        %1336 = vmatmul.mubr.bf16.gmra.mrb[0].mxu0 %v622
        %v1337 = vpop.f32.mrb[0].mxu0
        %v1338 = vadd.f32 0.0, %v1337
        %v1339 = vpop.f32.mrb[0].mxu0
        %v1340 = vadd.f32 0.0, %v1339
        %v1341 = vpop.f32.mrb[0].mxu0
        %v1342 = vadd.f32 0.0, %v1341
        %v1343 = vpop.f32.mrb[0].mxu0
        %v1344 = vadd.f32 0.0, %v1343
        %1345 = vdwg.mxu0
        %1346 = vmatprep.subr.bf16.mxu0 %v886
        %1347 = vmatpush1.bf16.msra.mxu0 %v885
        %1348 = vmatprep.subr.bf16.mxu0 %v894
        %1349 = vmatpush1.bf16.msra.mxu0 %v893
        %1350 = vmatprep.subr.bf16.mxu0 %v902
        %1351 = vmatpush1.bf16.msra.mxu0 %v901
        %1352 = vmatprep.subr.bf16.mxu0 %v910
        %1353 = vmatpush1.bf16.msra.mxu0 %v909
        %1354 = vmatprep.subr.bf16.mxu0 %v918
        %1355 = vmatpush1.bf16.msra.mxu0 %v917
        %1356 = vmatprep.subr.bf16.mxu0 %v926
        %1357 = vmatpush1.bf16.msra.mxu0 %v925
        %1358 = vmatprep.subr.bf16.mxu0 %v934
        %1359 = vmatpush1.bf16.msra.mxu0 %v933
        %1360 = vmatprep.subr.bf16.mxu0 %v942
        %1361 = vmatpush1.bf16.msra.mxu0 %v941
        %1362 = vmatprep.subr.bf16.mxu0 0
        %1363 = vmatpush1.bf16.msra.mxu0 0
        %1364 = vmatprep.subr.bf16.mxu0 0
        %1365 = vmatpush1.bf16.msra.mxu0 0
        %1366 = vmatprep.subr.bf16.mxu0 0
        %1367 = vmatpush1.bf16.msra.mxu0 0
        %1368 = vmatprep.subr.bf16.mxu0 0
        %1369 = vmatpush1.bf16.msra.mxu0 0
        %1370 = vmatprep.subr.bf16.mxu0 0
        %1371 = vmatpush1.bf16.msra.mxu0 0
        %1372 = vmatprep.subr.bf16.mxu0 0
        %1373 = vmatpush1.bf16.msra.mxu0 0
        %1374 = vmatprep.subr.bf16.mxu0 0
        %1375 = vmatpush1.bf16.msra.mxu0 0
        %1376 = vmatprep.subr.bf16.mxu0 0
        %1377 = vmatpush1.bf16.msra.mxu0 0
        %1378 = vmatprep.mubr.bf16.mxu0 0
        %1379 = vmatmul.mubr.bf16.gmra.mrb[0].mxu0 %v615
        %v1380 = vpop.f32.mrb[0].mxu0
        %v1381 = vadd.f32 0.0, %v1380
        %v1382 = vpop.f32.mrb[0].mxu0
        %v1383 = vadd.f32 0.0, %v1382
        %v1384 = vpop.f32.mrb[0].mxu0
        %v1385 = vadd.f32 0.0, %v1384
        %v1386 = vpop.f32.mrb[0].mxu0
        %v1387 = vadd.f32 0.0, %v1386
        %1388 = vmatprep.mubr.bf16.mxu0 0
        %1389 = vmatmul.mubr.bf16.gmra.mrb[0].mxu0 %v616
        %v1390 = vpop.f32.mrb[0].mxu0
        %v1391 = vadd.f32 0.0, %v1390
        %v1392 = vpop.f32.mrb[0].mxu0
        %v1393 = vadd.f32 0.0, %v1392
        %v1394 = vpop.f32.mrb[0].mxu0
        %v1395 = vadd.f32 0.0, %v1394
        %v1396 = vpop.f32.mrb[0].mxu0
        %v1397 = vadd.f32 0.0, %v1396
        %1398 = vmatprep.mubr.bf16.mxu0 0
        %1399 = vmatmul.mubr.bf16.gmra.mrb[0].mxu0 %v617
        %v1400 = vpop.f32.mrb[0].mxu0
        %v1401 = vadd.f32 0.0, %v1400
        %v1402 = vpop.f32.mrb[0].mxu0
        %v1403 = vadd.f32 0.0, %v1402
        %v1404 = vpop.f32.mrb[0].mxu0
        %v1405 = vadd.f32 0.0, %v1404
        %v1406 = vpop.f32.mrb[0].mxu0
        %v1407 = vadd.f32 0.0, %v1406
        %1408 = vmatprep.mubr.bf16.mxu0 0
        %1409 = vmatmul.mubr.bf16.gmra.mrb[0].mxu0 %v618
        %v1410 = vpop.f32.mrb[0].mxu0
        %v1411 = vadd.f32 0.0, %v1410
        %v1412 = vpop.f32.mrb[0].mxu0
        %v1413 = vadd.f32 0.0, %v1412
        %v1414 = vpop.f32.mrb[0].mxu0
        %v1415 = vadd.f32 0.0, %v1414
        %v1416 = vpop.f32.mrb[0].mxu0
        %v1417 = vadd.f32 0.0, %v1416
        %1418 = vmatprep.mubr.bf16.mxu0 0
        %1419 = vmatmul.mubr.bf16.gmra.mrb[0].mxu0 %v619
        %v1420 = vpop.f32.mrb[0].mxu0
        %v1421 = vadd.f32 0.0, %v1420
        %v1422 = vpop.f32.mrb[0].mxu0
        %v1423 = vadd.f32 0.0, %v1422
        %v1424 = vpop.f32.mrb[0].mxu0
        %v1425 = vadd.f32 0.0, %v1424
        %v1426 = vpop.f32.mrb[0].mxu0
        %v1427 = vadd.f32 0.0, %v1426
        %1428 = vmatprep.mubr.bf16.mxu0 0
        %1429 = vmatmul.mubr.bf16.gmra.mrb[0].mxu0 %v620
        %v1430 = vpop.f32.mrb[0].mxu0
        %v1431 = vadd.f32 0.0, %v1430
        %v1432 = vpop.f32.mrb[0].mxu0
        %v1433 = vadd.f32 0.0, %v1432
        %v1434 = vpop.f32.mrb[0].mxu0
        %v1435 = vadd.f32 0.0, %v1434
        %v1436 = vpop.f32.mrb[0].mxu0
        %v1437 = vadd.f32 0.0, %v1436
        %1438 = vmatprep.mubr.bf16.mxu0 0
        %1439 = vmatmul.mubr.bf16.gmra.mrb[0].mxu0 %v621
        %v1440 = vpop.f32.mrb[0].mxu0
        %v1441 = vadd.f32 0.0, %v1440
        %v1442 = vpop.f32.mrb[0].mxu0
        %v1443 = vadd.f32 0.0, %v1442
        %v1444 = vpop.f32.mrb[0].mxu0
        %v1445 = vadd.f32 0.0, %v1444
        %v1446 = vpop.f32.mrb[0].mxu0
        %v1447 = vadd.f32 0.0, %v1446
        %1448 = vmatprep.mubr.bf16.mxu0 0
        %1449 = vmatmul.mubr.bf16.gmra.mrb[0].mxu0 %v622
        %v1450 = vpop.f32.mrb[0].mxu0
        %v1451 = vadd.f32 0.0, %v1450
        %v1452 = vpop.f32.mrb[0].mxu0
        %v1453 = vadd.f32 0.0, %v1452
        %v1454 = vpop.f32.mrb[0].mxu0
        %v1455 = vadd.f32 0.0, %v1454
        %v1456 = vpop.f32.mrb[0].mxu0
        %v1457 = vadd.f32 0.0, %v1456
        %1458 = vdwg.mxu0
        %v1459 = vmax.f32 %v1042, %v1046
        %v1460 = vmax.f32 %v1459, %v1052
        %v1461 = vmax.f32 %v1460, %v1056
        %v1462 = vmax.f32 %v1461, %v1062
        %v1463 = vmax.f32 %v1462, %v1066
        %v1464 = vmax.f32 %v1463, %v1072
        %v1465 = vmax.f32 %v1464, %v1076
        %v1466 = vmax.f32 %v1465, %v1082
        %v1467 = vmax.f32 %v1466, %v1086
        %v1468 = vmax.f32 %v1467, %v1092
        %v1469 = vmax.f32 %v1468, %v1096
        %v1470 = vmax.f32 %v1469, %v1102
        %v1471 = vmax.f32 %v1470, %v1106
        %v1472 = vmax.f32 %v1471, %v1112
        %v1473 = vmax.f32 %v1472, %v1116
        %v1474 = vrot.slane %v1473, 4
        %v1475 = vmax.f32 %v1473, %v1474
        %v1476 = vrot.slane %v1475, 2
        %v1477 = vmax.f32 %v1475, %v1476
        %v1478 = vrot.slane %v1477, 1
        %v1479 = vmax.f32 %v1477, %v1478
        %v1480 = vmax.f32 %v1044, %v1048
        %v1481 = vmax.f32 %v1480, %v1054
        %v1482 = vmax.f32 %v1481, %v1058
        %v1483 = vmax.f32 %v1482, %v1064
        %v1484 = vmax.f32 %v1483, %v1068
        %v1485 = vmax.f32 %v1484, %v1074
        %v1486 = vmax.f32 %v1485, %v1078
        %v1487 = vmax.f32 %v1486, %v1084
        %v1488 = vmax.f32 %v1487, %v1088
        %v1489 = vmax.f32 %v1488, %v1094
        %v1490 = vmax.f32 %v1489, %v1098
        %v1491 = vmax.f32 %v1490, %v1104
        %v1492 = vmax.f32 %v1491, %v1108
        %v1493 = vmax.f32 %v1492, %v1114
        %v1494 = vmax.f32 %v1493, %v1118
        %v1495 = vrot.slane %v1494, 4
        %v1496 = vmax.f32 %v1494, %v1495
        %v1497 = vrot.slane %v1496, 2
        %v1498 = vmax.f32 %v1496, %v1497
        %v1499 = vrot.slane %v1498, 1
        %v1500 = vmax.f32 %v1498, %v1499
        %v1501 = vmax.f32 %v1155, %v1159
        %v1502 = vmax.f32 %v1501, %v1165
        %v1503 = vmax.f32 %v1502, %v1169
        %v1504 = vmax.f32 %v1503, %v1175
        %v1505 = vmax.f32 %v1504, %v1179
        %v1506 = vmax.f32 %v1505, %v1185
        %v1507 = vmax.f32 %v1506, %v1189
        %v1508 = vmax.f32 %v1507, %v1195
        %v1509 = vmax.f32 %v1508, %v1199
        %v1510 = vmax.f32 %v1509, %v1205
        %v1511 = vmax.f32 %v1510, %v1209
        %v1512 = vmax.f32 %v1511, %v1215
        %v1513 = vmax.f32 %v1512, %v1219
        %v1514 = vmax.f32 %v1513, %v1225
        %v1515 = vmax.f32 %v1514, %v1229
        %v1516 = vrot.slane %v1515, 4
        %v1517 = vmax.f32 %v1515, %v1516
        %v1518 = vrot.slane %v1517, 2
        %v1519 = vmax.f32 %v1517, %v1518
        %v1520 = vrot.slane %v1519, 1
        %v1521 = vmax.f32 %v1519, %v1520
        %v1522 = vmax.f32 %v1157, %v1161
        %v1523 = vmax.f32 %v1522, %v1167
        %v1524 = vmax.f32 %v1523, %v1171
        %v1525 = vmax.f32 %v1524, %v1177
        %v1526 = vmax.f32 %v1525, %v1181
        %v1527 = vmax.f32 %v1526, %v1187
        %v1528 = vmax.f32 %v1527, %v1191
        %v1529 = vmax.f32 %v1528, %v1197
        %v1530 = vmax.f32 %v1529, %v1201
        %v1531 = vmax.f32 %v1530, %v1207
        %v1532 = vmax.f32 %v1531, %v1211
        %v1533 = vmax.f32 %v1532, %v1217
        %v1534 = vmax.f32 %v1533, %v1221
        %v1535 = vmax.f32 %v1534, %v1227
        %v1536 = vmax.f32 %v1535, %v1231
        %v1537 = vrot.slane %v1536, 4
        %v1538 = vmax.f32 %v1536, %v1537
        %v1539 = vrot.slane %v1538, 2
        %v1540 = vmax.f32 %v1538, %v1539
        %v1541 = vrot.slane %v1540, 1
        %v1542 = vmax.f32 %v1540, %v1541
        %v1543 = vmax.f32 %v1268, %v1272
        %v1544 = vmax.f32 %v1543, %v1278
        %v1545 = vmax.f32 %v1544, %v1282
        %v1546 = vmax.f32 %v1545, %v1288
        %v1547 = vmax.f32 %v1546, %v1292
        %v1548 = vmax.f32 %v1547, %v1298
        %v1549 = vmax.f32 %v1548, %v1302
        %v1550 = vmax.f32 %v1549, %v1308
        %v1551 = vmax.f32 %v1550, %v1312
        %v1552 = vmax.f32 %v1551, %v1318
        %v1553 = vmax.f32 %v1552, %v1322
        %v1554 = vmax.f32 %v1553, %v1328
        %v1555 = vmax.f32 %v1554, %v1332
        %v1556 = vmax.f32 %v1555, %v1338
        %v1557 = vmax.f32 %v1556, %v1342
        %v1558 = vrot.slane %v1557, 4
        %v1559 = vmax.f32 %v1557, %v1558
        %v1560 = vrot.slane %v1559, 2
        %v1561 = vmax.f32 %v1559, %v1560
        %v1562 = vrot.slane %v1561, 1
        %v1563 = vmax.f32 %v1561, %v1562
        %v1564 = vmax.f32 %v1270, %v1274
        %v1565 = vmax.f32 %v1564, %v1280
        %v1566 = vmax.f32 %v1565, %v1284
        %v1567 = vmax.f32 %v1566, %v1290
        %v1568 = vmax.f32 %v1567, %v1294
        %v1569 = vmax.f32 %v1568, %v1300
        %v1570 = vmax.f32 %v1569, %v1304
        %v1571 = vmax.f32 %v1570, %v1310
        %v1572 = vmax.f32 %v1571, %v1314
        %v1573 = vmax.f32 %v1572, %v1320
        %v1574 = vmax.f32 %v1573, %v1324
        %v1575 = vmax.f32 %v1574, %v1330
        %v1576 = vmax.f32 %v1575, %v1334
        %v1577 = vmax.f32 %v1576, %v1340
        %v1578 = vmax.f32 %v1577, %v1344
        %v1579 = vrot.slane %v1578, 4
        %v1580 = vmax.f32 %v1578, %v1579
        %v1581 = vrot.slane %v1580, 2
        %v1582 = vmax.f32 %v1580, %v1581
        %v1583 = vrot.slane %v1582, 1
        %v1584 = vmax.f32 %v1582, %v1583
        %v1585 = vmax.f32 %v1381, %v1385
        %v1586 = vmax.f32 %v1585, %v1391
        %v1587 = vmax.f32 %v1586, %v1395
        %v1588 = vmax.f32 %v1587, %v1401
        %v1589 = vmax.f32 %v1588, %v1405
        %v1590 = vmax.f32 %v1589, %v1411
        %v1591 = vmax.f32 %v1590, %v1415
        %v1592 = vmax.f32 %v1591, %v1421
        %v1593 = vmax.f32 %v1592, %v1425
        %v1594 = vmax.f32 %v1593, %v1431
        %v1595 = vmax.f32 %v1594, %v1435
        %v1596 = vmax.f32 %v1595, %v1441
        %v1597 = vmax.f32 %v1596, %v1445
        %v1598 = vmax.f32 %v1597, %v1451
        %v1599 = vmax.f32 %v1598, %v1455
        %v1600 = vrot.slane %v1599, 4
        %v1601 = vmax.f32 %v1599, %v1600
        %v1602 = vrot.slane %v1601, 2
        %v1603 = vmax.f32 %v1601, %v1602
        %v1604 = vrot.slane %v1603, 1
        %v1605 = vmax.f32 %v1603, %v1604
        %v1606 = vmax.f32 %v1383, %v1387
        %v1607 = vmax.f32 %v1606, %v1393
        %v1608 = vmax.f32 %v1607, %v1397
        %v1609 = vmax.f32 %v1608, %v1403
        %v1610 = vmax.f32 %v1609, %v1407
        %v1611 = vmax.f32 %v1610, %v1413
        %v1612 = vmax.f32 %v1611, %v1417
        %v1613 = vmax.f32 %v1612, %v1423
        %v1614 = vmax.f32 %v1613, %v1427
        %v1615 = vmax.f32 %v1614, %v1433
        %v1616 = vmax.f32 %v1615, %v1437
        %v1617 = vmax.f32 %v1616, %v1443
        %v1618 = vmax.f32 %v1617, %v1447
        %v1619 = vmax.f32 %v1618, %v1453
        %v1620 = vmax.f32 %v1619, %v1457
        %v1621 = vrot.slane %v1620, 4
        %v1622 = vmax.f32 %v1620, %v1621
        %v1623 = vrot.slane %v1622, 2
        %v1624 = vmax.f32 %v1622, %v1623
        %v1625 = vrot.slane %v1624, 1
        %v1626 = vmax.f32 %v1624, %v1625
        %v1635 = vcombine.low %v1479, %v1500
        %v1636 = vcombine.low %v1521, %v1542
        %v1637 = vcombine.low %v1563, %v1584
        %v1638 = vcombine.low %v1605, %v1626
        %v1640 = vunpack.c.l.s4 1966171168
        %v1641 = vunpack.c.0.s8 %v1640
        %v1642 = vlaneseq
        %v1643 = vshrl.u32 %v1642, 7
        %v1644 = vsub.s32 %v1641, %v1643
        %v1645 = vrot.slane %v1635, %v1644
        %v1647 = vunpack.c.l.s4 1966171168
        %v1648 = vunpack.c.0.s8 %v1647
        %v1649 = vlaneseq
        %v1650 = vshrl.u32 %v1649, 7
        %v1651 = vsub.s32 %v1648, %v1650
        %v1652 = vrot.slane %v1636, %v1651
        %v1654 = vunpack.c.l.s4 1966171168
        %v1655 = vunpack.c.0.s8 %v1654
        %v1656 = vlaneseq
        %v1657 = vshrl.u32 %v1656, 7
        %v1658 = vsub.s32 %v1655, %v1657
        %v1659 = vrot.slane %v1637, %v1658
        %v1661 = vunpack.c.l.s4 1966171168
        %v1662 = vunpack.c.0.s8 %v1661
        %v1663 = vlaneseq
        %v1664 = vshrl.u32 %v1663, 7
        %v1665 = vsub.s32 %v1662, %v1664
        %v1666 = vrot.slane %v1638, %v1665
        %v1667 = vcombine.low %v1645, %v1652
        %v1668 = vcombine.low %v1659, %v1666
        %v1670 = vunpack.c.l.s4 1966171168
        %v1671 = vunpack.c.0.s8 %v1670
        %v1672 = vlaneseq
        %v1673 = vshrl.u32 %v1672, 7
        %v1674 = vsub.s32 %v1671, %v1673
        %v1675 = vrot.slane %v1667, %v1674
        %v1677 = vunpack.c.l.s4 1966171168
        %v1678 = vunpack.c.0.s8 %v1677
        %v1679 = vlaneseq
        %v1680 = vshrl.u32 %v1679, 7
        %v1681 = vsub.s32 %v1678, %v1680
        %v1682 = vrot.slane %v1668, %v1681
        %v1683 = vcombine.low %v1675, %v1682
        %1685 = vst [vmem:[%s261] sm:$0xff] %v1683
        %p1686 = scmp.lt.s32.totalorder %s18, 1
        %s1687 = scalar_select %p1686, %s18, 1
        %s1688 = smul.addr %s1687, 8
        %s1689 = scalar_lea.vmem %s6, %s1688
        // Predicated region
        $region49: #{stn3d_forward.2} parent=43 // pred_check
          %p1690 = pneg %p167
        $region50: #{stn3d_forward.2} parent=43 // pred_check_branch
          %1692 = sbr.rel (%p1690) target = $region52
        $region51: #{stn3d_forward.2} parent=43 // pred_region
          _
        $region52: #{stn3d_forward.2} parent=43 // pred_fallthru
          _
      $region44: #{stn3d_forward.2} parent=5 // pred_fallthru
        _
      %p1693 = scmp.le.s32.totalorder 2, %s13
      // Predicated region
      $region53: #{stn3d_forward.2} parent=5 // pred_check
        %p1694 = pneg %p1693
      $region54: #{stn3d_forward.2} parent=5 // pred_check_branch
        %1696 = sbr.rel (%p1694) target = $region56
      $region55: #{stn3d_forward.2} parent=5 // pred_region
        %s1697 = ssub.s32 %s13, 2
        // Predicated region
        $region57: #{stn3d_forward.2} parent=55 // pred_check
          %p1698 = pneg %p173
        $region58: #{stn3d_forward.2} parent=55 // pred_check_branch
          %1700 = sbr.rel (%p1698) target = $region60
        $region59: #{stn3d_forward.2} parent=55 // pred_region
          %p1701 = scmp.lt.s32.totalorder %s19, 1
          %s1702 = scalar_select %p1701, %s19, 1
          %s1703 = smul.addr %s1702, 8
          %s1704 = scalar_lea.vmem %s6, %s1703
        $region60: #{stn3d_forward.2} parent=55 // pred_fallthru
          _
      $region56: #{stn3d_forward.2} parent=5 // pred_fallthru
        _
    $region6: #{stn3d_forward.2} parent=1 // loop_footer
      %s17 = sadd.s32 1, %s13
    $region7: #{stn3d_forward.2} parent=1 // loop_footer_branch
      %12 = sbr.rel target = $region3
    $region8: #{stn3d_forward.2} parent=1 // loop_exit
      _
    %1705 = vsyncpa [#allocation3], 1
    %s1706 = scalar_lea.sflag [#allocation3], 1
    %1707 = vsyncpa %s1706, 1

// kernel: stn3d_forward.3
$region0: #{stn3d_forward.3}
  #allocation0 [shape = 'u32[]', space=smem, size = 0x4, offset = 0x4, fixed_abs, tag = 'smem constant byte address 0x4 - core index']
  #allocation1 [shape = 'u32[144,128]{1,0:T(1,128)}', space=vmem, size = 0x12000, scoped, tag = 'internal scratch']
  %s0 = inlined_call_operand.vmem [shape: f32[2,1024], index: 0, kind: input, shape index: {}]
  %s1 = inlined_call_operand.vmem [shape: f32[1,1024], index: 1, kind: input, shape index: {}]
  %s2 = inlined_call_operand.hbm [shape: bf16[1024,512], index: 2, kind: input, shape index: {}]
  %s3 = inlined_call_operand.vmem [shape: f32[1,512], index: 3, kind: input, shape index: {}]
  %s4 = inlined_call_operand.vmem [shape: bf16[512,256], index: 4, kind: input, shape index: {}]
  %s5 = inlined_call_operand.vmem [shape: f32[1,256], index: 5, kind: input, shape index: {}]
  %s6 = inlined_call_operand.vmem [shape: bf16[256,128], index: 6, kind: input, shape index: {}]
  %s7 = inlined_call_operand.vmem [shape: f32[1,128], index: 7, kind: input, shape index: {}]
  %s8 = inlined_call_operand.vmem [shape: f32[2,128], index: 8, kind: output, shape index: {}]
  %s9 = sld [smem:[#allocation0]]
  $region46: #{stn3d_forward.3} parent=0
    _
  %s11 = ssub.s32 1, %s9
  %s12 = scalar_select 0, %s11, %s9
  $region1: #{stn3d_forward.3} parent=0
    #allocation2 [shape = 'u8[1048576]{0}', space=vmem, size = 0x100000, scoped, tag = 'input window, operand 2, single buffered']
    #allocation3 [shape = 's32[1]{0}', space=sflag, size = 0x4, scoped, tag = 'scoped memory for stn3d_forward.3']
    %13 = vsyncpa [#allocation3], 0
    // Predicated region
    $region2: #{stn3d_forward.3} parent=1 // pred_check
      _
    $region3: #{stn3d_forward.3} parent=1 // pred_check_branch
      %15 = sbr.rel (0) target = $region5
    $region4: #{stn3d_forward.3} parent=1 // pred_region
      _
    $region5: #{stn3d_forward.3} parent=1 // pred_fallthru
      _
    // Predicated region
    $region6: #{stn3d_forward.3} parent=1 // pred_check
      _
    $region7: #{stn3d_forward.3} parent=1 // pred_check_branch
      %17 = sbr.rel (0) target = $region9
    $region8: #{stn3d_forward.3} parent=1 // pred_region
      _
    $region9: #{stn3d_forward.3} parent=1 // pred_fallthru
      _
    // Predicated region
    $region10: #{stn3d_forward.3} parent=1 // pred_check
      _
    $region11: #{stn3d_forward.3} parent=1 // pred_check_branch
      %19 = sbr.rel (0) target = $region13
    $region12: #{stn3d_forward.3} parent=1 // pred_region
      %s21 = ssub.s32 32768, 32768
      %22 = vsyncadd [#allocation3], %s21
      %s23 = sshll.u32 [#allocation2], 4
      %s24 = int_to_ptr.vmem [resolvable:$true] %s23
      %29 = dma.hbm_to_vmem [thread:$0]  %s2, 32768, %s24, [#allocation3], 256, 256, 16
    $region13: #{stn3d_forward.3} parent=1 // pred_fallthru
      _
    // Predicated region
    $region14: #{stn3d_forward.3} parent=1 // pred_check
      _
    $region15: #{stn3d_forward.3} parent=1 // pred_check_branch
      %31 = sbr.rel (0) target = $region17
    $region16: #{stn3d_forward.3} parent=1 // pred_region
      _
    $region17: #{stn3d_forward.3} parent=1 // pred_fallthru
      _
    // Predicated region
    $region18: #{stn3d_forward.3} parent=1 // pred_check
      _
    $region19: #{stn3d_forward.3} parent=1 // pred_check_branch
      %33 = sbr.rel (0) target = $region21
    $region20: #{stn3d_forward.3} parent=1 // pred_region
      _
    $region21: #{stn3d_forward.3} parent=1 // pred_fallthru
      _
    // Predicated region
    $region22: #{stn3d_forward.3} parent=1 // pred_check
      _
    $region23: #{stn3d_forward.3} parent=1 // pred_check_branch
      %35 = sbr.rel (0) target = $region25
    $region24: #{stn3d_forward.3} parent=1 // pred_region
      _
    $region25: #{stn3d_forward.3} parent=1 // pred_fallthru
      _
    // Predicated region
    $region26: #{stn3d_forward.3} parent=1 // pred_check
      _
    $region27: #{stn3d_forward.3} parent=1 // pred_check_branch
      %37 = sbr.rel (0) target = $region29
    $region28: #{stn3d_forward.3} parent=1 // pred_region
      _
    $region29: #{stn3d_forward.3} parent=1 // pred_fallthru
      _
    // Predicated region
    $region30: #{stn3d_forward.3} parent=1 // pred_check
      _
    $region31: #{stn3d_forward.3} parent=1 // pred_check_branch
      %39 = sbr.rel (0) target = $region33
    $region32: #{stn3d_forward.3} parent=1 // pred_region
      _
    $region33: #{stn3d_forward.3} parent=1 // pred_fallthru
      _
    // Predicated region
    $region34: #{stn3d_forward.3} parent=1 // pred_check
      _
    $region35: #{stn3d_forward.3} parent=1 // pred_check_branch
      %41 = sbr.rel (0) target = $region37
    $region36: #{stn3d_forward.3} parent=1 // pred_region
      %42 = dma.done [#allocation3], 32768
    $region37: #{stn3d_forward.3} parent=1 // pred_fallthru
      _
    %v44 = vld [vmem:[%s0] sm:$0xff]
    %v45 = vld [vmem:[%s0 + $0x8] sm:$0xff]
    %v46 = vld [vmem:[%s1] sm:$0xff]
    %v48 = vlaneseq
    %v49 = vshrl.u32 %v48, 7
    %v50 = vsub.s32 0, %v49
    %v51 = vrot.slane %v46, %v50
    %v52 = vlaneseq
    %v53 = vshrl.u32 %v52, 7
    %v54 = vsub.s32 1, %v53
    %v55 = vrot.slane %v46, %v54
    %v56 = vlaneseq
    %v57 = vshrl.u32 %v56, 7
    %v58 = vsub.s32 2, %v57
    %v59 = vrot.slane %v46, %v58
    %v60 = vlaneseq
    %v61 = vshrl.u32 %v60, 7
    %v62 = vsub.s32 3, %v61
    %v63 = vrot.slane %v46, %v62
    %v64 = vlaneseq
    %v65 = vshrl.u32 %v64, 7
    %v66 = vsub.s32 4, %v65
    %v67 = vrot.slane %v46, %v66
    %v68 = vlaneseq
    %v69 = vshrl.u32 %v68, 7
    %v70 = vsub.s32 5, %v69
    %v71 = vrot.slane %v46, %v70
    %v72 = vlaneseq
    %v73 = vshrl.u32 %v72, 7
    %v74 = vsub.s32 6, %v73
    %v75 = vrot.slane %v46, %v74
    %v76 = vlaneseq
    %v77 = vshrl.u32 %v76, 7
    %v78 = vsub.s32 7, %v77
    %v79 = vrot.slane %v46, %v78
    %v80 = vcombine.low %v51, %v55
    %v81 = vcombine.low %v59, %v63
    %v83 = vunpack.c.l.s4 1983009808
    %v84 = vunpack.c.0.s8 %v83
    %v85 = vlaneseq
    %v86 = vshrl.u32 %v85, 7
    %v87 = vsub.s32 %v84, %v86
    %v88 = vrot.slane %v80, %v87
    %v90 = vunpack.c.l.s4 1983009808
    %v91 = vunpack.c.0.s8 %v90
    %v92 = vlaneseq
    %v93 = vshrl.u32 %v92, 7
    %v94 = vsub.s32 %v91, %v93
    %v95 = vrot.slane %v81, %v94
    %v96 = vcombine.low %v88, %v95
    %v97 = vcombine.low %v67, %v71
    %v98 = vcombine.low %v75, %v79
    %v100 = vunpack.c.l.s4 1983009808
    %v101 = vunpack.c.0.s8 %v100
    %v102 = vlaneseq
    %v103 = vshrl.u32 %v102, 7
    %v104 = vsub.s32 %v101, %v103
    %v105 = vrot.slane %v97, %v104
    %v107 = vunpack.c.l.s4 1983009808
    %v108 = vunpack.c.0.s8 %v107
    %v109 = vlaneseq
    %v110 = vshrl.u32 %v109, 7
    %v111 = vsub.s32 %v108, %v110
    %v112 = vrot.slane %v98, %v111
    %v113 = vcombine.low %v105, %v112
    %v116 = vadd.f32 %v44, %v96
    %v117 = vadd.f32 %v45, %v113
    %v118 = vmax.f32 %v116, 0.0
    %v119 = vmax.f32 %v117, 0.0
    %v122 = vcombine.high %v118, %v118
    %v124 = vunpack.c.l.s4 1983009808
    %v125 = vunpack.c.0.s8 %v124
    %v126 = vlaneseq
    %v127 = vshrl.u32 %v126, 7
    %v128 = vsub.s32 %v125, %v127
    %v129 = vrot.slane %v118, %v128
    %v131 = vunpack.c.l.s4 1983009808
    %v132 = vunpack.c.0.s8 %v131
    %v133 = vlaneseq
    %v134 = vshrl.u32 %v133, 7
    %v135 = vsub.s32 %v132, %v134
    %v136 = vrot.slane %v122, %v135
    %v137 = vcombine.high %v129, %v129
    %v138 = vcombine.high %v136, %v136
    %v139 = vcombine.high %v119, %v119
    %v141 = vunpack.c.l.s4 1983009808
    %v142 = vunpack.c.0.s8 %v141
    %v143 = vlaneseq
    %v144 = vshrl.u32 %v143, 7
    %v145 = vsub.s32 %v142, %v144
    %v146 = vrot.slane %v119, %v145
    %v148 = vunpack.c.l.s4 1983009808
    %v149 = vunpack.c.0.s8 %v148
    %v150 = vlaneseq
    %v151 = vshrl.u32 %v150, 7
    %v152 = vsub.s32 %v149, %v151
    %v153 = vrot.slane %v139, %v152
    %v154 = vcombine.high %v146, %v146
    %v155 = vcombine.high %v153, %v153
    %v164 = vpack.c.bf16 %v129, %v129
    %v165 = vpack.c.bf16 %v137, %v137
    %v166 = vpack.c.bf16 %v136, %v136
    %v167 = vpack.c.bf16 %v138, %v138
    %v168 = vpack.c.bf16 %v146, %v146
    %v169 = vpack.c.bf16 %v154, %v154
    %v170 = vpack.c.bf16 %v153, %v153
    %v171 = vpack.c.bf16 %v155, %v155
    %v172 = vld [vmem:[#allocation2] sm:$0xff]
    %v173 = vld [vmem:[#allocation2 + $0x8] sm:$0xff]
    %v174 = vld [vmem:[#allocation2 + $0x10] sm:$0xff]
    %v175 = vld [vmem:[#allocation2 + $0x18] sm:$0xff]
    %v176 = vld [vmem:[#allocation2 + $0x20] sm:$0xff]
    %v177 = vld [vmem:[#allocation2 + $0x28] sm:$0xff]
    %v178 = vld [vmem:[#allocation2 + $0x30] sm:$0xff]
    %v179 = vld [vmem:[#allocation2 + $0x38] sm:$0xff]
    %v180 = vld [vmem:[#allocation2 + $0x40] sm:$0xff]
    %v181 = vld [vmem:[#allocation2 + $0x48] sm:$0xff]
    %v182 = vld [vmem:[#allocation2 + $0x50] sm:$0xff]
    %v183 = vld [vmem:[#allocation2 + $0x58] sm:$0xff]
    %v184 = vld [vmem:[#allocation2 + $0x60] sm:$0xff]
    %v185 = vld [vmem:[#allocation2 + $0x68] sm:$0xff]
    %v186 = vld [vmem:[#allocation2 + $0x70] sm:$0xff]
    %v187 = vld [vmem:[#allocation2 + $0x78] sm:$0xff]
    %v188 = vld [vmem:[#allocation2 + $0x80] sm:$0xff]
    %v189 = vld [vmem:[#allocation2 + $0x88] sm:$0xff]
    %v190 = vld [vmem:[#allocation2 + $0x90] sm:$0xff]
    %v191 = vld [vmem:[#allocation2 + $0x98] sm:$0xff]
    %v192 = vld [vmem:[#allocation2 + $0xa0] sm:$0xff]
    %v193 = vld [vmem:[#allocation2 + $0xa8] sm:$0xff]
    %v194 = vld [vmem:[#allocation2 + $0xb0] sm:$0xff]
    %v195 = vld [vmem:[#allocation2 + $0xb8] sm:$0xff]
    %v196 = vld [vmem:[#allocation2 + $0xc0] sm:$0xff]
    %v197 = vld [vmem:[#allocation2 + $0xc8] sm:$0xff]
    %v198 = vld [vmem:[#allocation2 + $0xd0] sm:$0xff]
    %v199 = vld [vmem:[#allocation2 + $0xd8] sm:$0xff]
    %v200 = vld [vmem:[#allocation2 + $0xe0] sm:$0xff]
    %v201 = vld [vmem:[#allocation2 + $0xe8] sm:$0xff]
    %v202 = vld [vmem:[#allocation2 + $0xf0] sm:$0xff]
    %v203 = vld [vmem:[#allocation2 + $0xf8] sm:$0xff]
    %v204 = vld [vmem:[#allocation2 + $0x100] sm:$0xff]
    %v205 = vld [vmem:[#allocation2 + $0x108] sm:$0xff]
    %v206 = vld [vmem:[#allocation2 + $0x110] sm:$0xff]
    %v207 = vld [vmem:[#allocation2 + $0x118] sm:$0xff]
    %v208 = vld [vmem:[#allocation2 + $0x120] sm:$0xff]
    %v209 = vld [vmem:[#allocation2 + $0x128] sm:$0xff]
    %v210 = vld [vmem:[#allocation2 + $0x130] sm:$0xff]
    %v211 = vld [vmem:[#allocation2 + $0x138] sm:$0xff]
    %v212 = vld [vmem:[#allocation2 + $0x140] sm:$0xff]
    %v213 = vld [vmem:[#allocation2 + $0x148] sm:$0xff]
    %v214 = vld [vmem:[#allocation2 + $0x150] sm:$0xff]
    %v215 = vld [vmem:[#allocation2 + $0x158] sm:$0xff]
    %v216 = vld [vmem:[#allocation2 + $0x160] sm:$0xff]
    %v217 = vld [vmem:[#allocation2 + $0x168] sm:$0xff]
    %v218 = vld [vmem:[#allocation2 + $0x170] sm:$0xff]
    %v219 = vld [vmem:[#allocation2 + $0x178] sm:$0xff]
    %v220 = vld [vmem:[#allocation2 + $0x180] sm:$0xff]
    %v221 = vld [vmem:[#allocation2 + $0x188] sm:$0xff]
    %v222 = vld [vmem:[#allocation2 + $0x190] sm:$0xff]
    %v223 = vld [vmem:[#allocation2 + $0x198] sm:$0xff]
    %v224 = vld [vmem:[#allocation2 + $0x1a0] sm:$0xff]
    %v225 = vld [vmem:[#allocation2 + $0x1a8] sm:$0xff]
    %v226 = vld [vmem:[#allocation2 + $0x1b0] sm:$0xff]
    %v227 = vld [vmem:[#allocation2 + $0x1b8] sm:$0xff]
    %v228 = vld [vmem:[#allocation2 + $0x1c0] sm:$0xff]
    %v229 = vld [vmem:[#allocation2 + $0x1c8] sm:$0xff]
    %v230 = vld [vmem:[#allocation2 + $0x1d0] sm:$0xff]
    %v231 = vld [vmem:[#allocation2 + $0x1d8] sm:$0xff]
    %v232 = vld [vmem:[#allocation2 + $0x1e0] sm:$0xff]
    %v233 = vld [vmem:[#allocation2 + $0x1e8] sm:$0xff]
    %v234 = vld [vmem:[#allocation2 + $0x1f0] sm:$0xff]
    %v235 = vld [vmem:[#allocation2 + $0x1f8] sm:$0xff]
    %v236 = vld [vmem:[#allocation2 + $0x200] sm:$0xff]
    %v237 = vld [vmem:[#allocation2 + $0x208] sm:$0xff]
    %v238 = vld [vmem:[#allocation2 + $0x210] sm:$0xff]
    %v239 = vld [vmem:[#allocation2 + $0x218] sm:$0xff]
    %v240 = vld [vmem:[#allocation2 + $0x220] sm:$0xff]
    %v241 = vld [vmem:[#allocation2 + $0x228] sm:$0xff]
    %v242 = vld [vmem:[#allocation2 + $0x230] sm:$0xff]
    %v243 = vld [vmem:[#allocation2 + $0x238] sm:$0xff]
    %v244 = vld [vmem:[#allocation2 + $0x240] sm:$0xff]
    %v245 = vld [vmem:[#allocation2 + $0x248] sm:$0xff]
    %v246 = vld [vmem:[#allocation2 + $0x250] sm:$0xff]
    %v247 = vld [vmem:[#allocation2 + $0x258] sm:$0xff]
    %v248 = vld [vmem:[#allocation2 + $0x260] sm:$0xff]
    %v249 = vld [vmem:[#allocation2 + $0x268] sm:$0xff]
    %v250 = vld [vmem:[#allocation2 + $0x270] sm:$0xff]
    %v251 = vld [vmem:[#allocation2 + $0x278] sm:$0xff]
    %v252 = vld [vmem:[#allocation2 + $0x280] sm:$0xff]
    %v253 = vld [vmem:[#allocation2 + $0x288] sm:$0xff]
    %v254 = vld [vmem:[#allocation2 + $0x290] sm:$0xff]
    %v255 = vld [vmem:[#allocation2 + $0x298] sm:$0xff]
    %v256 = vld [vmem:[#allocation2 + $0x2a0] sm:$0xff]
    %v257 = vld [vmem:[#allocation2 + $0x2a8] sm:$0xff]
    %v258 = vld [vmem:[#allocation2 + $0x2b0] sm:$0xff]
    %v259 = vld [vmem:[#allocation2 + $0x2b8] sm:$0xff]
    %v260 = vld [vmem:[#allocation2 + $0x2c0] sm:$0xff]
    %v261 = vld [vmem:[#allocation2 + $0x2c8] sm:$0xff]
    %v262 = vld [vmem:[#allocation2 + $0x2d0] sm:$0xff]
    %v263 = vld [vmem:[#allocation2 + $0x2d8] sm:$0xff]
    %v264 = vld [vmem:[#allocation2 + $0x2e0] sm:$0xff]
    %v265 = vld [vmem:[#allocation2 + $0x2e8] sm:$0xff]
    %v266 = vld [vmem:[#allocation2 + $0x2f0] sm:$0xff]
    %v267 = vld [vmem:[#allocation2 + $0x2f8] sm:$0xff]
    %v268 = vld [vmem:[#allocation2 + $0x300] sm:$0xff]
    %v269 = vld [vmem:[#allocation2 + $0x308] sm:$0xff]
    %v270 = vld [vmem:[#allocation2 + $0x310] sm:$0xff]
    %v271 = vld [vmem:[#allocation2 + $0x318] sm:$0xff]
    %v272 = vld [vmem:[#allocation2 + $0x320] sm:$0xff]
    %v273 = vld [vmem:[#allocation2 + $0x328] sm:$0xff]
    %v274 = vld [vmem:[#allocation2 + $0x330] sm:$0xff]
    %v275 = vld [vmem:[#allocation2 + $0x338] sm:$0xff]
    %v276 = vld [vmem:[#allocation2 + $0x340] sm:$0xff]
    %v277 = vld [vmem:[#allocation2 + $0x348] sm:$0xff]
    %v278 = vld [vmem:[#allocation2 + $0x350] sm:$0xff]
    %v279 = vld [vmem:[#allocation2 + $0x358] sm:$0xff]
    %v280 = vld [vmem:[#allocation2 + $0x360] sm:$0xff]
    %v281 = vld [vmem:[#allocation2 + $0x368] sm:$0xff]
    %v282 = vld [vmem:[#allocation2 + $0x370] sm:$0xff]
    %v283 = vld [vmem:[#allocation2 + $0x378] sm:$0xff]
    %v284 = vld [vmem:[#allocation2 + $0x380] sm:$0xff]
    %v285 = vld [vmem:[#allocation2 + $0x388] sm:$0xff]
    %v286 = vld [vmem:[#allocation2 + $0x390] sm:$0xff]
    %v287 = vld [vmem:[#allocation2 + $0x398] sm:$0xff]
    %v288 = vld [vmem:[#allocation2 + $0x3a0] sm:$0xff]
    %v289 = vld [vmem:[#allocation2 + $0x3a8] sm:$0xff]
    %v290 = vld [vmem:[#allocation2 + $0x3b0] sm:$0xff]
    %v291 = vld [vmem:[#allocation2 + $0x3b8] sm:$0xff]
    %v292 = vld [vmem:[#allocation2 + $0x3c0] sm:$0xff]
    %v293 = vld [vmem:[#allocation2 + $0x3c8] sm:$0xff]
    %v294 = vld [vmem:[#allocation2 + $0x3d0] sm:$0xff]
    %v295 = vld [vmem:[#allocation2 + $0x3d8] sm:$0xff]
    %v296 = vld [vmem:[#allocation2 + $0x3e0] sm:$0xff]
    %v297 = vld [vmem:[#allocation2 + $0x3e8] sm:$0xff]
    %v298 = vld [vmem:[#allocation2 + $0x3f0] sm:$0xff]
    %v299 = vld [vmem:[#allocation2 + $0x3f8] sm:$0xff]
    %v300 = vld [vmem:[#allocation2 + $0x400] sm:$0xff]
    %v301 = vld [vmem:[#allocation2 + $0x408] sm:$0xff]
    %v302 = vld [vmem:[#allocation2 + $0x410] sm:$0xff]
    %v303 = vld [vmem:[#allocation2 + $0x418] sm:$0xff]
    %v304 = vld [vmem:[#allocation2 + $0x420] sm:$0xff]
    %v305 = vld [vmem:[#allocation2 + $0x428] sm:$0xff]
    %v306 = vld [vmem:[#allocation2 + $0x430] sm:$0xff]
    %v307 = vld [vmem:[#allocation2 + $0x438] sm:$0xff]
    %v308 = vld [vmem:[#allocation2 + $0x440] sm:$0xff]
    %v309 = vld [vmem:[#allocation2 + $0x448] sm:$0xff]
    %v310 = vld [vmem:[#allocation2 + $0x450] sm:$0xff]
    %v311 = vld [vmem:[#allocation2 + $0x458] sm:$0xff]
    %v312 = vld [vmem:[#allocation2 + $0x460] sm:$0xff]
    %v313 = vld [vmem:[#allocation2 + $0x468] sm:$0xff]
    %v314 = vld [vmem:[#allocation2 + $0x470] sm:$0xff]
    %v315 = vld [vmem:[#allocation2 + $0x478] sm:$0xff]
    %v316 = vld [vmem:[#allocation2 + $0x480] sm:$0xff]
    %v317 = vld [vmem:[#allocation2 + $0x488] sm:$0xff]
    %v318 = vld [vmem:[#allocation2 + $0x490] sm:$0xff]
    %v319 = vld [vmem:[#allocation2 + $0x498] sm:$0xff]
    %v320 = vld [vmem:[#allocation2 + $0x4a0] sm:$0xff]
    %v321 = vld [vmem:[#allocation2 + $0x4a8] sm:$0xff]
    %v322 = vld [vmem:[#allocation2 + $0x4b0] sm:$0xff]
    %v323 = vld [vmem:[#allocation2 + $0x4b8] sm:$0xff]
    %v324 = vld [vmem:[#allocation2 + $0x4c0] sm:$0xff]
    %v325 = vld [vmem:[#allocation2 + $0x4c8] sm:$0xff]
    %v326 = vld [vmem:[#allocation2 + $0x4d0] sm:$0xff]
    %v327 = vld [vmem:[#allocation2 + $0x4d8] sm:$0xff]
    %v328 = vld [vmem:[#allocation2 + $0x4e0] sm:$0xff]
    %v329 = vld [vmem:[#allocation2 + $0x4e8] sm:$0xff]
    %v330 = vld [vmem:[#allocation2 + $0x4f0] sm:$0xff]
    %v331 = vld [vmem:[#allocation2 + $0x4f8] sm:$0xff]
    %v332 = vld [vmem:[#allocation2 + $0x500] sm:$0xff]
    %v333 = vld [vmem:[#allocation2 + $0x508] sm:$0xff]
    %v334 = vld [vmem:[#allocation2 + $0x510] sm:$0xff]
    %v335 = vld [vmem:[#allocation2 + $0x518] sm:$0xff]
    %v336 = vld [vmem:[#allocation2 + $0x520] sm:$0xff]
    %v337 = vld [vmem:[#allocation2 + $0x528] sm:$0xff]
    %v338 = vld [vmem:[#allocation2 + $0x530] sm:$0xff]
    %v339 = vld [vmem:[#allocation2 + $0x538] sm:$0xff]
    %v340 = vld [vmem:[#allocation2 + $0x540] sm:$0xff]
    %v341 = vld [vmem:[#allocation2 + $0x548] sm:$0xff]
    %v342 = vld [vmem:[#allocation2 + $0x550] sm:$0xff]
    %v343 = vld [vmem:[#allocation2 + $0x558] sm:$0xff]
    %v344 = vld [vmem:[#allocation2 + $0x560] sm:$0xff]
    %v345 = vld [vmem:[#allocation2 + $0x568] sm:$0xff]
    %v346 = vld [vmem:[#allocation2 + $0x570] sm:$0xff]
    %v347 = vld [vmem:[#allocation2 + $0x578] sm:$0xff]
    %v348 = vld [vmem:[#allocation2 + $0x580] sm:$0xff]
    %v349 = vld [vmem:[#allocation2 + $0x588] sm:$0xff]
    %v350 = vld [vmem:[#allocation2 + $0x590] sm:$0xff]
    %v351 = vld [vmem:[#allocation2 + $0x598] sm:$0xff]
    %v352 = vld [vmem:[#allocation2 + $0x5a0] sm:$0xff]
    %v353 = vld [vmem:[#allocation2 + $0x5a8] sm:$0xff]
    %v354 = vld [vmem:[#allocation2 + $0x5b0] sm:$0xff]
    %v355 = vld [vmem:[#allocation2 + $0x5b8] sm:$0xff]
    %v356 = vld [vmem:[#allocation2 + $0x5c0] sm:$0xff]
    %v357 = vld [vmem:[#allocation2 + $0x5c8] sm:$0xff]
    %v358 = vld [vmem:[#allocation2 + $0x5d0] sm:$0xff]
    %v359 = vld [vmem:[#allocation2 + $0x5d8] sm:$0xff]
    %v360 = vld [vmem:[#allocation2 + $0x5e0] sm:$0xff]
    %v361 = vld [vmem:[#allocation2 + $0x5e8] sm:$0xff]
    %v362 = vld [vmem:[#allocation2 + $0x5f0] sm:$0xff]
    %v363 = vld [vmem:[#allocation2 + $0x5f8] sm:$0xff]
    %v364 = vld [vmem:[#allocation2 + $0x600] sm:$0xff]
    %v365 = vld [vmem:[#allocation2 + $0x608] sm:$0xff]
    %v366 = vld [vmem:[#allocation2 + $0x610] sm:$0xff]
    %v367 = vld [vmem:[#allocation2 + $0x618] sm:$0xff]
    %v368 = vld [vmem:[#allocation2 + $0x620] sm:$0xff]
    %v369 = vld [vmem:[#allocation2 + $0x628] sm:$0xff]
    %v370 = vld [vmem:[#allocation2 + $0x630] sm:$0xff]
    %v371 = vld [vmem:[#allocation2 + $0x638] sm:$0xff]
    %v372 = vld [vmem:[#allocation2 + $0x640] sm:$0xff]
    %v373 = vld [vmem:[#allocation2 + $0x648] sm:$0xff]
    %v374 = vld [vmem:[#allocation2 + $0x650] sm:$0xff]
    %v375 = vld [vmem:[#allocation2 + $0x658] sm:$0xff]
    %v376 = vld [vmem:[#allocation2 + $0x660] sm:$0xff]
    %v377 = vld [vmem:[#allocation2 + $0x668] sm:$0xff]
    %v378 = vld [vmem:[#allocation2 + $0x670] sm:$0xff]
    %v379 = vld [vmem:[#allocation2 + $0x678] sm:$0xff]
    %v380 = vld [vmem:[#allocation2 + $0x680] sm:$0xff]
    %v381 = vld [vmem:[#allocation2 + $0x688] sm:$0xff]
    %v382 = vld [vmem:[#allocation2 + $0x690] sm:$0xff]
    %v383 = vld [vmem:[#allocation2 + $0x698] sm:$0xff]
    %v384 = vld [vmem:[#allocation2 + $0x6a0] sm:$0xff]
    %v385 = vld [vmem:[#allocation2 + $0x6a8] sm:$0xff]
    %v386 = vld [vmem:[#allocation2 + $0x6b0] sm:$0xff]
    %v387 = vld [vmem:[#allocation2 + $0x6b8] sm:$0xff]
    %v388 = vld [vmem:[#allocation2 + $0x6c0] sm:$0xff]
    %v389 = vld [vmem:[#allocation2 + $0x6c8] sm:$0xff]
    %v390 = vld [vmem:[#allocation2 + $0x6d0] sm:$0xff]
    %v391 = vld [vmem:[#allocation2 + $0x6d8] sm:$0xff]
    %v392 = vld [vmem:[#allocation2 + $0x6e0] sm:$0xff]
    %v393 = vld [vmem:[#allocation2 + $0x6e8] sm:$0xff]
    %v394 = vld [vmem:[#allocation2 + $0x6f0] sm:$0xff]
    %v395 = vld [vmem:[#allocation2 + $0x6f8] sm:$0xff]
    %v396 = vld [vmem:[#allocation2 + $0x700] sm:$0xff]
    %v397 = vld [vmem:[#allocation2 + $0x708] sm:$0xff]
    %v398 = vld [vmem:[#allocation2 + $0x710] sm:$0xff]
    %v399 = vld [vmem:[#allocation2 + $0x718] sm:$0xff]
    %v400 = vld [vmem:[#allocation2 + $0x720] sm:$0xff]
    %v401 = vld [vmem:[#allocation2 + $0x728] sm:$0xff]
    %v402 = vld [vmem:[#allocation2 + $0x730] sm:$0xff]
    %v403 = vld [vmem:[#allocation2 + $0x738] sm:$0xff]
    %v404 = vld [vmem:[#allocation2 + $0x740] sm:$0xff]
    %v405 = vld [vmem:[#allocation2 + $0x748] sm:$0xff]
    %v406 = vld [vmem:[#allocation2 + $0x750] sm:$0xff]
    %v407 = vld [vmem:[#allocation2 + $0x758] sm:$0xff]
    %v408 = vld [vmem:[#allocation2 + $0x760] sm:$0xff]
    %v409 = vld [vmem:[#allocation2 + $0x768] sm:$0xff]
    %v410 = vld [vmem:[#allocation2 + $0x770] sm:$0xff]
    %v411 = vld [vmem:[#allocation2 + $0x778] sm:$0xff]
    %v412 = vld [vmem:[#allocation2 + $0x780] sm:$0xff]
    %v413 = vld [vmem:[#allocation2 + $0x788] sm:$0xff]
    %v414 = vld [vmem:[#allocation2 + $0x790] sm:$0xff]
    %v415 = vld [vmem:[#allocation2 + $0x798] sm:$0xff]
    %v416 = vld [vmem:[#allocation2 + $0x7a0] sm:$0xff]
    %v417 = vld [vmem:[#allocation2 + $0x7a8] sm:$0xff]
    %v418 = vld [vmem:[#allocation2 + $0x7b0] sm:$0xff]
    %v419 = vld [vmem:[#allocation2 + $0x7b8] sm:$0xff]
    %v420 = vld [vmem:[#allocation2 + $0x7c0] sm:$0xff]
    %v421 = vld [vmem:[#allocation2 + $0x7c8] sm:$0xff]
    %v422 = vld [vmem:[#allocation2 + $0x7d0] sm:$0xff]
    %v423 = vld [vmem:[#allocation2 + $0x7d8] sm:$0xff]
    %v424 = vld [vmem:[#allocation2 + $0x7e0] sm:$0xff]
    %v425 = vld [vmem:[#allocation2 + $0x7e8] sm:$0xff]
    %v426 = vld [vmem:[#allocation2 + $0x7f0] sm:$0xff]
    %v427 = vld [vmem:[#allocation2 + $0x7f8] sm:$0xff]
    %v428 = vld [vmem:[%s3] sm:$0xf]
    %v430 = vlaneseq
    %v431 = vshrl.u32 %v430, 7
    %v432 = vsub.s32 0, %v431
    %v433 = vrot.slane %v428, %v432
    %v434 = vlaneseq
    %v435 = vshrl.u32 %v434, 7
    %v436 = vsub.s32 1, %v435
    %v437 = vrot.slane %v428, %v436
    %v438 = vlaneseq
    %v439 = vshrl.u32 %v438, 7
    %v440 = vsub.s32 2, %v439
    %v441 = vrot.slane %v428, %v440
    %v442 = vlaneseq
    %v443 = vshrl.u32 %v442, 7
    %v444 = vsub.s32 3, %v443
    %v445 = vrot.slane %v428, %v444
    %v706 = vunpack.c.l.b16 %v172
    %v707 = vunpack.c.h.b16 %v172
    %v708 = vunpack.c.l.b16 %v173
    %v709 = vunpack.c.h.b16 %v173
    %v710 = vunpack.c.l.b16 %v174
    %v711 = vunpack.c.h.b16 %v174
    %v712 = vunpack.c.l.b16 %v175
    %v713 = vunpack.c.h.b16 %v175
    %v714 = vunpack.c.l.b16 %v176
    %v715 = vunpack.c.h.b16 %v176
    %v716 = vunpack.c.l.b16 %v177
    %v717 = vunpack.c.h.b16 %v177
    %v718 = vunpack.c.l.b16 %v178
    %v719 = vunpack.c.h.b16 %v178
    %v720 = vunpack.c.l.b16 %v179
    %v721 = vunpack.c.h.b16 %v179
    %v722 = vunpack.c.l.b16 %v180
    %v723 = vunpack.c.h.b16 %v180
    %v724 = vunpack.c.l.b16 %v181
    %v725 = vunpack.c.h.b16 %v181
    %v726 = vunpack.c.l.b16 %v182
    %v727 = vunpack.c.h.b16 %v182
    %v728 = vunpack.c.l.b16 %v183
    %v729 = vunpack.c.h.b16 %v183
    %v730 = vunpack.c.l.b16 %v184
    %v731 = vunpack.c.h.b16 %v184
    %v732 = vunpack.c.l.b16 %v185
    %v733 = vunpack.c.h.b16 %v185
    %v734 = vunpack.c.l.b16 %v186
    %v735 = vunpack.c.h.b16 %v186
    %v736 = vunpack.c.l.b16 %v187
    %v737 = vunpack.c.h.b16 %v187
    %v738 = vunpack.c.l.b16 %v188
    %v739 = vunpack.c.h.b16 %v188
    %v740 = vunpack.c.l.b16 %v189
    %v741 = vunpack.c.h.b16 %v189
    %v742 = vunpack.c.l.b16 %v190
    %v743 = vunpack.c.h.b16 %v190
    %v744 = vunpack.c.l.b16 %v191
    %v745 = vunpack.c.h.b16 %v191
    %v746 = vunpack.c.l.b16 %v192
    %v747 = vunpack.c.h.b16 %v192
    %v748 = vunpack.c.l.b16 %v193
    %v749 = vunpack.c.h.b16 %v193
    %v750 = vunpack.c.l.b16 %v194
    %v751 = vunpack.c.h.b16 %v194
    %v752 = vunpack.c.l.b16 %v195
    %v753 = vunpack.c.h.b16 %v195
    %v754 = vunpack.c.l.b16 %v196
    %v755 = vunpack.c.h.b16 %v196
    %v756 = vunpack.c.l.b16 %v197
    %v757 = vunpack.c.h.b16 %v197
    %v758 = vunpack.c.l.b16 %v198
    %v759 = vunpack.c.h.b16 %v198
    %v760 = vunpack.c.l.b16 %v199
    %v761 = vunpack.c.h.b16 %v199
    %v762 = vunpack.c.l.b16 %v200
    %v763 = vunpack.c.h.b16 %v200
    %v764 = vunpack.c.l.b16 %v201
    %v765 = vunpack.c.h.b16 %v201
    %v766 = vunpack.c.l.b16 %v202
    %v767 = vunpack.c.h.b16 %v202
    %v768 = vunpack.c.l.b16 %v203
    %v769 = vunpack.c.h.b16 %v203
    %v770 = vunpack.c.l.b16 %v204
    %v771 = vunpack.c.h.b16 %v204
    %v772 = vunpack.c.l.b16 %v205
    %v773 = vunpack.c.h.b16 %v205
    %v774 = vunpack.c.l.b16 %v206
    %v775 = vunpack.c.h.b16 %v206
    %v776 = vunpack.c.l.b16 %v207
    %v777 = vunpack.c.h.b16 %v207
    %v778 = vunpack.c.l.b16 %v208
    %v779 = vunpack.c.h.b16 %v208
    %v780 = vunpack.c.l.b16 %v209
    %v781 = vunpack.c.h.b16 %v209
    %v782 = vunpack.c.l.b16 %v210
    %v783 = vunpack.c.h.b16 %v210
    %v784 = vunpack.c.l.b16 %v211
    %v785 = vunpack.c.h.b16 %v211
    %v786 = vunpack.c.l.b16 %v212
    %v787 = vunpack.c.h.b16 %v212
    %v788 = vunpack.c.l.b16 %v213
    %v789 = vunpack.c.h.b16 %v213
    %v790 = vunpack.c.l.b16 %v214
    %v791 = vunpack.c.h.b16 %v214
    %v792 = vunpack.c.l.b16 %v215
    %v793 = vunpack.c.h.b16 %v215
    %v794 = vunpack.c.l.b16 %v216
    %v795 = vunpack.c.h.b16 %v216
    %v796 = vunpack.c.l.b16 %v217
    %v797 = vunpack.c.h.b16 %v217
    %v798 = vunpack.c.l.b16 %v218
    %v799 = vunpack.c.h.b16 %v218
    %v800 = vunpack.c.l.b16 %v219
    %v801 = vunpack.c.h.b16 %v219
    %v802 = vunpack.c.l.b16 %v220
    %v803 = vunpack.c.h.b16 %v220
    %v804 = vunpack.c.l.b16 %v221
    %v805 = vunpack.c.h.b16 %v221
    %v806 = vunpack.c.l.b16 %v222
    %v807 = vunpack.c.h.b16 %v222
    %v808 = vunpack.c.l.b16 %v223
    %v809 = vunpack.c.h.b16 %v223
    %v810 = vunpack.c.l.b16 %v224
    %v811 = vunpack.c.h.b16 %v224
    %v812 = vunpack.c.l.b16 %v225
    %v813 = vunpack.c.h.b16 %v225
    %v814 = vunpack.c.l.b16 %v226
    %v815 = vunpack.c.h.b16 %v226
    %v816 = vunpack.c.l.b16 %v227
    %v817 = vunpack.c.h.b16 %v227
    %v818 = vunpack.c.l.b16 %v228
    %v819 = vunpack.c.h.b16 %v228
    %v820 = vunpack.c.l.b16 %v229
    %v821 = vunpack.c.h.b16 %v229
    %v822 = vunpack.c.l.b16 %v230
    %v823 = vunpack.c.h.b16 %v230
    %v824 = vunpack.c.l.b16 %v231
    %v825 = vunpack.c.h.b16 %v231
    %v826 = vunpack.c.l.b16 %v232
    %v827 = vunpack.c.h.b16 %v232
    %v828 = vunpack.c.l.b16 %v233
    %v829 = vunpack.c.h.b16 %v233
    %v830 = vunpack.c.l.b16 %v234
    %v831 = vunpack.c.h.b16 %v234
    %v832 = vunpack.c.l.b16 %v235
    %v833 = vunpack.c.h.b16 %v235
    %v834 = vunpack.c.l.b16 %v236
    %v835 = vunpack.c.h.b16 %v236
    %v836 = vunpack.c.l.b16 %v237
    %v837 = vunpack.c.h.b16 %v237
    %v838 = vunpack.c.l.b16 %v238
    %v839 = vunpack.c.h.b16 %v238
    %v840 = vunpack.c.l.b16 %v239
    %v841 = vunpack.c.h.b16 %v239
    %v842 = vunpack.c.l.b16 %v240
    %v843 = vunpack.c.h.b16 %v240
    %v844 = vunpack.c.l.b16 %v241
    %v845 = vunpack.c.h.b16 %v241
    %v846 = vunpack.c.l.b16 %v242
    %v847 = vunpack.c.h.b16 %v242
    %v848 = vunpack.c.l.b16 %v243
    %v849 = vunpack.c.h.b16 %v243
    %v850 = vunpack.c.l.b16 %v244
    %v851 = vunpack.c.h.b16 %v244
    %v852 = vunpack.c.l.b16 %v245
    %v853 = vunpack.c.h.b16 %v245
    %v854 = vunpack.c.l.b16 %v246
    %v855 = vunpack.c.h.b16 %v246
    %v856 = vunpack.c.l.b16 %v247
    %v857 = vunpack.c.h.b16 %v247
    %v858 = vunpack.c.l.b16 %v248
    %v859 = vunpack.c.h.b16 %v248
    %v860 = vunpack.c.l.b16 %v249
    %v861 = vunpack.c.h.b16 %v249
    %v862 = vunpack.c.l.b16 %v250
    %v863 = vunpack.c.h.b16 %v250
    %v864 = vunpack.c.l.b16 %v251
    %v865 = vunpack.c.h.b16 %v251
    %v866 = vunpack.c.l.b16 %v252
    %v867 = vunpack.c.h.b16 %v252
    %v868 = vunpack.c.l.b16 %v253
    %v869 = vunpack.c.h.b16 %v253
    %v870 = vunpack.c.l.b16 %v254
    %v871 = vunpack.c.h.b16 %v254
    %v872 = vunpack.c.l.b16 %v255
    %v873 = vunpack.c.h.b16 %v255
    %v874 = vunpack.c.l.b16 %v256
    %v875 = vunpack.c.h.b16 %v256
    %v876 = vunpack.c.l.b16 %v257
    %v877 = vunpack.c.h.b16 %v257
    %v878 = vunpack.c.l.b16 %v258
    %v879 = vunpack.c.h.b16 %v258
    %v880 = vunpack.c.l.b16 %v259
    %v881 = vunpack.c.h.b16 %v259
    %v882 = vunpack.c.l.b16 %v260
    %v883 = vunpack.c.h.b16 %v260
    %v884 = vunpack.c.l.b16 %v261
    %v885 = vunpack.c.h.b16 %v261
    %v886 = vunpack.c.l.b16 %v262
    %v887 = vunpack.c.h.b16 %v262
    %v888 = vunpack.c.l.b16 %v263
    %v889 = vunpack.c.h.b16 %v263
    %v890 = vunpack.c.l.b16 %v264
    %v891 = vunpack.c.h.b16 %v264
    %v892 = vunpack.c.l.b16 %v265
    %v893 = vunpack.c.h.b16 %v265
    %v894 = vunpack.c.l.b16 %v266
    %v895 = vunpack.c.h.b16 %v266
    %v896 = vunpack.c.l.b16 %v267
    %v897 = vunpack.c.h.b16 %v267
    %v898 = vunpack.c.l.b16 %v268
    %v899 = vunpack.c.h.b16 %v268
    %v900 = vunpack.c.l.b16 %v269
    %v901 = vunpack.c.h.b16 %v269
    %v902 = vunpack.c.l.b16 %v270
    %v903 = vunpack.c.h.b16 %v270
    %v904 = vunpack.c.l.b16 %v271
    %v905 = vunpack.c.h.b16 %v271
    %v906 = vunpack.c.l.b16 %v272
    %v907 = vunpack.c.h.b16 %v272
    %v908 = vunpack.c.l.b16 %v273
    %v909 = vunpack.c.h.b16 %v273
    %v910 = vunpack.c.l.b16 %v274
    %v911 = vunpack.c.h.b16 %v274
    %v912 = vunpack.c.l.b16 %v275
    %v913 = vunpack.c.h.b16 %v275
    %v914 = vunpack.c.l.b16 %v276
    %v915 = vunpack.c.h.b16 %v276
    %v916 = vunpack.c.l.b16 %v277
    %v917 = vunpack.c.h.b16 %v277
    %v918 = vunpack.c.l.b16 %v278
    %v919 = vunpack.c.h.b16 %v278
    %v920 = vunpack.c.l.b16 %v279
    %v921 = vunpack.c.h.b16 %v279
    %v922 = vunpack.c.l.b16 %v280
    %v923 = vunpack.c.h.b16 %v280
    %v924 = vunpack.c.l.b16 %v281
    %v925 = vunpack.c.h.b16 %v281
    %v926 = vunpack.c.l.b16 %v282
    %v927 = vunpack.c.h.b16 %v282
    %v928 = vunpack.c.l.b16 %v283
    %v929 = vunpack.c.h.b16 %v283
    %v930 = vunpack.c.l.b16 %v284
    %v931 = vunpack.c.h.b16 %v284
    %v932 = vunpack.c.l.b16 %v285
    %v933 = vunpack.c.h.b16 %v285
    %v934 = vunpack.c.l.b16 %v286
    %v935 = vunpack.c.h.b16 %v286
    %v936 = vunpack.c.l.b16 %v287
    %v937 = vunpack.c.h.b16 %v287
    %v938 = vunpack.c.l.b16 %v288
    %v939 = vunpack.c.h.b16 %v288
    %v940 = vunpack.c.l.b16 %v289
    %v941 = vunpack.c.h.b16 %v289
    %v942 = vunpack.c.l.b16 %v290
    %v943 = vunpack.c.h.b16 %v290
    %v944 = vunpack.c.l.b16 %v291
    %v945 = vunpack.c.h.b16 %v291
    %v946 = vunpack.c.l.b16 %v292
    %v947 = vunpack.c.h.b16 %v292
    %v948 = vunpack.c.l.b16 %v293
    %v949 = vunpack.c.h.b16 %v293
    %v950 = vunpack.c.l.b16 %v294
    %v951 = vunpack.c.h.b16 %v294
    %v952 = vunpack.c.l.b16 %v295
    %v953 = vunpack.c.h.b16 %v295
    %v954 = vunpack.c.l.b16 %v296
    %v955 = vunpack.c.h.b16 %v296
    %v956 = vunpack.c.l.b16 %v297
    %v957 = vunpack.c.h.b16 %v297
    %v958 = vunpack.c.l.b16 %v298
    %v959 = vunpack.c.h.b16 %v298
    %v960 = vunpack.c.l.b16 %v299
    %v961 = vunpack.c.h.b16 %v299
    %v962 = vunpack.c.l.b16 %v300
    %v963 = vunpack.c.h.b16 %v300
    %v964 = vunpack.c.l.b16 %v301
    %v965 = vunpack.c.h.b16 %v301
    %v966 = vunpack.c.l.b16 %v302
    %v967 = vunpack.c.h.b16 %v302
    %v968 = vunpack.c.l.b16 %v303
    %v969 = vunpack.c.h.b16 %v303
    %v970 = vunpack.c.l.b16 %v304
    %v971 = vunpack.c.h.b16 %v304
    %v972 = vunpack.c.l.b16 %v305
    %v973 = vunpack.c.h.b16 %v305
    %v974 = vunpack.c.l.b16 %v306
    %v975 = vunpack.c.h.b16 %v306
    %v976 = vunpack.c.l.b16 %v307
    %v977 = vunpack.c.h.b16 %v307
    %v978 = vunpack.c.l.b16 %v308
    %v979 = vunpack.c.h.b16 %v308
    %v980 = vunpack.c.l.b16 %v309
    %v981 = vunpack.c.h.b16 %v309
    %v982 = vunpack.c.l.b16 %v310
    %v983 = vunpack.c.h.b16 %v310
    %v984 = vunpack.c.l.b16 %v311
    %v985 = vunpack.c.h.b16 %v311
    %v986 = vunpack.c.l.b16 %v312
    %v987 = vunpack.c.h.b16 %v312
    %v988 = vunpack.c.l.b16 %v313
    %v989 = vunpack.c.h.b16 %v313
    %v990 = vunpack.c.l.b16 %v314
    %v991 = vunpack.c.h.b16 %v314
    %v992 = vunpack.c.l.b16 %v315
    %v993 = vunpack.c.h.b16 %v315
    %v994 = vunpack.c.l.b16 %v316
    %v995 = vunpack.c.h.b16 %v316
    %v996 = vunpack.c.l.b16 %v317
    %v997 = vunpack.c.h.b16 %v317
    %v998 = vunpack.c.l.b16 %v318
    %v999 = vunpack.c.h.b16 %v318
    %v1000 = vunpack.c.l.b16 %v319
    %v1001 = vunpack.c.h.b16 %v319
    %v1002 = vunpack.c.l.b16 %v320
    %v1003 = vunpack.c.h.b16 %v320
    %v1004 = vunpack.c.l.b16 %v321
    %v1005 = vunpack.c.h.b16 %v321
    %v1006 = vunpack.c.l.b16 %v322
    %v1007 = vunpack.c.h.b16 %v322
    %v1008 = vunpack.c.l.b16 %v323
    %v1009 = vunpack.c.h.b16 %v323
    %v1010 = vunpack.c.l.b16 %v324
    %v1011 = vunpack.c.h.b16 %v324
    %v1012 = vunpack.c.l.b16 %v325
    %v1013 = vunpack.c.h.b16 %v325
    %v1014 = vunpack.c.l.b16 %v326
    %v1015 = vunpack.c.h.b16 %v326
    %v1016 = vunpack.c.l.b16 %v327
    %v1017 = vunpack.c.h.b16 %v327
    %v1018 = vunpack.c.l.b16 %v328
    %v1019 = vunpack.c.h.b16 %v328
    %v1020 = vunpack.c.l.b16 %v329
    %v1021 = vunpack.c.h.b16 %v329
    %v1022 = vunpack.c.l.b16 %v330
    %v1023 = vunpack.c.h.b16 %v330
    %v1024 = vunpack.c.l.b16 %v331
    %v1025 = vunpack.c.h.b16 %v331
    %v1026 = vunpack.c.l.b16 %v332
    %v1027 = vunpack.c.h.b16 %v332
    %v1028 = vunpack.c.l.b16 %v333
    %v1029 = vunpack.c.h.b16 %v333
    %v1030 = vunpack.c.l.b16 %v334
    %v1031 = vunpack.c.h.b16 %v334
    %v1032 = vunpack.c.l.b16 %v335
    %v1033 = vunpack.c.h.b16 %v335
    %v1034 = vunpack.c.l.b16 %v336
    %v1035 = vunpack.c.h.b16 %v336
    %v1036 = vunpack.c.l.b16 %v337
    %v1037 = vunpack.c.h.b16 %v337
    %v1038 = vunpack.c.l.b16 %v338
    %v1039 = vunpack.c.h.b16 %v338
    %v1040 = vunpack.c.l.b16 %v339
    %v1041 = vunpack.c.h.b16 %v339
    %v1042 = vunpack.c.l.b16 %v340
    %v1043 = vunpack.c.h.b16 %v340
    %v1044 = vunpack.c.l.b16 %v341
    %v1045 = vunpack.c.h.b16 %v341
    %v1046 = vunpack.c.l.b16 %v342
    %v1047 = vunpack.c.h.b16 %v342
    %v1048 = vunpack.c.l.b16 %v343
    %v1049 = vunpack.c.h.b16 %v343
    %v1050 = vunpack.c.l.b16 %v344
    %v1051 = vunpack.c.h.b16 %v344
    %v1052 = vunpack.c.l.b16 %v345
    %v1053 = vunpack.c.h.b16 %v345
    %v1054 = vunpack.c.l.b16 %v346
    %v1055 = vunpack.c.h.b16 %v346
    %v1056 = vunpack.c.l.b16 %v347
    %v1057 = vunpack.c.h.b16 %v347
    %v1058 = vunpack.c.l.b16 %v348
    %v1059 = vunpack.c.h.b16 %v348
    %v1060 = vunpack.c.l.b16 %v349
    %v1061 = vunpack.c.h.b16 %v349
    %v1062 = vunpack.c.l.b16 %v350
    %v1063 = vunpack.c.h.b16 %v350
    %v1064 = vunpack.c.l.b16 %v351
    %v1065 = vunpack.c.h.b16 %v351
    %v1066 = vunpack.c.l.b16 %v352
    %v1067 = vunpack.c.h.b16 %v352
    %v1068 = vunpack.c.l.b16 %v353
    %v1069 = vunpack.c.h.b16 %v353
    %v1070 = vunpack.c.l.b16 %v354
    %v1071 = vunpack.c.h.b16 %v354
    %v1072 = vunpack.c.l.b16 %v355
    %v1073 = vunpack.c.h.b16 %v355
    %v1074 = vunpack.c.l.b16 %v356
    %v1075 = vunpack.c.h.b16 %v356
    %v1076 = vunpack.c.l.b16 %v357
    %v1077 = vunpack.c.h.b16 %v357
    %v1078 = vunpack.c.l.b16 %v358
    %v1079 = vunpack.c.h.b16 %v358
    %v1080 = vunpack.c.l.b16 %v359
    %v1081 = vunpack.c.h.b16 %v359
    %v1082 = vunpack.c.l.b16 %v360
    %v1083 = vunpack.c.h.b16 %v360
    %v1084 = vunpack.c.l.b16 %v361
    %v1085 = vunpack.c.h.b16 %v361
    %v1086 = vunpack.c.l.b16 %v362
    %v1087 = vunpack.c.h.b16 %v362
    %v1088 = vunpack.c.l.b16 %v363
    %v1089 = vunpack.c.h.b16 %v363
    %v1090 = vunpack.c.l.b16 %v364
    %v1091 = vunpack.c.h.b16 %v364
    %v1092 = vunpack.c.l.b16 %v365
    %v1093 = vunpack.c.h.b16 %v365
    %v1094 = vunpack.c.l.b16 %v366
    %v1095 = vunpack.c.h.b16 %v366
    %v1096 = vunpack.c.l.b16 %v367
    %v1097 = vunpack.c.h.b16 %v367
    %v1098 = vunpack.c.l.b16 %v368
    %v1099 = vunpack.c.h.b16 %v368
    %v1100 = vunpack.c.l.b16 %v369
    %v1101 = vunpack.c.h.b16 %v369
    %v1102 = vunpack.c.l.b16 %v370
    %v1103 = vunpack.c.h.b16 %v370
    %v1104 = vunpack.c.l.b16 %v371
    %v1105 = vunpack.c.h.b16 %v371
    %v1106 = vunpack.c.l.b16 %v372
    %v1107 = vunpack.c.h.b16 %v372
    %v1108 = vunpack.c.l.b16 %v373
    %v1109 = vunpack.c.h.b16 %v373
    %v1110 = vunpack.c.l.b16 %v374
    %v1111 = vunpack.c.h.b16 %v374
    %v1112 = vunpack.c.l.b16 %v375
    %v1113 = vunpack.c.h.b16 %v375
    %v1114 = vunpack.c.l.b16 %v376
    %v1115 = vunpack.c.h.b16 %v376
    %v1116 = vunpack.c.l.b16 %v377
    %v1117 = vunpack.c.h.b16 %v377
    %v1118 = vunpack.c.l.b16 %v378
    %v1119 = vunpack.c.h.b16 %v378
    %v1120 = vunpack.c.l.b16 %v379
    %v1121 = vunpack.c.h.b16 %v379
    %v1122 = vunpack.c.l.b16 %v380
    %v1123 = vunpack.c.h.b16 %v380
    %v1124 = vunpack.c.l.b16 %v381
    %v1125 = vunpack.c.h.b16 %v381
    %v1126 = vunpack.c.l.b16 %v382
    %v1127 = vunpack.c.h.b16 %v382
    %v1128 = vunpack.c.l.b16 %v383
    %v1129 = vunpack.c.h.b16 %v383
    %v1130 = vunpack.c.l.b16 %v384
    %v1131 = vunpack.c.h.b16 %v384
    %v1132 = vunpack.c.l.b16 %v385
    %v1133 = vunpack.c.h.b16 %v385
    %v1134 = vunpack.c.l.b16 %v386
    %v1135 = vunpack.c.h.b16 %v386
    %v1136 = vunpack.c.l.b16 %v387
    %v1137 = vunpack.c.h.b16 %v387
    %v1138 = vunpack.c.l.b16 %v388
    %v1139 = vunpack.c.h.b16 %v388
    %v1140 = vunpack.c.l.b16 %v389
    %v1141 = vunpack.c.h.b16 %v389
    %v1142 = vunpack.c.l.b16 %v390
    %v1143 = vunpack.c.h.b16 %v390
    %v1144 = vunpack.c.l.b16 %v391
    %v1145 = vunpack.c.h.b16 %v391
    %v1146 = vunpack.c.l.b16 %v392
    %v1147 = vunpack.c.h.b16 %v392
    %v1148 = vunpack.c.l.b16 %v393
    %v1149 = vunpack.c.h.b16 %v393
    %v1150 = vunpack.c.l.b16 %v394
    %v1151 = vunpack.c.h.b16 %v394
    %v1152 = vunpack.c.l.b16 %v395
    %v1153 = vunpack.c.h.b16 %v395
    %v1154 = vunpack.c.l.b16 %v396
    %v1155 = vunpack.c.h.b16 %v396
    %v1156 = vunpack.c.l.b16 %v397
    %v1157 = vunpack.c.h.b16 %v397
    %v1158 = vunpack.c.l.b16 %v398
    %v1159 = vunpack.c.h.b16 %v398
    %v1160 = vunpack.c.l.b16 %v399
    %v1161 = vunpack.c.h.b16 %v399
    %v1162 = vunpack.c.l.b16 %v400
    %v1163 = vunpack.c.h.b16 %v400
    %v1164 = vunpack.c.l.b16 %v401
    %v1165 = vunpack.c.h.b16 %v401
    %v1166 = vunpack.c.l.b16 %v402
    %v1167 = vunpack.c.h.b16 %v402
    %v1168 = vunpack.c.l.b16 %v403
    %v1169 = vunpack.c.h.b16 %v403
    %v1170 = vunpack.c.l.b16 %v404
    %v1171 = vunpack.c.h.b16 %v404
    %v1172 = vunpack.c.l.b16 %v405
    %v1173 = vunpack.c.h.b16 %v405
    %v1174 = vunpack.c.l.b16 %v406
    %v1175 = vunpack.c.h.b16 %v406
    %v1176 = vunpack.c.l.b16 %v407
    %v1177 = vunpack.c.h.b16 %v407
    %v1178 = vunpack.c.l.b16 %v408
    %v1179 = vunpack.c.h.b16 %v408
    %v1180 = vunpack.c.l.b16 %v409
    %v1181 = vunpack.c.h.b16 %v409
    %v1182 = vunpack.c.l.b16 %v410
    %v1183 = vunpack.c.h.b16 %v410
    %v1184 = vunpack.c.l.b16 %v411
    %v1185 = vunpack.c.h.b16 %v411
    %v1186 = vunpack.c.l.b16 %v412
    %v1187 = vunpack.c.h.b16 %v412
    %v1188 = vunpack.c.l.b16 %v413
    %v1189 = vunpack.c.h.b16 %v413
    %v1190 = vunpack.c.l.b16 %v414
    %v1191 = vunpack.c.h.b16 %v414
    %v1192 = vunpack.c.l.b16 %v415
    %v1193 = vunpack.c.h.b16 %v415
    %v1194 = vunpack.c.l.b16 %v416
    %v1195 = vunpack.c.h.b16 %v416
    %v1196 = vunpack.c.l.b16 %v417
    %v1197 = vunpack.c.h.b16 %v417
    %v1198 = vunpack.c.l.b16 %v418
    %v1199 = vunpack.c.h.b16 %v418
    %v1200 = vunpack.c.l.b16 %v419
    %v1201 = vunpack.c.h.b16 %v419
    %v1202 = vunpack.c.l.b16 %v420
    %v1203 = vunpack.c.h.b16 %v420
    %v1204 = vunpack.c.l.b16 %v421
    %v1205 = vunpack.c.h.b16 %v421
    %v1206 = vunpack.c.l.b16 %v422
    %v1207 = vunpack.c.h.b16 %v422
    %v1208 = vunpack.c.l.b16 %v423
    %v1209 = vunpack.c.h.b16 %v423
    %v1210 = vunpack.c.l.b16 %v424
    %v1211 = vunpack.c.h.b16 %v424
    %v1212 = vunpack.c.l.b16 %v425
    %v1213 = vunpack.c.h.b16 %v425
    %v1214 = vunpack.c.l.b16 %v426
    %v1215 = vunpack.c.h.b16 %v426
    %v1216 = vunpack.c.l.b16 %v427
    %v1217 = vunpack.c.h.b16 %v427
    %v1218 = vpack.c.b16 %v710, %v706
    %v1219 = vpack.c.b16 %v711, %v707
    %v1220 = vpack.c.b16 %v712, %v708
    %v1221 = vpack.c.b16 %v713, %v709
    %v1222 = vpack.c.b16 %v718, %v714
    %v1223 = vpack.c.b16 %v719, %v715
    %v1224 = vpack.c.b16 %v720, %v716
    %v1225 = vpack.c.b16 %v721, %v717
    %v1226 = vpack.c.b16 %v726, %v722
    %v1227 = vpack.c.b16 %v727, %v723
    %v1228 = vpack.c.b16 %v728, %v724
    %v1229 = vpack.c.b16 %v729, %v725
    %v1230 = vpack.c.b16 %v734, %v730
    %v1231 = vpack.c.b16 %v735, %v731
    %v1232 = vpack.c.b16 %v736, %v732
    %v1233 = vpack.c.b16 %v737, %v733
    %v1234 = vpack.c.b16 %v742, %v738
    %v1235 = vpack.c.b16 %v743, %v739
    %v1236 = vpack.c.b16 %v744, %v740
    %v1237 = vpack.c.b16 %v745, %v741
    %v1238 = vpack.c.b16 %v750, %v746
    %v1239 = vpack.c.b16 %v751, %v747
    %v1240 = vpack.c.b16 %v752, %v748
    %v1241 = vpack.c.b16 %v753, %v749
    %v1242 = vpack.c.b16 %v758, %v754
    %v1243 = vpack.c.b16 %v759, %v755
    %v1244 = vpack.c.b16 %v760, %v756
    %v1245 = vpack.c.b16 %v761, %v757
    %v1246 = vpack.c.b16 %v766, %v762
    %v1247 = vpack.c.b16 %v767, %v763
    %v1248 = vpack.c.b16 %v768, %v764
    %v1249 = vpack.c.b16 %v769, %v765
    %v1250 = vpack.c.b16 %v774, %v770
    %v1251 = vpack.c.b16 %v775, %v771
    %v1252 = vpack.c.b16 %v776, %v772
    %v1253 = vpack.c.b16 %v777, %v773
    %v1254 = vpack.c.b16 %v782, %v778
    %v1255 = vpack.c.b16 %v783, %v779
    %v1256 = vpack.c.b16 %v784, %v780
    %v1257 = vpack.c.b16 %v785, %v781
    %v1258 = vpack.c.b16 %v790, %v786
    %v1259 = vpack.c.b16 %v791, %v787
    %v1260 = vpack.c.b16 %v792, %v788
    %v1261 = vpack.c.b16 %v793, %v789
    %v1262 = vpack.c.b16 %v798, %v794
    %v1263 = vpack.c.b16 %v799, %v795
    %v1264 = vpack.c.b16 %v800, %v796
    %v1265 = vpack.c.b16 %v801, %v797
    %v1266 = vpack.c.b16 %v806, %v802
    %v1267 = vpack.c.b16 %v807, %v803
    %v1268 = vpack.c.b16 %v808, %v804
    %v1269 = vpack.c.b16 %v809, %v805
    %v1270 = vpack.c.b16 %v814, %v810
    %v1271 = vpack.c.b16 %v815, %v811
    %v1272 = vpack.c.b16 %v816, %v812
    %v1273 = vpack.c.b16 %v817, %v813
    %v1274 = vpack.c.b16 %v822, %v818
    %v1275 = vpack.c.b16 %v823, %v819
    %v1276 = vpack.c.b16 %v824, %v820
    %v1277 = vpack.c.b16 %v825, %v821
    %v1278 = vpack.c.b16 %v830, %v826
    %v1279 = vpack.c.b16 %v831, %v827
    %v1280 = vpack.c.b16 %v832, %v828
    %v1281 = vpack.c.b16 %v833, %v829
    %v1282 = vpack.c.b16 %v838, %v834
    %v1283 = vpack.c.b16 %v839, %v835
    %v1284 = vpack.c.b16 %v840, %v836
    %v1285 = vpack.c.b16 %v841, %v837
    %v1286 = vpack.c.b16 %v846, %v842
    %v1287 = vpack.c.b16 %v847, %v843
    %v1288 = vpack.c.b16 %v848, %v844
    %v1289 = vpack.c.b16 %v849, %v845
    %v1290 = vpack.c.b16 %v854, %v850
    %v1291 = vpack.c.b16 %v855, %v851
    %v1292 = vpack.c.b16 %v856, %v852
    %v1293 = vpack.c.b16 %v857, %v853
    %v1294 = vpack.c.b16 %v862, %v858
    %v1295 = vpack.c.b16 %v863, %v859
    %v1296 = vpack.c.b16 %v864, %v860
    %v1297 = vpack.c.b16 %v865, %v861
    %v1298 = vpack.c.b16 %v870, %v866
    %v1299 = vpack.c.b16 %v871, %v867
    %v1300 = vpack.c.b16 %v872, %v868
    %v1301 = vpack.c.b16 %v873, %v869
    %v1302 = vpack.c.b16 %v878, %v874
    %v1303 = vpack.c.b16 %v879, %v875
    %v1304 = vpack.c.b16 %v880, %v876
    %v1305 = vpack.c.b16 %v881, %v877
    %v1306 = vpack.c.b16 %v886, %v882
    %v1307 = vpack.c.b16 %v887, %v883
    %v1308 = vpack.c.b16 %v888, %v884
    %v1309 = vpack.c.b16 %v889, %v885
    %v1310 = vpack.c.b16 %v894, %v890
    %v1311 = vpack.c.b16 %v895, %v891
    %v1312 = vpack.c.b16 %v896, %v892
    %v1313 = vpack.c.b16 %v897, %v893
    %v1314 = vpack.c.b16 %v902, %v898
    %v1315 = vpack.c.b16 %v903, %v899
    %v1316 = vpack.c.b16 %v904, %v900
    %v1317 = vpack.c.b16 %v905, %v901
    %v1318 = vpack.c.b16 %v910, %v906
    %v1319 = vpack.c.b16 %v911, %v907
    %v1320 = vpack.c.b16 %v912, %v908
    %v1321 = vpack.c.b16 %v913, %v909
    %v1322 = vpack.c.b16 %v918, %v914
    %v1323 = vpack.c.b16 %v919, %v915
    %v1324 = vpack.c.b16 %v920, %v916
    %v1325 = vpack.c.b16 %v921, %v917
    %v1326 = vpack.c.b16 %v926, %v922
    %v1327 = vpack.c.b16 %v927, %v923
    %v1328 = vpack.c.b16 %v928, %v924
    %v1329 = vpack.c.b16 %v929, %v925
    %v1330 = vpack.c.b16 %v934, %v930
    %v1331 = vpack.c.b16 %v935, %v931
    %v1332 = vpack.c.b16 %v936, %v932
    %v1333 = vpack.c.b16 %v937, %v933
    %v1334 = vpack.c.b16 %v942, %v938
    %v1335 = vpack.c.b16 %v943, %v939
    %v1336 = vpack.c.b16 %v944, %v940
    %v1337 = vpack.c.b16 %v945, %v941
    %v1338 = vpack.c.b16 %v950, %v946
    %v1339 = vpack.c.b16 %v951, %v947
    %v1340 = vpack.c.b16 %v952, %v948
    %v1341 = vpack.c.b16 %v953, %v949
    %v1342 = vpack.c.b16 %v958, %v954
    %v1343 = vpack.c.b16 %v959, %v955
    %v1344 = vpack.c.b16 %v960, %v956
    %v1345 = vpack.c.b16 %v961, %v957
    %v1346 = vpack.c.b16 %v966, %v962
    %v1347 = vpack.c.b16 %v967, %v963
    %v1348 = vpack.c.b16 %v968, %v964
    %v1349 = vpack.c.b16 %v969, %v965
    %v1350 = vpack.c.b16 %v974, %v970
    %v1351 = vpack.c.b16 %v975, %v971
    %v1352 = vpack.c.b16 %v976, %v972
    %v1353 = vpack.c.b16 %v977, %v973
    %v1354 = vpack.c.b16 %v982, %v978
    %v1355 = vpack.c.b16 %v983, %v979
    %v1356 = vpack.c.b16 %v984, %v980
    %v1357 = vpack.c.b16 %v985, %v981
    %v1358 = vpack.c.b16 %v990, %v986
    %v1359 = vpack.c.b16 %v991, %v987
    %v1360 = vpack.c.b16 %v992, %v988
    %v1361 = vpack.c.b16 %v993, %v989
    %v1362 = vpack.c.b16 %v998, %v994
    %v1363 = vpack.c.b16 %v999, %v995
    %v1364 = vpack.c.b16 %v1000, %v996
    %v1365 = vpack.c.b16 %v1001, %v997
    %v1366 = vpack.c.b16 %v1006, %v1002
    %v1367 = vpack.c.b16 %v1007, %v1003
    %v1368 = vpack.c.b16 %v1008, %v1004
    %v1369 = vpack.c.b16 %v1009, %v1005
    %v1370 = vpack.c.b16 %v1014, %v1010
    %v1371 = vpack.c.b16 %v1015, %v1011
    %v1372 = vpack.c.b16 %v1016, %v1012
    %v1373 = vpack.c.b16 %v1017, %v1013
    %v1374 = vpack.c.b16 %v1022, %v1018
    %v1375 = vpack.c.b16 %v1023, %v1019
    %v1376 = vpack.c.b16 %v1024, %v1020
    %v1377 = vpack.c.b16 %v1025, %v1021
    %v1378 = vpack.c.b16 %v1030, %v1026
    %v1379 = vpack.c.b16 %v1031, %v1027
    %v1380 = vpack.c.b16 %v1032, %v1028
    %v1381 = vpack.c.b16 %v1033, %v1029
    %v1382 = vpack.c.b16 %v1038, %v1034
    %v1383 = vpack.c.b16 %v1039, %v1035
    %v1384 = vpack.c.b16 %v1040, %v1036
    %v1385 = vpack.c.b16 %v1041, %v1037
    %v1386 = vpack.c.b16 %v1046, %v1042
    %v1387 = vpack.c.b16 %v1047, %v1043
    %v1388 = vpack.c.b16 %v1048, %v1044
    %v1389 = vpack.c.b16 %v1049, %v1045
    %v1390 = vpack.c.b16 %v1054, %v1050
    %v1391 = vpack.c.b16 %v1055, %v1051
    %v1392 = vpack.c.b16 %v1056, %v1052
    %v1393 = vpack.c.b16 %v1057, %v1053
    %v1394 = vpack.c.b16 %v1062, %v1058
    %v1395 = vpack.c.b16 %v1063, %v1059
    %v1396 = vpack.c.b16 %v1064, %v1060
    %v1397 = vpack.c.b16 %v1065, %v1061
    %v1398 = vpack.c.b16 %v1070, %v1066
    %v1399 = vpack.c.b16 %v1071, %v1067
    %v1400 = vpack.c.b16 %v1072, %v1068
    %v1401 = vpack.c.b16 %v1073, %v1069
    %v1402 = vpack.c.b16 %v1078, %v1074
    %v1403 = vpack.c.b16 %v1079, %v1075
    %v1404 = vpack.c.b16 %v1080, %v1076
    %v1405 = vpack.c.b16 %v1081, %v1077
    %v1406 = vpack.c.b16 %v1086, %v1082
    %v1407 = vpack.c.b16 %v1087, %v1083
    %v1408 = vpack.c.b16 %v1088, %v1084
    %v1409 = vpack.c.b16 %v1089, %v1085
    %v1410 = vpack.c.b16 %v1094, %v1090
    %v1411 = vpack.c.b16 %v1095, %v1091
    %v1412 = vpack.c.b16 %v1096, %v1092
    %v1413 = vpack.c.b16 %v1097, %v1093
    %v1414 = vpack.c.b16 %v1102, %v1098
    %v1415 = vpack.c.b16 %v1103, %v1099
    %v1416 = vpack.c.b16 %v1104, %v1100
    %v1417 = vpack.c.b16 %v1105, %v1101
    %v1418 = vpack.c.b16 %v1110, %v1106
    %v1419 = vpack.c.b16 %v1111, %v1107
    %v1420 = vpack.c.b16 %v1112, %v1108
    %v1421 = vpack.c.b16 %v1113, %v1109
    %v1422 = vpack.c.b16 %v1118, %v1114
    %v1423 = vpack.c.b16 %v1119, %v1115
    %v1424 = vpack.c.b16 %v1120, %v1116
    %v1425 = vpack.c.b16 %v1121, %v1117
    %v1426 = vpack.c.b16 %v1126, %v1122
    %v1427 = vpack.c.b16 %v1127, %v1123
    %v1428 = vpack.c.b16 %v1128, %v1124
    %v1429 = vpack.c.b16 %v1129, %v1125
    %v1430 = vpack.c.b16 %v1134, %v1130
    %v1431 = vpack.c.b16 %v1135, %v1131
    %v1432 = vpack.c.b16 %v1136, %v1132
    %v1433 = vpack.c.b16 %v1137, %v1133
    %v1434 = vpack.c.b16 %v1142, %v1138
    %v1435 = vpack.c.b16 %v1143, %v1139
    %v1436 = vpack.c.b16 %v1144, %v1140
    %v1437 = vpack.c.b16 %v1145, %v1141
    %v1438 = vpack.c.b16 %v1150, %v1146
    %v1439 = vpack.c.b16 %v1151, %v1147
    %v1440 = vpack.c.b16 %v1152, %v1148
    %v1441 = vpack.c.b16 %v1153, %v1149
    %v1442 = vpack.c.b16 %v1158, %v1154
    %v1443 = vpack.c.b16 %v1159, %v1155
    %v1444 = vpack.c.b16 %v1160, %v1156
    %v1445 = vpack.c.b16 %v1161, %v1157
    %v1446 = vpack.c.b16 %v1166, %v1162
    %v1447 = vpack.c.b16 %v1167, %v1163
    %v1448 = vpack.c.b16 %v1168, %v1164
    %v1449 = vpack.c.b16 %v1169, %v1165
    %v1450 = vpack.c.b16 %v1174, %v1170
    %v1451 = vpack.c.b16 %v1175, %v1171
    %v1452 = vpack.c.b16 %v1176, %v1172
    %v1453 = vpack.c.b16 %v1177, %v1173
    %v1454 = vpack.c.b16 %v1182, %v1178
    %v1455 = vpack.c.b16 %v1183, %v1179
    %v1456 = vpack.c.b16 %v1184, %v1180
    %v1457 = vpack.c.b16 %v1185, %v1181
    %v1458 = vpack.c.b16 %v1190, %v1186
    %v1459 = vpack.c.b16 %v1191, %v1187
    %v1460 = vpack.c.b16 %v1192, %v1188
    %v1461 = vpack.c.b16 %v1193, %v1189
    %v1462 = vpack.c.b16 %v1198, %v1194
    %v1463 = vpack.c.b16 %v1199, %v1195
    %v1464 = vpack.c.b16 %v1200, %v1196
    %v1465 = vpack.c.b16 %v1201, %v1197
    %v1466 = vpack.c.b16 %v1206, %v1202
    %v1467 = vpack.c.b16 %v1207, %v1203
    %v1468 = vpack.c.b16 %v1208, %v1204
    %v1469 = vpack.c.b16 %v1209, %v1205
    %v1470 = vpack.c.b16 %v1214, %v1210
    %v1471 = vpack.c.b16 %v1215, %v1211
    %v1472 = vpack.c.b16 %v1216, %v1212
    %v1473 = vpack.c.b16 %v1217, %v1213
    %1730 = vmatprep.subr.bf16.mxu0 %v1219
    %1731 = vmatpush1.bf16.msra.mxu0 %v1218
    %1732 = vmatprep.subr.bf16.mxu0 %v1223
    %1733 = vmatpush1.bf16.msra.mxu0 %v1222
    %1734 = vmatprep.subr.bf16.mxu0 %v1227
    %1735 = vmatpush1.bf16.msra.mxu0 %v1226
    %1736 = vmatprep.subr.bf16.mxu0 %v1231
    %1737 = vmatpush1.bf16.msra.mxu0 %v1230
    %1738 = vmatprep.subr.bf16.mxu0 %v1235
    %1739 = vmatpush1.bf16.msra.mxu0 %v1234
    %1740 = vmatprep.subr.bf16.mxu0 %v1239
    %1741 = vmatpush1.bf16.msra.mxu0 %v1238
    %1742 = vmatprep.subr.bf16.mxu0 %v1243
    %1743 = vmatpush1.bf16.msra.mxu0 %v1242
    %1744 = vmatprep.subr.bf16.mxu0 %v1247
    %1745 = vmatpush1.bf16.msra.mxu0 %v1246
    %1746 = vmatprep.subr.bf16.mxu0 %v1251
    %1747 = vmatpush1.bf16.msra.mxu0 %v1250
    %1748 = vmatprep.subr.bf16.mxu0 %v1255
    %1749 = vmatpush1.bf16.msra.mxu0 %v1254
    %1750 = vmatprep.subr.bf16.mxu0 %v1259
    %1751 = vmatpush1.bf16.msra.mxu0 %v1258
    %1752 = vmatprep.subr.bf16.mxu0 %v1263
    %1753 = vmatpush1.bf16.msra.mxu0 %v1262
    %1754 = vmatprep.subr.bf16.mxu0 %v1267
    %1755 = vmatpush1.bf16.msra.mxu0 %v1266
    %1756 = vmatprep.subr.bf16.mxu0 %v1271
    %1757 = vmatpush1.bf16.msra.mxu0 %v1270
    %1758 = vmatprep.subr.bf16.mxu0 %v1275
    %1759 = vmatpush1.bf16.msra.mxu0 %v1274
    %1760 = vmatprep.subr.bf16.mxu0 %v1279
    %1761 = vmatpush1.bf16.msra.mxu0 %v1278
    %1762 = vmatprep.mubr.bf16.mxu0 %v165
    %1763 = vmatmul.mubr.bf16.gmra.mrb[0].mxu0 %v164
    %v1764 = vpop.f32.mrb[0].mxu0
    %v1765 = vadd.f32 %v433, %v1764
    %v1766 = vpop.f32.mrb[0].mxu0
    %v1767 = vadd.f32 %v437, %v1766
    %v1768 = vpop.f32.mrb[0].mxu0
    %v1769 = vpop.f32.mrb[0].mxu0
    %1770 = vdwg.mxu0
    %1771 = vmatprep.subr.bf16.mxu0 %v1283
    %1772 = vmatpush1.bf16.msra.mxu0 %v1282
    %1773 = vmatprep.subr.bf16.mxu0 %v1287
    %1774 = vmatpush1.bf16.msra.mxu0 %v1286
    %1775 = vmatprep.subr.bf16.mxu0 %v1291
    %1776 = vmatpush1.bf16.msra.mxu0 %v1290
    %1777 = vmatprep.subr.bf16.mxu0 %v1295
    %1778 = vmatpush1.bf16.msra.mxu0 %v1294
    %1779 = vmatprep.subr.bf16.mxu0 %v1299
    %1780 = vmatpush1.bf16.msra.mxu0 %v1298
    %1781 = vmatprep.subr.bf16.mxu0 %v1303
    %1782 = vmatpush1.bf16.msra.mxu0 %v1302
    %1783 = vmatprep.subr.bf16.mxu0 %v1307
    %1784 = vmatpush1.bf16.msra.mxu0 %v1306
    %1785 = vmatprep.subr.bf16.mxu0 %v1311
    %1786 = vmatpush1.bf16.msra.mxu0 %v1310
    %1787 = vmatprep.subr.bf16.mxu0 %v1315
    %1788 = vmatpush1.bf16.msra.mxu0 %v1314
    %1789 = vmatprep.subr.bf16.mxu0 %v1319
    %1790 = vmatpush1.bf16.msra.mxu0 %v1318
    %1791 = vmatprep.subr.bf16.mxu0 %v1323
    %1792 = vmatpush1.bf16.msra.mxu0 %v1322
    %1793 = vmatprep.subr.bf16.mxu0 %v1327
    %1794 = vmatpush1.bf16.msra.mxu0 %v1326
    %1795 = vmatprep.subr.bf16.mxu0 %v1331
    %1796 = vmatpush1.bf16.msra.mxu0 %v1330
    %1797 = vmatprep.subr.bf16.mxu0 %v1335
    %1798 = vmatpush1.bf16.msra.mxu0 %v1334
    %1799 = vmatprep.subr.bf16.mxu0 %v1339
    %1800 = vmatpush1.bf16.msra.mxu0 %v1338
    %1801 = vmatprep.subr.bf16.mxu0 %v1343
    %1802 = vmatpush1.bf16.msra.mxu0 %v1342
    %1803 = vmatprep.mubr.bf16.mxu0 %v167
    %1804 = vmatmul.mubr.bf16.gmra.mrb[0].mxu0 %v166
    %v1805 = vpop.f32.mrb[0].mxu0
    %v1806 = vadd.f32 %v1765, %v1805
    %v1807 = vpop.f32.mrb[0].mxu0
    %v1808 = vadd.f32 %v1767, %v1807
    %v1809 = vpop.f32.mrb[0].mxu0
    %v1810 = vpop.f32.mrb[0].mxu0
    %1811 = vdwg.mxu0
    %1812 = vmatprep.subr.bf16.mxu0 %v1347
    %1813 = vmatpush1.bf16.msra.mxu0 %v1346
    %1814 = vmatprep.subr.bf16.mxu0 %v1351
    %1815 = vmatpush1.bf16.msra.mxu0 %v1350
    %1816 = vmatprep.subr.bf16.mxu0 %v1355
    %1817 = vmatpush1.bf16.msra.mxu0 %v1354
    %1818 = vmatprep.subr.bf16.mxu0 %v1359
    %1819 = vmatpush1.bf16.msra.mxu0 %v1358
    %1820 = vmatprep.subr.bf16.mxu0 %v1363
    %1821 = vmatpush1.bf16.msra.mxu0 %v1362
    %1822 = vmatprep.subr.bf16.mxu0 %v1367
    %1823 = vmatpush1.bf16.msra.mxu0 %v1366
    %1824 = vmatprep.subr.bf16.mxu0 %v1371
    %1825 = vmatpush1.bf16.msra.mxu0 %v1370
    %1826 = vmatprep.subr.bf16.mxu0 %v1375
    %1827 = vmatpush1.bf16.msra.mxu0 %v1374
    %1828 = vmatprep.subr.bf16.mxu0 %v1379
    %1829 = vmatpush1.bf16.msra.mxu0 %v1378
    %1830 = vmatprep.subr.bf16.mxu0 %v1383
    %1831 = vmatpush1.bf16.msra.mxu0 %v1382
    %1832 = vmatprep.subr.bf16.mxu0 %v1387
    %1833 = vmatpush1.bf16.msra.mxu0 %v1386
    %1834 = vmatprep.subr.bf16.mxu0 %v1391
    %1835 = vmatpush1.bf16.msra.mxu0 %v1390
    %1836 = vmatprep.subr.bf16.mxu0 %v1395
    %1837 = vmatpush1.bf16.msra.mxu0 %v1394
    %1838 = vmatprep.subr.bf16.mxu0 %v1399
    %1839 = vmatpush1.bf16.msra.mxu0 %v1398
    %1840 = vmatprep.subr.bf16.mxu0 %v1403
    %1841 = vmatpush1.bf16.msra.mxu0 %v1402
    %1842 = vmatprep.subr.bf16.mxu0 %v1407
    %1843 = vmatpush1.bf16.msra.mxu0 %v1406
    %1844 = vmatprep.mubr.bf16.mxu0 %v169
    %1845 = vmatmul.mubr.bf16.gmra.mrb[0].mxu0 %v168
    %v1846 = vpop.f32.mrb[0].mxu0
    %v1847 = vadd.f32 %v1806, %v1846
    %v1848 = vpop.f32.mrb[0].mxu0
    %v1849 = vadd.f32 %v1808, %v1848
    %v1850 = vpop.f32.mrb[0].mxu0
    %v1851 = vpop.f32.mrb[0].mxu0
    %1852 = vdwg.mxu0
    %1853 = vmatprep.subr.bf16.mxu0 %v1411
    %1854 = vmatpush1.bf16.msra.mxu0 %v1410
    %1855 = vmatprep.subr.bf16.mxu0 %v1415
    %1856 = vmatpush1.bf16.msra.mxu0 %v1414
    %1857 = vmatprep.subr.bf16.mxu0 %v1419
    %1858 = vmatpush1.bf16.msra.mxu0 %v1418
    %1859 = vmatprep.subr.bf16.mxu0 %v1423
    %1860 = vmatpush1.bf16.msra.mxu0 %v1422
    %1861 = vmatprep.subr.bf16.mxu0 %v1427
    %1862 = vmatpush1.bf16.msra.mxu0 %v1426
    %1863 = vmatprep.subr.bf16.mxu0 %v1431
    %1864 = vmatpush1.bf16.msra.mxu0 %v1430
    %1865 = vmatprep.subr.bf16.mxu0 %v1435
    %1866 = vmatpush1.bf16.msra.mxu0 %v1434
    %1867 = vmatprep.subr.bf16.mxu0 %v1439
    %1868 = vmatpush1.bf16.msra.mxu0 %v1438
    %1869 = vmatprep.subr.bf16.mxu0 %v1443
    %1870 = vmatpush1.bf16.msra.mxu0 %v1442
    %1871 = vmatprep.subr.bf16.mxu0 %v1447
    %1872 = vmatpush1.bf16.msra.mxu0 %v1446
    %1873 = vmatprep.subr.bf16.mxu0 %v1451
    %1874 = vmatpush1.bf16.msra.mxu0 %v1450
    %1875 = vmatprep.subr.bf16.mxu0 %v1455
    %1876 = vmatpush1.bf16.msra.mxu0 %v1454
    %1877 = vmatprep.subr.bf16.mxu0 %v1459
    %1878 = vmatpush1.bf16.msra.mxu0 %v1458
    %1879 = vmatprep.subr.bf16.mxu0 %v1463
    %1880 = vmatpush1.bf16.msra.mxu0 %v1462
    %1881 = vmatprep.subr.bf16.mxu0 %v1467
    %1882 = vmatpush1.bf16.msra.mxu0 %v1466
    %1883 = vmatprep.subr.bf16.mxu0 %v1471
    %1884 = vmatpush1.bf16.msra.mxu0 %v1470
    %1885 = vmatprep.mubr.bf16.mxu0 %v171
    %1886 = vmatmul.mubr.bf16.gmra.mrb[0].mxu0 %v170
    %v1887 = vpop.f32.mrb[0].mxu0
    %v1888 = vadd.f32 %v1847, %v1887
    %v1889 = vpop.f32.mrb[0].mxu0
    %v1890 = vadd.f32 %v1849, %v1889
    %v1891 = vpop.f32.mrb[0].mxu0
    %v1892 = vpop.f32.mrb[0].mxu0
    %1893 = vdwg.mxu0
    %1894 = vmatprep.subr.bf16.mxu0 %v1221
    %1895 = vmatpush1.bf16.msra.mxu0 %v1220
    %1896 = vmatprep.subr.bf16.mxu0 %v1225
    %1897 = vmatpush1.bf16.msra.mxu0 %v1224
    %1898 = vmatprep.subr.bf16.mxu0 %v1229
    %1899 = vmatpush1.bf16.msra.mxu0 %v1228
    %1900 = vmatprep.subr.bf16.mxu0 %v1233
    %1901 = vmatpush1.bf16.msra.mxu0 %v1232
    %1902 = vmatprep.subr.bf16.mxu0 %v1237
    %1903 = vmatpush1.bf16.msra.mxu0 %v1236
    %1904 = vmatprep.subr.bf16.mxu0 %v1241
    %1905 = vmatpush1.bf16.msra.mxu0 %v1240
    %1906 = vmatprep.subr.bf16.mxu0 %v1245
    %1907 = vmatpush1.bf16.msra.mxu0 %v1244
    %1908 = vmatprep.subr.bf16.mxu0 %v1249
    %1909 = vmatpush1.bf16.msra.mxu0 %v1248
    %1910 = vmatprep.subr.bf16.mxu0 %v1253
    %1911 = vmatpush1.bf16.msra.mxu0 %v1252
    %1912 = vmatprep.subr.bf16.mxu0 %v1257
    %1913 = vmatpush1.bf16.msra.mxu0 %v1256
    %1914 = vmatprep.subr.bf16.mxu0 %v1261
    %1915 = vmatpush1.bf16.msra.mxu0 %v1260
    %1916 = vmatprep.subr.bf16.mxu0 %v1265
    %1917 = vmatpush1.bf16.msra.mxu0 %v1264
    %1918 = vmatprep.subr.bf16.mxu0 %v1269
    %1919 = vmatpush1.bf16.msra.mxu0 %v1268
    %1920 = vmatprep.subr.bf16.mxu0 %v1273
    %1921 = vmatpush1.bf16.msra.mxu0 %v1272
    %1922 = vmatprep.subr.bf16.mxu0 %v1277
    %1923 = vmatpush1.bf16.msra.mxu0 %v1276
    %1924 = vmatprep.subr.bf16.mxu0 %v1281
    %1925 = vmatpush1.bf16.msra.mxu0 %v1280
    %1926 = vmatprep.mubr.bf16.mxu0 %v165
    %1927 = vmatmul.mubr.bf16.gmra.mrb[0].mxu0 %v164
    %v1928 = vpop.f32.mrb[0].mxu0
    %v1929 = vadd.f32 %v441, %v1928
    %v1930 = vpop.f32.mrb[0].mxu0
    %v1931 = vadd.f32 %v445, %v1930
    %v1932 = vpop.f32.mrb[0].mxu0
    %v1933 = vpop.f32.mrb[0].mxu0
    %1934 = vdwg.mxu0
    %1935 = vmatprep.subr.bf16.mxu0 %v1285
    %1936 = vmatpush1.bf16.msra.mxu0 %v1284
    %1937 = vmatprep.subr.bf16.mxu0 %v1289
    %1938 = vmatpush1.bf16.msra.mxu0 %v1288
    %1939 = vmatprep.subr.bf16.mxu0 %v1293
    %1940 = vmatpush1.bf16.msra.mxu0 %v1292
    %1941 = vmatprep.subr.bf16.mxu0 %v1297
    %1942 = vmatpush1.bf16.msra.mxu0 %v1296
    %1943 = vmatprep.subr.bf16.mxu0 %v1301
    %1944 = vmatpush1.bf16.msra.mxu0 %v1300
    %1945 = vmatprep.subr.bf16.mxu0 %v1305
    %1946 = vmatpush1.bf16.msra.mxu0 %v1304
    %1947 = vmatprep.subr.bf16.mxu0 %v1309
    %1948 = vmatpush1.bf16.msra.mxu0 %v1308
    %1949 = vmatprep.subr.bf16.mxu0 %v1313
    %1950 = vmatpush1.bf16.msra.mxu0 %v1312
    %1951 = vmatprep.subr.bf16.mxu0 %v1317
    %1952 = vmatpush1.bf16.msra.mxu0 %v1316
    %1953 = vmatprep.subr.bf16.mxu0 %v1321
    %1954 = vmatpush1.bf16.msra.mxu0 %v1320
    %1955 = vmatprep.subr.bf16.mxu0 %v1325
    %1956 = vmatpush1.bf16.msra.mxu0 %v1324
    %1957 = vmatprep.subr.bf16.mxu0 %v1329
    %1958 = vmatpush1.bf16.msra.mxu0 %v1328
    %1959 = vmatprep.subr.bf16.mxu0 %v1333
    %1960 = vmatpush1.bf16.msra.mxu0 %v1332
    %1961 = vmatprep.subr.bf16.mxu0 %v1337
    %1962 = vmatpush1.bf16.msra.mxu0 %v1336
    %1963 = vmatprep.subr.bf16.mxu0 %v1341
    %1964 = vmatpush1.bf16.msra.mxu0 %v1340
    %1965 = vmatprep.subr.bf16.mxu0 %v1345
    %1966 = vmatpush1.bf16.msra.mxu0 %v1344
    %1967 = vmatprep.mubr.bf16.mxu0 %v167
    %1968 = vmatmul.mubr.bf16.gmra.mrb[0].mxu0 %v166
    %v1969 = vpop.f32.mrb[0].mxu0
    %v1970 = vadd.f32 %v1929, %v1969
    %v1971 = vpop.f32.mrb[0].mxu0
    %v1972 = vadd.f32 %v1931, %v1971
    %v1973 = vpop.f32.mrb[0].mxu0
    %v1974 = vpop.f32.mrb[0].mxu0
    %1975 = vdwg.mxu0
    %1976 = vmatprep.subr.bf16.mxu0 %v1349
    %1977 = vmatpush1.bf16.msra.mxu0 %v1348
    %1978 = vmatprep.subr.bf16.mxu0 %v1353
    %1979 = vmatpush1.bf16.msra.mxu0 %v1352
    %1980 = vmatprep.subr.bf16.mxu0 %v1357
    %1981 = vmatpush1.bf16.msra.mxu0 %v1356
    %1982 = vmatprep.subr.bf16.mxu0 %v1361
    %1983 = vmatpush1.bf16.msra.mxu0 %v1360
    %1984 = vmatprep.subr.bf16.mxu0 %v1365
    %1985 = vmatpush1.bf16.msra.mxu0 %v1364
    %1986 = vmatprep.subr.bf16.mxu0 %v1369
    %1987 = vmatpush1.bf16.msra.mxu0 %v1368
    %1988 = vmatprep.subr.bf16.mxu0 %v1373
    %1989 = vmatpush1.bf16.msra.mxu0 %v1372
    %1990 = vmatprep.subr.bf16.mxu0 %v1377
    %1991 = vmatpush1.bf16.msra.mxu0 %v1376
    %1992 = vmatprep.subr.bf16.mxu0 %v1381
    %1993 = vmatpush1.bf16.msra.mxu0 %v1380
    %1994 = vmatprep.subr.bf16.mxu0 %v1385
    %1995 = vmatpush1.bf16.msra.mxu0 %v1384
    %1996 = vmatprep.subr.bf16.mxu0 %v1389
    %1997 = vmatpush1.bf16.msra.mxu0 %v1388
    %1998 = vmatprep.subr.bf16.mxu0 %v1393
    %1999 = vmatpush1.bf16.msra.mxu0 %v1392
    %2000 = vmatprep.subr.bf16.mxu0 %v1397
    %2001 = vmatpush1.bf16.msra.mxu0 %v1396
    %2002 = vmatprep.subr.bf16.mxu0 %v1401
    %2003 = vmatpush1.bf16.msra.mxu0 %v1400
    %2004 = vmatprep.subr.bf16.mxu0 %v1405
    %2005 = vmatpush1.bf16.msra.mxu0 %v1404
    %2006 = vmatprep.subr.bf16.mxu0 %v1409
    %2007 = vmatpush1.bf16.msra.mxu0 %v1408
    %2008 = vmatprep.mubr.bf16.mxu0 %v169
    %2009 = vmatmul.mubr.bf16.gmra.mrb[0].mxu0 %v168
    %v2010 = vpop.f32.mrb[0].mxu0
    %v2011 = vadd.f32 %v1970, %v2010
    %v2012 = vpop.f32.mrb[0].mxu0
    %v2013 = vadd.f32 %v1972, %v2012
    %v2014 = vpop.f32.mrb[0].mxu0
    %v2015 = vpop.f32.mrb[0].mxu0
    %2016 = vdwg.mxu0
    %2017 = vmatprep.subr.bf16.mxu0 %v1413
    %2018 = vmatpush1.bf16.msra.mxu0 %v1412
    %2019 = vmatprep.subr.bf16.mxu0 %v1417
    %2020 = vmatpush1.bf16.msra.mxu0 %v1416
    %2021 = vmatprep.subr.bf16.mxu0 %v1421
    %2022 = vmatpush1.bf16.msra.mxu0 %v1420
    %2023 = vmatprep.subr.bf16.mxu0 %v1425
    %2024 = vmatpush1.bf16.msra.mxu0 %v1424
    %2025 = vmatprep.subr.bf16.mxu0 %v1429
    %2026 = vmatpush1.bf16.msra.mxu0 %v1428
    %2027 = vmatprep.subr.bf16.mxu0 %v1433
    %2028 = vmatpush1.bf16.msra.mxu0 %v1432
    %2029 = vmatprep.subr.bf16.mxu0 %v1437
    %2030 = vmatpush1.bf16.msra.mxu0 %v1436
    %2031 = vmatprep.subr.bf16.mxu0 %v1441
    %2032 = vmatpush1.bf16.msra.mxu0 %v1440
    %2033 = vmatprep.subr.bf16.mxu0 %v1445
    %2034 = vmatpush1.bf16.msra.mxu0 %v1444
    %2035 = vmatprep.subr.bf16.mxu0 %v1449
    %2036 = vmatpush1.bf16.msra.mxu0 %v1448
    %2037 = vmatprep.subr.bf16.mxu0 %v1453
    %2038 = vmatpush1.bf16.msra.mxu0 %v1452
    %2039 = vmatprep.subr.bf16.mxu0 %v1457
    %2040 = vmatpush1.bf16.msra.mxu0 %v1456
    %2041 = vmatprep.subr.bf16.mxu0 %v1461
    %2042 = vmatpush1.bf16.msra.mxu0 %v1460
    %2043 = vmatprep.subr.bf16.mxu0 %v1465
    %2044 = vmatpush1.bf16.msra.mxu0 %v1464
    %2045 = vmatprep.subr.bf16.mxu0 %v1469
    %2046 = vmatpush1.bf16.msra.mxu0 %v1468
    %2047 = vmatprep.subr.bf16.mxu0 %v1473
    %2048 = vmatpush1.bf16.msra.mxu0 %v1472
    %2049 = vmatprep.mubr.bf16.mxu0 %v171
    %2050 = vmatmul.mubr.bf16.gmra.mrb[0].mxu0 %v170
    %v2051 = vpop.f32.mrb[0].mxu0
    %v2052 = vadd.f32 %v2011, %v2051
    %v2053 = vpop.f32.mrb[0].mxu0
    %v2054 = vadd.f32 %v2013, %v2053
    %v2055 = vpop.f32.mrb[0].mxu0
    %v2056 = vpop.f32.mrb[0].mxu0
    %2057 = vdwg.mxu0
    %v2058 = vmax.f32 %v1888, 0.0
    %v2059 = vmax.f32 %v1890, 0.0
    %v2060 = vmax.f32 %v2052, 0.0
    %v2061 = vmax.f32 %v2054, 0.0
    %v2062 = vpack.c.bf16 %v2058, %v2058
    %v2063 = vpack.c.bf16 %v2059, %v2059
    %v2064 = vpack.c.bf16 %v2060, %v2060
    %v2065 = vpack.c.bf16 %v2061, %v2061
    %v2066 = vld [vmem:[%s4] sm:$0xff]
    %v2067 = vld [vmem:[%s4 + $0x8] sm:$0xff]
    %v2068 = vld [vmem:[%s4 + $0x10] sm:$0xff]
    %v2069 = vld [vmem:[%s4 + $0x18] sm:$0xff]
    %v2070 = vld [vmem:[%s4 + $0x20] sm:$0xff]
    %v2071 = vld [vmem:[%s4 + $0x28] sm:$0xff]
    %v2072 = vld [vmem:[%s4 + $0x30] sm:$0xff]
    %v2073 = vld [vmem:[%s4 + $0x38] sm:$0xff]
    %v2074 = vld [vmem:[%s4 + $0x40] sm:$0xff]
    %v2075 = vld [vmem:[%s4 + $0x48] sm:$0xff]
    %v2076 = vld [vmem:[%s4 + $0x50] sm:$0xff]
    %v2077 = vld [vmem:[%s4 + $0x58] sm:$0xff]
    %v2078 = vld [vmem:[%s4 + $0x60] sm:$0xff]
    %v2079 = vld [vmem:[%s4 + $0x68] sm:$0xff]
    %v2080 = vld [vmem:[%s4 + $0x70] sm:$0xff]
    %v2081 = vld [vmem:[%s4 + $0x78] sm:$0xff]
    %v2082 = vld [vmem:[%s4 + $0x80] sm:$0xff]
    %v2083 = vld [vmem:[%s4 + $0x88] sm:$0xff]
    %v2084 = vld [vmem:[%s4 + $0x90] sm:$0xff]
    %v2085 = vld [vmem:[%s4 + $0x98] sm:$0xff]
    %v2086 = vld [vmem:[%s4 + $0xa0] sm:$0xff]
    %v2087 = vld [vmem:[%s4 + $0xa8] sm:$0xff]
    %v2088 = vld [vmem:[%s4 + $0xb0] sm:$0xff]
    %v2089 = vld [vmem:[%s4 + $0xb8] sm:$0xff]
    %v2090 = vld [vmem:[%s4 + $0xc0] sm:$0xff]
    %v2091 = vld [vmem:[%s4 + $0xc8] sm:$0xff]
    %v2092 = vld [vmem:[%s4 + $0xd0] sm:$0xff]
    %v2093 = vld [vmem:[%s4 + $0xd8] sm:$0xff]
    %v2094 = vld [vmem:[%s4 + $0xe0] sm:$0xff]
    %v2095 = vld [vmem:[%s4 + $0xe8] sm:$0xff]
    %v2096 = vld [vmem:[%s4 + $0xf0] sm:$0xff]
    %v2097 = vld [vmem:[%s4 + $0xf8] sm:$0xff]
    %v2098 = vld [vmem:[%s4 + $0x100] sm:$0xff]
    %v2099 = vld [vmem:[%s4 + $0x108] sm:$0xff]
    %v2100 = vld [vmem:[%s4 + $0x110] sm:$0xff]
    %v2101 = vld [vmem:[%s4 + $0x118] sm:$0xff]
    %v2102 = vld [vmem:[%s4 + $0x120] sm:$0xff]
    %v2103 = vld [vmem:[%s4 + $0x128] sm:$0xff]
    %v2104 = vld [vmem:[%s4 + $0x130] sm:$0xff]
    %v2105 = vld [vmem:[%s4 + $0x138] sm:$0xff]
    %v2106 = vld [vmem:[%s4 + $0x140] sm:$0xff]
    %v2107 = vld [vmem:[%s4 + $0x148] sm:$0xff]
    %v2108 = vld [vmem:[%s4 + $0x150] sm:$0xff]
    %v2109 = vld [vmem:[%s4 + $0x158] sm:$0xff]
    %v2110 = vld [vmem:[%s4 + $0x160] sm:$0xff]
    %v2111 = vld [vmem:[%s4 + $0x168] sm:$0xff]
    %v2112 = vld [vmem:[%s4 + $0x170] sm:$0xff]
    %v2113 = vld [vmem:[%s4 + $0x178] sm:$0xff]
    %v2114 = vld [vmem:[%s4 + $0x180] sm:$0xff]
    %v2115 = vld [vmem:[%s4 + $0x188] sm:$0xff]
    %v2116 = vld [vmem:[%s4 + $0x190] sm:$0xff]
    %v2117 = vld [vmem:[%s4 + $0x198] sm:$0xff]
    %v2118 = vld [vmem:[%s4 + $0x1a0] sm:$0xff]
    %v2119 = vld [vmem:[%s4 + $0x1a8] sm:$0xff]
    %v2120 = vld [vmem:[%s4 + $0x1b0] sm:$0xff]
    %v2121 = vld [vmem:[%s4 + $0x1b8] sm:$0xff]
    %v2122 = vld [vmem:[%s4 + $0x1c0] sm:$0xff]
    %v2123 = vld [vmem:[%s4 + $0x1c8] sm:$0xff]
    %v2124 = vld [vmem:[%s4 + $0x1d0] sm:$0xff]
    %v2125 = vld [vmem:[%s4 + $0x1d8] sm:$0xff]
    %v2126 = vld [vmem:[%s4 + $0x1e0] sm:$0xff]
    %v2127 = vld [vmem:[%s4 + $0x1e8] sm:$0xff]
    %v2128 = vld [vmem:[%s4 + $0x1f0] sm:$0xff]
    %v2129 = vld [vmem:[%s4 + $0x1f8] sm:$0xff]
    %v2130 = vld [vmem:[%s5] sm:$0x3]
    %v2132 = vlaneseq
    %v2133 = vshrl.u32 %v2132, 7
    %v2134 = vsub.s32 0, %v2133
    %v2135 = vrot.slane %v2130, %v2134
    %v2136 = vlaneseq
    %v2137 = vshrl.u32 %v2136, 7
    %v2138 = vsub.s32 1, %v2137
    %v2139 = vrot.slane %v2130, %v2138
    %v2206 = vunpack.c.l.b16 %v2066
    %v2207 = vunpack.c.h.b16 %v2066
    %v2208 = vunpack.c.l.b16 %v2067
    %v2209 = vunpack.c.h.b16 %v2067
    %v2210 = vunpack.c.l.b16 %v2068
    %v2211 = vunpack.c.h.b16 %v2068
    %v2212 = vunpack.c.l.b16 %v2069
    %v2213 = vunpack.c.h.b16 %v2069
    %v2214 = vunpack.c.l.b16 %v2070
    %v2215 = vunpack.c.h.b16 %v2070
    %v2216 = vunpack.c.l.b16 %v2071
    %v2217 = vunpack.c.h.b16 %v2071
    %v2218 = vunpack.c.l.b16 %v2072
    %v2219 = vunpack.c.h.b16 %v2072
    %v2220 = vunpack.c.l.b16 %v2073
    %v2221 = vunpack.c.h.b16 %v2073
    %v2222 = vunpack.c.l.b16 %v2074
    %v2223 = vunpack.c.h.b16 %v2074
    %v2224 = vunpack.c.l.b16 %v2075
    %v2225 = vunpack.c.h.b16 %v2075
    %v2226 = vunpack.c.l.b16 %v2076
    %v2227 = vunpack.c.h.b16 %v2076
    %v2228 = vunpack.c.l.b16 %v2077
    %v2229 = vunpack.c.h.b16 %v2077
    %v2230 = vunpack.c.l.b16 %v2078
    %v2231 = vunpack.c.h.b16 %v2078
    %v2232 = vunpack.c.l.b16 %v2079
    %v2233 = vunpack.c.h.b16 %v2079
    %v2234 = vunpack.c.l.b16 %v2080
    %v2235 = vunpack.c.h.b16 %v2080
    %v2236 = vunpack.c.l.b16 %v2081
    %v2237 = vunpack.c.h.b16 %v2081
    %v2238 = vunpack.c.l.b16 %v2082
    %v2239 = vunpack.c.h.b16 %v2082
    %v2240 = vunpack.c.l.b16 %v2083
    %v2241 = vunpack.c.h.b16 %v2083
    %v2242 = vunpack.c.l.b16 %v2084
    %v2243 = vunpack.c.h.b16 %v2084
    %v2244 = vunpack.c.l.b16 %v2085
    %v2245 = vunpack.c.h.b16 %v2085
    %v2246 = vunpack.c.l.b16 %v2086
    %v2247 = vunpack.c.h.b16 %v2086
    %v2248 = vunpack.c.l.b16 %v2087
    %v2249 = vunpack.c.h.b16 %v2087
    %v2250 = vunpack.c.l.b16 %v2088
    %v2251 = vunpack.c.h.b16 %v2088
    %v2252 = vunpack.c.l.b16 %v2089
    %v2253 = vunpack.c.h.b16 %v2089
    %v2254 = vunpack.c.l.b16 %v2090
    %v2255 = vunpack.c.h.b16 %v2090
    %v2256 = vunpack.c.l.b16 %v2091
    %v2257 = vunpack.c.h.b16 %v2091
    %v2258 = vunpack.c.l.b16 %v2092
    %v2259 = vunpack.c.h.b16 %v2092
    %v2260 = vunpack.c.l.b16 %v2093
    %v2261 = vunpack.c.h.b16 %v2093
    %v2262 = vunpack.c.l.b16 %v2094
    %v2263 = vunpack.c.h.b16 %v2094
    %v2264 = vunpack.c.l.b16 %v2095
    %v2265 = vunpack.c.h.b16 %v2095
    %v2266 = vunpack.c.l.b16 %v2096
    %v2267 = vunpack.c.h.b16 %v2096
    %v2268 = vunpack.c.l.b16 %v2097
    %v2269 = vunpack.c.h.b16 %v2097
    %v2270 = vunpack.c.l.b16 %v2098
    %v2271 = vunpack.c.h.b16 %v2098
    %v2272 = vunpack.c.l.b16 %v2099
    %v2273 = vunpack.c.h.b16 %v2099
    %v2274 = vunpack.c.l.b16 %v2100
    %v2275 = vunpack.c.h.b16 %v2100
    %v2276 = vunpack.c.l.b16 %v2101
    %v2277 = vunpack.c.h.b16 %v2101
    %v2278 = vunpack.c.l.b16 %v2102
    %v2279 = vunpack.c.h.b16 %v2102
    %v2280 = vunpack.c.l.b16 %v2103
    %v2281 = vunpack.c.h.b16 %v2103
    %v2282 = vunpack.c.l.b16 %v2104
    %v2283 = vunpack.c.h.b16 %v2104
    %v2284 = vunpack.c.l.b16 %v2105
    %v2285 = vunpack.c.h.b16 %v2105
    %v2286 = vunpack.c.l.b16 %v2106
    %v2287 = vunpack.c.h.b16 %v2106
    %v2288 = vunpack.c.l.b16 %v2107
    %v2289 = vunpack.c.h.b16 %v2107
    %v2290 = vunpack.c.l.b16 %v2108
    %v2291 = vunpack.c.h.b16 %v2108
    %v2292 = vunpack.c.l.b16 %v2109
    %v2293 = vunpack.c.h.b16 %v2109
    %v2294 = vunpack.c.l.b16 %v2110
    %v2295 = vunpack.c.h.b16 %v2110
    %v2296 = vunpack.c.l.b16 %v2111
    %v2297 = vunpack.c.h.b16 %v2111
    %v2298 = vunpack.c.l.b16 %v2112
    %v2299 = vunpack.c.h.b16 %v2112
    %v2300 = vunpack.c.l.b16 %v2113
    %v2301 = vunpack.c.h.b16 %v2113
    %v2302 = vunpack.c.l.b16 %v2114
    %v2303 = vunpack.c.h.b16 %v2114
    %v2304 = vunpack.c.l.b16 %v2115
    %v2305 = vunpack.c.h.b16 %v2115
    %v2306 = vunpack.c.l.b16 %v2116
    %v2307 = vunpack.c.h.b16 %v2116
    %v2308 = vunpack.c.l.b16 %v2117
    %v2309 = vunpack.c.h.b16 %v2117
    %v2310 = vunpack.c.l.b16 %v2118
    %v2311 = vunpack.c.h.b16 %v2118
    %v2312 = vunpack.c.l.b16 %v2119
    %v2313 = vunpack.c.h.b16 %v2119
    %v2314 = vunpack.c.l.b16 %v2120
    %v2315 = vunpack.c.h.b16 %v2120
    %v2316 = vunpack.c.l.b16 %v2121
    %v2317 = vunpack.c.h.b16 %v2121
    %v2318 = vunpack.c.l.b16 %v2122
    %v2319 = vunpack.c.h.b16 %v2122
    %v2320 = vunpack.c.l.b16 %v2123
    %v2321 = vunpack.c.h.b16 %v2123
    %v2322 = vunpack.c.l.b16 %v2124
    %v2323 = vunpack.c.h.b16 %v2124
    %v2324 = vunpack.c.l.b16 %v2125
    %v2325 = vunpack.c.h.b16 %v2125
    %v2326 = vunpack.c.l.b16 %v2126
    %v2327 = vunpack.c.h.b16 %v2126
    %v2328 = vunpack.c.l.b16 %v2127
    %v2329 = vunpack.c.h.b16 %v2127
    %v2330 = vunpack.c.l.b16 %v2128
    %v2331 = vunpack.c.h.b16 %v2128
    %v2332 = vunpack.c.l.b16 %v2129
    %v2333 = vunpack.c.h.b16 %v2129
    %v2334 = vpack.c.b16 %v2208, %v2206
    %v2335 = vpack.c.b16 %v2209, %v2207
    %v2336 = vpack.c.b16 %v2212, %v2210
    %v2337 = vpack.c.b16 %v2213, %v2211
    %v2338 = vpack.c.b16 %v2216, %v2214
    %v2339 = vpack.c.b16 %v2217, %v2215
    %v2340 = vpack.c.b16 %v2220, %v2218
    %v2341 = vpack.c.b16 %v2221, %v2219
    %v2342 = vpack.c.b16 %v2224, %v2222
    %v2343 = vpack.c.b16 %v2225, %v2223
    %v2344 = vpack.c.b16 %v2228, %v2226
    %v2345 = vpack.c.b16 %v2229, %v2227
    %v2346 = vpack.c.b16 %v2232, %v2230
    %v2347 = vpack.c.b16 %v2233, %v2231
    %v2348 = vpack.c.b16 %v2236, %v2234
    %v2349 = vpack.c.b16 %v2237, %v2235
    %v2350 = vpack.c.b16 %v2240, %v2238
    %v2351 = vpack.c.b16 %v2241, %v2239
    %v2352 = vpack.c.b16 %v2244, %v2242
    %v2353 = vpack.c.b16 %v2245, %v2243
    %v2354 = vpack.c.b16 %v2248, %v2246
    %v2355 = vpack.c.b16 %v2249, %v2247
    %v2356 = vpack.c.b16 %v2252, %v2250
    %v2357 = vpack.c.b16 %v2253, %v2251
    %v2358 = vpack.c.b16 %v2256, %v2254
    %v2359 = vpack.c.b16 %v2257, %v2255
    %v2360 = vpack.c.b16 %v2260, %v2258
    %v2361 = vpack.c.b16 %v2261, %v2259
    %v2362 = vpack.c.b16 %v2264, %v2262
    %v2363 = vpack.c.b16 %v2265, %v2263
    %v2364 = vpack.c.b16 %v2268, %v2266
    %v2365 = vpack.c.b16 %v2269, %v2267
    %v2366 = vpack.c.b16 %v2272, %v2270
    %v2367 = vpack.c.b16 %v2273, %v2271
    %v2368 = vpack.c.b16 %v2276, %v2274
    %v2369 = vpack.c.b16 %v2277, %v2275
    %v2370 = vpack.c.b16 %v2280, %v2278
    %v2371 = vpack.c.b16 %v2281, %v2279
    %v2372 = vpack.c.b16 %v2284, %v2282
    %v2373 = vpack.c.b16 %v2285, %v2283
    %v2374 = vpack.c.b16 %v2288, %v2286
    %v2375 = vpack.c.b16 %v2289, %v2287
    %v2376 = vpack.c.b16 %v2292, %v2290
    %v2377 = vpack.c.b16 %v2293, %v2291
    %v2378 = vpack.c.b16 %v2296, %v2294
    %v2379 = vpack.c.b16 %v2297, %v2295
    %v2380 = vpack.c.b16 %v2300, %v2298
    %v2381 = vpack.c.b16 %v2301, %v2299
    %v2382 = vpack.c.b16 %v2304, %v2302
    %v2383 = vpack.c.b16 %v2305, %v2303
    %v2384 = vpack.c.b16 %v2308, %v2306
    %v2385 = vpack.c.b16 %v2309, %v2307
    %v2386 = vpack.c.b16 %v2312, %v2310
    %v2387 = vpack.c.b16 %v2313, %v2311
    %v2388 = vpack.c.b16 %v2316, %v2314
    %v2389 = vpack.c.b16 %v2317, %v2315
    %v2390 = vpack.c.b16 %v2320, %v2318
    %v2391 = vpack.c.b16 %v2321, %v2319
    %v2392 = vpack.c.b16 %v2324, %v2322
    %v2393 = vpack.c.b16 %v2325, %v2323
    %v2394 = vpack.c.b16 %v2328, %v2326
    %v2395 = vpack.c.b16 %v2329, %v2327
    %v2396 = vpack.c.b16 %v2332, %v2330
    %v2397 = vpack.c.b16 %v2333, %v2331
    %2462 = vmatprep.subr.bf16.mxu0 %v2335
    %2463 = vmatpush1.bf16.msra.mxu0 %v2334
    %2464 = vmatprep.subr.bf16.mxu0 %v2337
    %2465 = vmatpush1.bf16.msra.mxu0 %v2336
    %2466 = vmatprep.subr.bf16.mxu0 %v2339
    %2467 = vmatpush1.bf16.msra.mxu0 %v2338
    %2468 = vmatprep.subr.bf16.mxu0 %v2341
    %2469 = vmatpush1.bf16.msra.mxu0 %v2340
    %2470 = vmatprep.subr.bf16.mxu0 %v2343
    %2471 = vmatpush1.bf16.msra.mxu0 %v2342
    %2472 = vmatprep.subr.bf16.mxu0 %v2345
    %2473 = vmatpush1.bf16.msra.mxu0 %v2344
    %2474 = vmatprep.subr.bf16.mxu0 %v2347
    %2475 = vmatpush1.bf16.msra.mxu0 %v2346
    %2476 = vmatprep.subr.bf16.mxu0 %v2349
    %2477 = vmatpush1.bf16.msra.mxu0 %v2348
    %2478 = vmatprep.subr.bf16.mxu0 %v2351
    %2479 = vmatpush1.bf16.msra.mxu0 %v2350
    %2480 = vmatprep.subr.bf16.mxu0 %v2353
    %2481 = vmatpush1.bf16.msra.mxu0 %v2352
    %2482 = vmatprep.subr.bf16.mxu0 %v2355
    %2483 = vmatpush1.bf16.msra.mxu0 %v2354
    %2484 = vmatprep.subr.bf16.mxu0 %v2357
    %2485 = vmatpush1.bf16.msra.mxu0 %v2356
    %2486 = vmatprep.subr.bf16.mxu0 %v2359
    %2487 = vmatpush1.bf16.msra.mxu0 %v2358
    %2488 = vmatprep.subr.bf16.mxu0 %v2361
    %2489 = vmatpush1.bf16.msra.mxu0 %v2360
    %2490 = vmatprep.subr.bf16.mxu0 %v2363
    %2491 = vmatpush1.bf16.msra.mxu0 %v2362
    %2492 = vmatprep.subr.bf16.mxu0 %v2365
    %2493 = vmatpush1.bf16.msra.mxu0 %v2364
    %2494 = vmatprep.mubr.bf16.mxu0 %v2063
    %2495 = vmatmul.mubr.bf16.gmra.mrb[0].mxu0 %v2062
    %v2496 = vpop.f32.mrb[0].mxu0
    %v2497 = vadd.f32 %v2135, %v2496
    %v2498 = vpop.f32.mrb[0].mxu0
    %v2499 = vadd.f32 %v2139, %v2498
    %v2500 = vpop.f32.mrb[0].mxu0
    %v2501 = vpop.f32.mrb[0].mxu0
    %2502 = vdwg.mxu0
    %2503 = vmatprep.subr.bf16.mxu0 %v2367
    %2504 = vmatpush1.bf16.msra.mxu0 %v2366
    %2505 = vmatprep.subr.bf16.mxu0 %v2369
    %2506 = vmatpush1.bf16.msra.mxu0 %v2368
    %2507 = vmatprep.subr.bf16.mxu0 %v2371
    %2508 = vmatpush1.bf16.msra.mxu0 %v2370
    %2509 = vmatprep.subr.bf16.mxu0 %v2373
    %2510 = vmatpush1.bf16.msra.mxu0 %v2372
    %2511 = vmatprep.subr.bf16.mxu0 %v2375
    %2512 = vmatpush1.bf16.msra.mxu0 %v2374
    %2513 = vmatprep.subr.bf16.mxu0 %v2377
    %2514 = vmatpush1.bf16.msra.mxu0 %v2376
    %2515 = vmatprep.subr.bf16.mxu0 %v2379
    %2516 = vmatpush1.bf16.msra.mxu0 %v2378
    %2517 = vmatprep.subr.bf16.mxu0 %v2381
    %2518 = vmatpush1.bf16.msra.mxu0 %v2380
    %2519 = vmatprep.subr.bf16.mxu0 %v2383
    %2520 = vmatpush1.bf16.msra.mxu0 %v2382
    %2521 = vmatprep.subr.bf16.mxu0 %v2385
    %2522 = vmatpush1.bf16.msra.mxu0 %v2384
    %2523 = vmatprep.subr.bf16.mxu0 %v2387
    %2524 = vmatpush1.bf16.msra.mxu0 %v2386
    %2525 = vmatprep.subr.bf16.mxu0 %v2389
    %2526 = vmatpush1.bf16.msra.mxu0 %v2388
    %2527 = vmatprep.subr.bf16.mxu0 %v2391
    %2528 = vmatpush1.bf16.msra.mxu0 %v2390
    %2529 = vmatprep.subr.bf16.mxu0 %v2393
    %2530 = vmatpush1.bf16.msra.mxu0 %v2392
    %2531 = vmatprep.subr.bf16.mxu0 %v2395
    %2532 = vmatpush1.bf16.msra.mxu0 %v2394
    %2533 = vmatprep.subr.bf16.mxu0 %v2397
    %2534 = vmatpush1.bf16.msra.mxu0 %v2396
    %2535 = vmatprep.mubr.bf16.mxu0 %v2065
    %2536 = vmatmul.mubr.bf16.gmra.mrb[0].mxu0 %v2064
    %v2537 = vpop.f32.mrb[0].mxu0
    %v2538 = vadd.f32 %v2497, %v2537
    %v2539 = vpop.f32.mrb[0].mxu0
    %v2540 = vadd.f32 %v2499, %v2539
    %v2541 = vpop.f32.mrb[0].mxu0
    %v2542 = vpop.f32.mrb[0].mxu0
    %2543 = vdwg.mxu0
    %v2544 = vmax.f32 %v2538, 0.0
    %v2545 = vmax.f32 %v2540, 0.0
    %v2546 = vpack.c.bf16 %v2544, %v2544
    %v2547 = vpack.c.bf16 %v2545, %v2545
    %v2548 = vld [vmem:[%s6] sm:$0xf]
    %v2549 = vld [vmem:[%s6 + $0x4] sm:$0xf]
    %v2550 = vld [vmem:[%s6 + $0x8] sm:$0xf]
    %v2551 = vld [vmem:[%s6 + $0xc] sm:$0xf]
    %v2552 = vld [vmem:[%s6 + $0x10] sm:$0xf]
    %v2553 = vld [vmem:[%s6 + $0x14] sm:$0xf]
    %v2554 = vld [vmem:[%s6 + $0x18] sm:$0xf]
    %v2555 = vld [vmem:[%s6 + $0x1c] sm:$0xf]
    %v2556 = vld [vmem:[%s6 + $0x20] sm:$0xf]
    %v2557 = vld [vmem:[%s6 + $0x24] sm:$0xf]
    %v2558 = vld [vmem:[%s6 + $0x28] sm:$0xf]
    %v2559 = vld [vmem:[%s6 + $0x2c] sm:$0xf]
    %v2560 = vld [vmem:[%s6 + $0x30] sm:$0xf]
    %v2561 = vld [vmem:[%s6 + $0x34] sm:$0xf]
    %v2562 = vld [vmem:[%s6 + $0x38] sm:$0xf]
    %v2563 = vld [vmem:[%s6 + $0x3c] sm:$0xf]
    %v2564 = vld [vmem:[%s6 + $0x40] sm:$0xf]
    %v2565 = vld [vmem:[%s6 + $0x44] sm:$0xf]
    %v2566 = vld [vmem:[%s6 + $0x48] sm:$0xf]
    %v2567 = vld [vmem:[%s6 + $0x4c] sm:$0xf]
    %v2568 = vld [vmem:[%s6 + $0x50] sm:$0xf]
    %v2569 = vld [vmem:[%s6 + $0x54] sm:$0xf]
    %v2570 = vld [vmem:[%s6 + $0x58] sm:$0xf]
    %v2571 = vld [vmem:[%s6 + $0x5c] sm:$0xf]
    %v2572 = vld [vmem:[%s6 + $0x60] sm:$0xf]
    %v2573 = vld [vmem:[%s6 + $0x64] sm:$0xf]
    %v2574 = vld [vmem:[%s6 + $0x68] sm:$0xf]
    %v2575 = vld [vmem:[%s6 + $0x6c] sm:$0xf]
    %v2576 = vld [vmem:[%s6 + $0x70] sm:$0xf]
    %v2577 = vld [vmem:[%s6 + $0x74] sm:$0xf]
    %v2578 = vld [vmem:[%s6 + $0x78] sm:$0xf]
    %v2579 = vld [vmem:[%s6 + $0x7c] sm:$0xf]
    %v2580 = vld [vmem:[%s7] sm:$0x1]
    %v2582 = vlaneseq
    %v2583 = vshrl.u32 %v2582, 7
    %v2584 = vsub.s32 0, %v2583
    %v2585 = vrot.slane %v2580, %v2584
    %v2619 = vunpack.c.l.b16 %v2548
    %v2620 = vunpack.c.l.b16 %v2549
    %v2621 = vunpack.c.l.b16 %v2550
    %v2622 = vunpack.c.l.b16 %v2551
    %v2623 = vunpack.c.l.b16 %v2552
    %v2624 = vunpack.c.l.b16 %v2553
    %v2625 = vunpack.c.l.b16 %v2554
    %v2626 = vunpack.c.l.b16 %v2555
    %v2627 = vunpack.c.l.b16 %v2556
    %v2628 = vunpack.c.l.b16 %v2557
    %v2629 = vunpack.c.l.b16 %v2558
    %v2630 = vunpack.c.l.b16 %v2559
    %v2631 = vunpack.c.l.b16 %v2560
    %v2632 = vunpack.c.l.b16 %v2561
    %v2633 = vunpack.c.l.b16 %v2562
    %v2634 = vunpack.c.l.b16 %v2563
    %v2635 = vunpack.c.l.b16 %v2564
    %v2636 = vunpack.c.l.b16 %v2565
    %v2637 = vunpack.c.l.b16 %v2566
    %v2638 = vunpack.c.l.b16 %v2567
    %v2639 = vunpack.c.l.b16 %v2568
    %v2640 = vunpack.c.l.b16 %v2569
    %v2641 = vunpack.c.l.b16 %v2570
    %v2642 = vunpack.c.l.b16 %v2571
    %v2643 = vunpack.c.l.b16 %v2572
    %v2644 = vunpack.c.l.b16 %v2573
    %v2645 = vunpack.c.l.b16 %v2574
    %v2646 = vunpack.c.l.b16 %v2575
    %v2647 = vunpack.c.l.b16 %v2576
    %v2648 = vunpack.c.l.b16 %v2577
    %v2649 = vunpack.c.l.b16 %v2578
    %v2650 = vunpack.c.l.b16 %v2579
    %v2651 = vpack.c.b16 %v2620, %v2619
    %v2652 = vpack.c.b16 %v2622, %v2621
    %v2653 = vpack.c.b16 %v2624, %v2623
    %v2654 = vpack.c.b16 %v2626, %v2625
    %v2655 = vpack.c.b16 %v2628, %v2627
    %v2656 = vpack.c.b16 %v2630, %v2629
    %v2657 = vpack.c.b16 %v2632, %v2631
    %v2658 = vpack.c.b16 %v2634, %v2633
    %v2659 = vpack.c.b16 %v2636, %v2635
    %v2660 = vpack.c.b16 %v2638, %v2637
    %v2661 = vpack.c.b16 %v2640, %v2639
    %v2662 = vpack.c.b16 %v2642, %v2641
    %v2663 = vpack.c.b16 %v2644, %v2643
    %v2664 = vpack.c.b16 %v2646, %v2645
    %v2665 = vpack.c.b16 %v2648, %v2647
    %v2666 = vpack.c.b16 %v2650, %v2649
    %2683 = vmatprep.subr.bf16.mxu0 0
    %2684 = vmatpush1.bf16.msra.mxu0 %v2651
    %2685 = vmatprep.subr.bf16.mxu0 0
    %2686 = vmatpush1.bf16.msra.mxu0 %v2652
    %2687 = vmatprep.subr.bf16.mxu0 0
    %2688 = vmatpush1.bf16.msra.mxu0 %v2653
    %2689 = vmatprep.subr.bf16.mxu0 0
    %2690 = vmatpush1.bf16.msra.mxu0 %v2654
    %2691 = vmatprep.subr.bf16.mxu0 0
    %2692 = vmatpush1.bf16.msra.mxu0 %v2655
    %2693 = vmatprep.subr.bf16.mxu0 0
    %2694 = vmatpush1.bf16.msra.mxu0 %v2656
    %2695 = vmatprep.subr.bf16.mxu0 0
    %2696 = vmatpush1.bf16.msra.mxu0 %v2657
    %2697 = vmatprep.subr.bf16.mxu0 0
    %2698 = vmatpush1.bf16.msra.mxu0 %v2658
    %2699 = vmatprep.subr.bf16.mxu0 0
    %2700 = vmatpush1.bf16.msra.mxu0 %v2659
    %2701 = vmatprep.subr.bf16.mxu0 0
    %2702 = vmatpush1.bf16.msra.mxu0 %v2660
    %2703 = vmatprep.subr.bf16.mxu0 0
    %2704 = vmatpush1.bf16.msra.mxu0 %v2661
    %2705 = vmatprep.subr.bf16.mxu0 0
    %2706 = vmatpush1.bf16.msra.mxu0 %v2662
    %2707 = vmatprep.subr.bf16.mxu0 0
    %2708 = vmatpush1.bf16.msra.mxu0 %v2663
    %2709 = vmatprep.subr.bf16.mxu0 0
    %2710 = vmatpush1.bf16.msra.mxu0 %v2664
    %2711 = vmatprep.subr.bf16.mxu0 0
    %2712 = vmatpush1.bf16.msra.mxu0 %v2665
    %2713 = vmatprep.subr.bf16.mxu0 0
    %2714 = vmatpush1.bf16.msra.mxu0 %v2666
    %2715 = vmatprep.mubr.bf16.mxu0 %v2547
    %2716 = vmatmul.mubr.bf16.gmra.mrb[0].mxu0 %v2546
    %v2717 = vpop.f32.mrb[0].mxu0
    %v2718 = vadd.f32 %v2585, %v2717
    %v2719 = vpop.f32.mrb[0].mxu0
    %v2720 = vpop.f32.mrb[0].mxu0
    %v2721 = vpop.f32.mrb[0].mxu0
    %2722 = vdwg.mxu0
    %v2723 = vlaneseq
    %v2724 = vand.u32 %v2723, 127
    %vm2725 = vcmp.lt.s32.totalorder %v2724, 0
    %v2726 = vsub.s32 0, %v2724
    %v2727 = vsel %vm2725, %v2726, %v2724
    %v2728 = vshrl.u32 %v2727, 2
    %v2729 = vand.u32 %v2727, 3
    %v2730 = vsub.s32 0, %v2729
    %v2731 = vsel %vm2725, %v2730, %v2729
    %vm2732 = vcmp.ne.s32.totalorder %v2731, 0
    %vm2733 = vcmp.lt.s32.totalorder %v2731, 0
    %vm2734 = vmand %vm2733, %vm2732
    %v2735 = vadd.s32 %v2731, 4
    %v2736 = vsel %vm2734, %v2735, %v2731
    %vm2737 = vcmp.eq.s32.totalorder %v2736, 0
    %vm2738 = vcmp.lt.s32.totalorder %v2724, 9
    %vm2739 = vmand %vm2737, %vm2738
    %v2740 = vsel %vm2739, 1.0, 0.0
    %v2741 = vadd.f32 %v2718, %v2740
    %2742 = vst [vmem:[%s8] sm:$0x3] %v2741
    // Predicated region
    $region38: #{stn3d_forward.3} parent=1 // pred_check
      _
    $region39: #{stn3d_forward.3} parent=1 // pred_check_branch
      %2744 = sbr.rel (0) target = $region41
    $region40: #{stn3d_forward.3} parent=1 // pred_region
      _
    $region41: #{stn3d_forward.3} parent=1 // pred_fallthru
      _
    // Predicated region
    $region42: #{stn3d_forward.3} parent=1 // pred_check
      _
    $region43: #{stn3d_forward.3} parent=1 // pred_check_branch
      %2746 = sbr.rel (0) target = $region45
    $region44: #{stn3d_forward.3} parent=1 // pred_region
      _
    $region45: #{stn3d_forward.3} parent=1 // pred_fallthru
      _
    %2747 = vsyncpa [#allocation3], 1

</llo_original>
